<compile_context>
chip_gen: v7x
topology: tpu7x:2x2x1
jax: 0.10.0
libtpu: 0.0.40
codegen_flags: <defaults>
</compile_context>

<pallas_src>
import functools

import numpy as np
import jax
import jax.numpy as jnp
from jax import lax
from jax.experimental import pallas as pl
from jax.experimental.pallas import tpu as pltpu

NEG_SLOPE = 0.2
LANE = 128
SUBLANE = 8


def _round_up(n, m):
    return ((n + m - 1) // m) * m


# ---------------------------------------------------------------------------
# Parameter preparation (done ONCE, outside the hot path).
# Zero padding is exact: padded weight rows/cols and biases are 0, so padded
# lanes of every intermediate are 0 and contribute nothing to q*q, leaky_relu
# or the gradient; the wrapper slices the padding off the output.
# ---------------------------------------------------------------------------
def init_icnn_params(key, in_dim, hidden, num_layers):
    """Synthetic weights with the shapes ICNN.scalar actually uses.
    (wz[-1]/wx_quad[-1]/wx_lin[-1] of the PyTorch module are never touched by
     scalar()/forward(), so they are omitted.)"""
    L = num_layers
    k1, k2, k3, k4 = jax.random.split(key, 4)
    # wz small & nonnegative, mirroring initialize_weights / zero_clip_weights.
    wz = jax.random.uniform(k1, (L + 1, hidden, hidden), jnp.float32, 0.0, 0.001)
    wa = 0.1 * jax.random.normal(k2, (L + 2, hidden, in_dim), dtype=jnp.float32)
    wb = 0.1 * jax.random.normal(k3, (L + 2, hidden, in_dim), dtype=jnp.float32)
    bias = 0.1 * jax.random.normal(k4, (L + 2, 1, hidden), dtype=jnp.float32)
    return dict(wz=wz, wa=wa, wb=wb, bias=bias)


def prepare_icnn_params(raw, in_dim, hidden):
    """Pad D/H to 128 lanes and keep BOTH weight orientations."""
    Dp, Hp = _round_up(in_dim, LANE), _round_up(hidden, LANE)
    wz, wa, wb, bias = raw['wz'], raw['wa'], raw['wb'], raw['bias']
    pad2 = lambda a, r, c: jnp.pad(
        a, ((0, 0), (0, r - a.shape[1]), (0, c - a.shape[2])))
    wz_p = pad2(wz, Hp, Hp)                                  # (L+1, Hp, Hp)
    wa_p = pad2(wa, Hp, Dp)                                  # (L+2, Hp, Dp)
    wb_p = pad2(wb, Hp, Dp)
    bias_p = jnp.pad(bias, ((0, 0), (0, 0), (0, Hp - bias.shape[2])))
    return dict(
        wz=wz_p, wzT=jnp.swapaxes(wz_p, 1, 2),
        wa=wa_p, waT=jnp.swapaxes(wa_p, 1, 2),
        wb=wb_p, wbT=jnp.swapaxes(wb_p, 1, 2),
        bias=bias_p,
    )


# ---------------------------------------------------------------------------
# In-kernel math (shared by both kernels).
# ---------------------------------------------------------------------------
def _icnn_grad_blend(x, wzT, wz, waT, wa, wbT, wb, bias, *,
                     num_layers, strong_convexity, negative_slope, matmul_dtype):
    """ICNN.forward for one batch tile x: (TB, Dp) f32.
    wzT/wz: (L+1, Hp, Hp); waT/wbT: (L+2, Dp, Hp); wa/wb: (L+2, Hp, Dp);
    bias: (L+2, 1, Hp).  Weight args are VMEM refs indexed with static ints."""
    f32 = jnp.float32
    dn = (((1,), (0,)), ((), ()))          # standard (B,K)@(K,N) -- no transposes

    def mm(a, b):
        return lax.dot_general(a.astype(matmul_dtype), b.astype(matmul_dtype),
                               dn, preferred_element_type=f32)

    L = num_layers
    tqs, masks = [], []

    # ---- forward sweep of the scalar network (stash 2*q and the lrelu mask) --
    q = mm(x, waT[0])
    lin = mm(x, wbT[0])
    u = q * q + lin + bias[0].astype(f32)
    z = jnp.where(u > 0, u, negative_slope * u)
    tqs.append(q + q)
    masks.append(u > 0)

    for k in range(1, L + 2):
        # keep the three dot_generals of a layer adjacent (MRB-friendly on v7x)
        q = mm(x, waT[k])
        lin = mm(x, wbT[k])
        zc = mm(z, wzT[k - 1])
        u = zc + q * q + lin + bias[k].astype(f32)
        z = jnp.where(u > 0, u, negative_slope * u)
        tqs.append(q + q)
        masks.append(u > 0)

    # ---- backward (VJP) sweep: gx = d(sum z_{L+1}) / dx ----------------------
    g = jnp.ones_like(z)                   # dS/dz_{L+1}
    gx = jnp.zeros_like(x)
    for k in range(L + 1, 0, -1):
        du = jnp.where(masks[k], g, negative_slope * g)
        gx = gx + mm(du * tqs[k], wa[k]) + mm(du, wb[k])
        g = mm(du, wz[k - 1])
    du = jnp.where(masks[0], g, negative_slope * g)
    gx = gx + mm(du * tqs[0], wa[0]) + mm(du, wb[0])

    return (1.0 - strong_convexity) * gx + strong_convexity * x


# ---------------------------------------------------------------------------
# Kernel 1: a single ICNN.forward (the spec module).
# ---------------------------------------------------------------------------
def _icnn_forward_kernel(x_ref, wzT_ref, wz_ref, waT_ref, wa_ref, wbT_ref,
                         wb_ref, bias_ref, out_ref, *, num_layers,
                         strong_convexity, negative_slope, matmul_dtype):
    x = x_ref[...].astype(jnp.float32)
    out = _icnn_grad_blend(x, wzT_ref, wz_ref, waT_ref, wa_ref, wbT_ref, wb_ref,
                           bias_ref, num_layers=num_layers,
                           strong_convexity=strong_convexity,
                           negative_slope=negative_slope,
                           matmul_dtype=matmul_dtype)
    out_ref[...] = out.astype(out_ref.dtype)


def _weight_specs(L, Dp, Hp):
    const = lambda i: (0, 0, 0)            # weights stay VMEM-resident
    return [
        pl.BlockSpec((L + 1, Hp, Hp), const),   # wzT
        pl.BlockSpec((L + 1, Hp, Hp), const),   # wz
        pl.BlockSpec((L + 2, Dp, Hp), const),   # waT
        pl.BlockSpec((L + 2, Hp, Dp), const),   # wa
        pl.BlockSpec((L + 2, Dp, Hp), const),   # wbT
        pl.BlockSpec((L + 2, Hp, Dp), const),   # wb
        pl.BlockSpec((L + 2, 1, Hp), const),    # bias
    ]


def icnn_forward(x, params, *, num_layers, strong_convexity,
                 negative_slope=NEG_SLOPE, matmul_dtype=jnp.float32,
                 block_batch=256):
    """Pallas-backed ICNN.forward.  `params` comes from prepare_icnn_params.
    NOTE: block_batch sizes the per-core batch tile; the live activation stash
    is ~2*(L+2)*TB*Hp f32 plus both weight orientations -- halve block_batch
    on v7x (64 MiB VMEM) for large hidden/num_layers."""
    B, D = x.shape
    Hp = params['wz'].shape[-1]
    Dp = params['wa'].shape[-1]
    L = num_layers
    TB = min(_round_up(B, SUBLANE), block_batch)
    Bp = _round_up(B, TB)
    xp = jnp.pad(x, ((0, Bp - B), (0, Dp - D)))

    kernel = functools.partial(_icnn_forward_kernel, num_layers=L,
                               strong_convexity=strong_convexity,
                               negative_slope=negative_slope,
                               matmul_dtype=matmul_dtype)
    out = pl.pallas_call(
        kernel,
        out_shape=jax.ShapeDtypeStruct((Bp, Dp), x.dtype),
        grid=(Bp // TB,),
        in_specs=[pl.BlockSpec((TB, Dp), lambda i: (i, 0))]
                 + _weight_specs(L, Dp, Hp),
        out_specs=pl.BlockSpec((TB, Dp), lambda i: (i, 0)),
        compiler_params=pltpu.CompilerParams(
            dimension_semantics=("parallel",)),     # megacore on v7x
    )(xp, params['wzT'], params['wz'], params['waT'], params['wa'],
      params['wbT'], params['wb'], params['bias'])
    return out[:B, :D]


# ---------------------------------------------------------------------------
# Kernel 2: fused ICNNCouple-style step loop in ONE pallas_call.
# fx = fwd(x) is computed once; the iterate and fx live in vregs/VMEM for all
# steps (no per-iteration HBM round trips, weights DMA'd exactly once).
# ---------------------------------------------------------------------------
def _icnn_couple_kernel(ss_ref, x_ref, y_ref,
                        f_wzT, f_wz, f_waT, f_wa, f_wbT, f_wb, f_bias,
                        b_wzT, b_wz, b_waT, b_wa, b_wbT, b_wb, b_bias,
                        out_ref, *, num_iters, num_layers, strong_convexity,
                        negative_slope, matmul_dtype, grad_fun):
    x = x_ref[...].astype(jnp.float32)
    y = y_ref[...].astype(jnp.float32)
    blend = functools.partial(_icnn_grad_blend, num_layers=num_layers,
                              strong_convexity=strong_convexity,
                              negative_slope=negative_slope,
                              matmul_dtype=matmul_dtype)
    # fwd_model(x) is loop-invariant in ICNNCouple.forward (x never changes).
    fx = blend(x, f_wzT, f_wz, f_waT, f_wa, f_wbT, f_wb, f_bias)
    v = x
    # TODO(synk): only JAX-traceable per-block grad_fun(v, y) can be fused here;
    # arbitrary external PyTorch gradFun callables have no Pallas equivalent.
    for i in range(num_iters):                 # unrolled; stepsize read from SMEM
        v = blend(fx - ss_ref[i] * grad_fun(v, y),
                  b_wzT, b_wz, b_waT, b_wa, b_wbT, b_wb, b_bias)
    out_ref[...] = v.astype(out_ref.dtype)


def icnn_couple_forward(x, y, fwd_params, bwd_params, stepsize, *, num_layers,
                        strong_convexity, grad_fun, negative_slope=NEG_SLOPE,
                        matmul_dtype=jnp.float32, block_batch=128):
    B, D = x.shape
    Hp = fwd_params['wz'].shape[-1]
    Dp = fwd_params['wa'].shape[-1]
    L = num_layers
    TB = min(_round_up(B, SUBLANE), block_batch)
    Bp = _round_up(B, TB)
    pad = lambda a: jnp.pad(a, ((0, Bp - B), (0, Dp - D)))

    kernel = functools.partial(_icnn_couple_kernel,
                               num_iters=int(stepsize.shape[0]), num_layers=L,
                               strong_convexity=strong_convexity,
                               negative_slope=negative_slope,
                               matmul_dtype=matmul_dtype, grad_fun=grad_fun)
    wspecs = _weight_specs(L, Dp, Hp)
    out = pl.pallas_call(
        kernel,
        out_shape=jax.ShapeDtypeStruct((Bp, Dp), x.dtype),
        grid=(Bp // TB,),
        in_specs=([pl.BlockSpec(memory_space=pltpu.MemorySpace.SMEM),  # stepsize
                   pl.BlockSpec((TB, Dp), lambda i: (i, 0)),           # x
                   pl.BlockSpec((TB, Dp), lambda i: (i, 0))]           # y
                  + wspecs + wspecs),
        out_specs=pl.BlockSpec((TB, Dp), lambda i: (i, 0)),
        compiler_params=pltpu.CompilerParams(
            dimension_semantics=("parallel",)),
    )(stepsize, pad(x), pad(y),
      fwd_params['wzT'], fwd_params['wz'], fwd_params['waT'], fwd_params['wa'],
      fwd_params['wbT'], fwd_params['wb'], fwd_params['bias'],
      bwd_params['wzT'], bwd_params['wz'], bwd_params['waT'], bwd_params['wa'],
      bwd_params['wbT'], bwd_params['wb'], bwd_params['bias'])
    return out[:B, :D]


# ---------------------------- pure-JAX reference ----------------------------
def _icnn_scalar_ref(x, p, num_layers, negative_slope=NEG_SLOPE):
    L = num_layers
    hp = jax.lax.Precision.HIGHEST
    lrelu = lambda u: jnp.where(u > 0, u, negative_slope * u)
    mm = lambda a, b: jnp.matmul(a, b, precision=hp)
    z = lrelu(mm(x, p['wa'][0].T) ** 2 + mm(x, p['wb'][0].T) + p['bias'][0])
    for k in range(1, L + 2):
        z = lrelu(mm(z, p['wz'][k - 1].T) + mm(x, p['wa'][k].T) ** 2
                  + mm(x, p['wb'][k].T) + p['bias'][k])
    return z


def _icnn_forward_ref(x, p, num_layers, strong_convexity):
    g = jax.grad(lambda v: jnp.sum(_icnn_scalar_ref(v, p, num_layers)))(x)
    return (1.0 - strong_convexity) * g + strong_convexity * x


if __name__ == "__main__":
    B, D, H, L = 12, 16, 32, 3          # batch, in_dim, hidden, num_layers
    NUM_ITERS = 4
    SC = 0.5                            # strong_convexity
    key = jax.random.PRNGKey(0)
    kx, kf, kb, ky = jax.random.split(key, 4)

    x = jax.random.normal(kx, (B, D), dtype=jnp.float32)
    y = jax.random.normal(ky, (B, D), dtype=jnp.float32)
    fwd_raw = init_icnn_params(kf, D, H, L)
    bwd_raw = init_icnn_params(kb, D, H, L)
    stepsize = 0.01 * jnp.ones((NUM_ITERS,), jnp.float32)

    fwd_p = prepare_icnn_params(fwd_raw, D, H)   # pad + both orientations, once
    bwd_p = prepare_icnn_params(bwd_raw, D, H)

    grad_fun = lambda v, data: v - data          # grad of 0.5 * ||v - data||^2

    # --- ICNN.forward (spec module), multi-block batch grid -------------------
    out1 = jax.block_until_ready(
        icnn_forward(x, fwd_p, num_layers=L, strong_convexity=SC, block_batch=8))
    ref1 = jax.block_until_ready(_icnn_forward_ref(x, fwd_raw, L, SC))
    assert np.allclose(np.asarray(out1), np.asarray(ref1), rtol=1e-3, atol=1e-4), (
        "icnn_forward max abs diff",
        float(np.max(np.abs(np.asarray(out1) - np.asarray(ref1)))))

    # --- fused ICNNCouple-style step loop: one pallas_call ---------------------
    out2 = jax.block_until_ready(
        icnn_couple_forward(x, y, fwd_p, bwd_p, stepsize, num_layers=L,
                            strong_convexity=SC, grad_fun=grad_fun,
                            block_batch=8))
    fx_ref = _icnn_forward_ref(x, fwd_raw, L, SC)
    ref2 = x
    for i in range(NUM_ITERS):
        ref2 = _icnn_forward_ref(fx_ref - stepsize[i] * (ref2 - y), bwd_raw, L, SC)
    ref2 = jax.block_until_ready(ref2)
    assert np.allclose(np.asarray(out2), np.asarray(ref2), rtol=1e-3, atol=1e-4), (
        "icnn_couple max abs diff",
        float(np.max(np.abs(np.asarray(out2) - np.asarray(ref2)))))

    # --- bf16 MXU-operand path (v6e/v7x peak); sanity check only ---------------
    out3 = jax.block_until_ready(
        icnn_forward(x, fwd_p, num_layers=L, strong_convexity=SC,
                     matmul_dtype=jnp.bfloat16, block_batch=8))
    assert out3.shape == (B, D) and bool(jnp.all(jnp.isfinite(out3)))

    print("KERNEL_OK")
</pallas_src>

<mosaic_0001>
module attributes {stable_mosaic.version = 11 : i64} {
  func.func @_icnn_forward_kernel(%arg0: i32, %arg1: memref<8x128xf32, #tpu.memory_space<vmem>>, %arg2: memref<4x128x128xf32, #tpu.memory_space<vmem>>, %arg3: memref<4x128x128xf32, #tpu.memory_space<vmem>>, %arg4: memref<5x128x128xf32, #tpu.memory_space<vmem>>, %arg5: memref<5x128x128xf32, #tpu.memory_space<vmem>>, %arg6: memref<5x128x128xf32, #tpu.memory_space<vmem>>, %arg7: memref<5x128x128xf32, #tpu.memory_space<vmem>>, %arg8: memref<5x1x128xf32, #tpu.memory_space<vmem>>, %arg9: memref<8x128xf32, #tpu.memory_space<vmem>>) attributes {dimension_semantics = [#tpu.dimension_semantics<parallel>], iteration_bounds = array<i64: 2>, scalar_prefetch = 0 : i64, scratch_operands = 0 : i64, tpu.core_type = #tpu.core_type<tc>, window_params = [{transform_indices = @transform_0, window_bounds = array<i64: 8, 128>}, {pipeline_mode = #tpu.pipeline_mode<synchronous>, transform_indices = @transform_1, window_bounds = array<i64: 4, 128, 128>}, {pipeline_mode = #tpu.pipeline_mode<synchronous>, transform_indices = @transform_2, window_bounds = array<i64: 4, 128, 128>}, {pipeline_mode = #tpu.pipeline_mode<synchronous>, transform_indices = @transform_3, window_bounds = array<i64: 5, 128, 128>}, {pipeline_mode = #tpu.pipeline_mode<synchronous>, transform_indices = @transform_4, window_bounds = array<i64: 5, 128, 128>}, {pipeline_mode = #tpu.pipeline_mode<synchronous>, transform_indices = @transform_5, window_bounds = array<i64: 5, 128, 128>}, {pipeline_mode = #tpu.pipeline_mode<synchronous>, transform_indices = @transform_6, window_bounds = array<i64: 5, 128, 128>}, {pipeline_mode = #tpu.pipeline_mode<synchronous>, transform_indices = @transform_7, window_bounds = array<i64: 5, 1, 128>}, {transform_indices = @transform_8, window_bounds = array<i64: 8, 128>}]} {
    %c0 = arith.constant 0 : index
    %c0_0 = arith.constant 0 : index
    %0 = vector.load %arg1[%c0, %c0_0] : memref<8x128xf32, #tpu.memory_space<vmem>>, vector<8x128xf32>
    %c0_1 = arith.constant 0 : index
    %c0_2 = arith.constant 0 : index
    %c0_3 = arith.constant 0 : index
    %1 = vector.load %arg4[%c0_1, %c0_2, %c0_3] : memref<5x128x128xf32, #tpu.memory_space<vmem>>, vector<1x128x128xf32>
    %2 = vector.shape_cast %1 : vector<1x128x128xf32> to vector<128x128xf32>
    %cst = arith.constant dense<0.000000e+00> : vector<8x128xf32>
    %3 = tpu.matmul %0, %2, %cst {dimension_numbers = #tpu.dot_dimension_numbers<[1], [0], [0], [1], [0, 0, 1, 1], [], []>} : vector<8x128xf32>, vector<128x128xf32>, vector<8x128xf32> -> vector<8x128xf32>
    %c0_4 = arith.constant 0 : index
    %c0_5 = arith.constant 0 : index
    %c0_6 = arith.constant 0 : index
    %4 = vector.load %arg6[%c0_4, %c0_5, %c0_6] : memref<5x128x128xf32, #tpu.memory_space<vmem>>, vector<1x128x128xf32>
    %5 = vector.shape_cast %4 : vector<1x128x128xf32> to vector<128x128xf32>
    %cst_7 = arith.constant dense<0.000000e+00> : vector<8x128xf32>
    %6 = tpu.matmul %0, %5, %cst_7 {dimension_numbers = #tpu.dot_dimension_numbers<[1], [0], [0], [1], [0, 0, 1, 1], [], []>} : vector<8x128xf32>, vector<128x128xf32>, vector<8x128xf32> -> vector<8x128xf32>
    %7 = arith.mulf %3, %3 : vector<8x128xf32>
    %8 = arith.addf %7, %6 : vector<8x128xf32>
    %c0_8 = arith.constant 0 : index
    %c0_9 = arith.constant 0 : index
    %c0_10 = arith.constant 0 : index
    %9 = vector.load %arg8[%c0_8, %c0_9, %c0_10] : memref<5x1x128xf32, #tpu.memory_space<vmem>>, vector<1x1x128xf32>
    %10 = vector.shape_cast %9 : vector<1x1x128xf32> to vector<1x128xf32>
    %11 = vector.broadcast %10 : vector<1x128xf32> to vector<8x128xf32>
    %12 = arith.addf %8, %11 : vector<8x128xf32>
    %cst_11 = arith.constant 0.000000e+00 : f32
    %13 = vector.broadcast %cst_11 : f32 to vector<8x128xf32>
    %14 = arith.cmpf ogt, %12, %13 : vector<8x128xf32>
    %cst_12 = arith.constant 2.000000e-01 : f32
    %15 = vector.broadcast %cst_12 : f32 to vector<8x128xf32>
    %16 = arith.mulf %15, %12 : vector<8x128xf32>
    %17 = arith.select %14, %12, %16 : vector<8x128xi1>, vector<8x128xf32>
    %18 = arith.addf %3, %3 : vector<8x128xf32>
    %cst_13 = arith.constant 0.000000e+00 : f32
    %19 = vector.broadcast %cst_13 : f32 to vector<8x128xf32>
    %20 = arith.cmpf ogt, %12, %19 : vector<8x128xf32>
    %c1 = arith.constant 1 : index
    %c0_14 = arith.constant 0 : index
    %c0_15 = arith.constant 0 : index
    %21 = vector.load %arg4[%c1, %c0_14, %c0_15] : memref<5x128x128xf32, #tpu.memory_space<vmem>>, vector<1x128x128xf32>
    %22 = vector.shape_cast %21 : vector<1x128x128xf32> to vector<128x128xf32>
    %cst_16 = arith.constant dense<0.000000e+00> : vector<8x128xf32>
    %23 = tpu.matmul %0, %22, %cst_16 {dimension_numbers = #tpu.dot_dimension_numbers<[1], [0], [0], [1], [0, 0, 1, 1], [], []>} : vector<8x128xf32>, vector<128x128xf32>, vector<8x128xf32> -> vector<8x128xf32>
    %c1_17 = arith.constant 1 : index
    %c0_18 = arith.constant 0 : index
    %c0_19 = arith.constant 0 : index
    %24 = vector.load %arg6[%c1_17, %c0_18, %c0_19] : memref<5x128x128xf32, #tpu.memory_space<vmem>>, vector<1x128x128xf32>
    %25 = vector.shape_cast %24 : vector<1x128x128xf32> to vector<128x128xf32>
    %cst_20 = arith.constant dense<0.000000e+00> : vector<8x128xf32>
    %26 = tpu.matmul %0, %25, %cst_20 {dimension_numbers = #tpu.dot_dimension_numbers<[1], [0], [0], [1], [0, 0, 1, 1], [], []>} : vector<8x128xf32>, vector<128x128xf32>, vector<8x128xf32> -> vector<8x128xf32>
    %c0_21 = arith.constant 0 : index
    %c0_22 = arith.constant 0 : index
    %c0_23 = arith.constant 0 : index
    %27 = vector.load %arg2[%c0_21, %c0_22, %c0_23] : memref<4x128x128xf32, #tpu.memory_space<vmem>>, vector<1x128x128xf32>
    %28 = vector.shape_cast %27 : vector<1x128x128xf32> to vector<128x128xf32>
    %cst_24 = arith.constant dense<0.000000e+00> : vector<8x128xf32>
    %29 = tpu.matmul %17, %28, %cst_24 {dimension_numbers = #tpu.dot_dimension_numbers<[1], [0], [0], [1], [0, 0, 1, 1], [], []>} : vector<8x128xf32>, vector<128x128xf32>, vector<8x128xf32> -> vector<8x128xf32>
    %30 = arith.mulf %23, %23 : vector<8x128xf32>
    %31 = arith.addf %29, %30 : vector<8x128xf32>
    %32 = arith.addf %31, %26 : vector<8x128xf32>
    %c1_25 = arith.constant 1 : index
    %c0_26 = arith.constant 0 : index
    %c0_27 = arith.constant 0 : index
    %33 = vector.load %arg8[%c1_25, %c0_26, %c0_27] : memref<5x1x128xf32, #tpu.memory_space<vmem>>, vector<1x1x128xf32>
    %34 = vector.shape_cast %33 : vector<1x1x128xf32> to vector<1x128xf32>
    %35 = vector.broadcast %34 : vector<1x128xf32> to vector<8x128xf32>
    %36 = arith.addf %32, %35 : vector<8x128xf32>
    %cst_28 = arith.constant 0.000000e+00 : f32
    %37 = vector.broadcast %cst_28 : f32 to vector<8x128xf32>
    %38 = arith.cmpf ogt, %36, %37 : vector<8x128xf32>
    %cst_29 = arith.constant 2.000000e-01 : f32
    %39 = vector.broadcast %cst_29 : f32 to vector<8x128xf32>
    %40 = arith.mulf %39, %36 : vector<8x128xf32>
    %41 = arith.select %38, %36, %40 : vector<8x128xi1>, vector<8x128xf32>
    %42 = arith.addf %23, %23 : vector<8x128xf32>
    %cst_30 = arith.constant 0.000000e+00 : f32
    %43 = vector.broadcast %cst_30 : f32 to vector<8x128xf32>
    %44 = arith.cmpf ogt, %36, %43 : vector<8x128xf32>
    %c2 = arith.constant 2 : index
    %c0_31 = arith.constant 0 : index
    %c0_32 = arith.constant 0 : index
    %45 = vector.load %arg4[%c2, %c0_31, %c0_32] : memref<5x128x128xf32, #tpu.memory_space<vmem>>, vector<1x128x128xf32>
    %46 = vector.shape_cast %45 : vector<1x128x128xf32> to vector<128x128xf32>
    %cst_33 = arith.constant dense<0.000000e+00> : vector<8x128xf32>
    %47 = tpu.matmul %0, %46, %cst_33 {dimension_numbers = #tpu.dot_dimension_numbers<[1], [0], [0], [1], [0, 0, 1, 1], [], []>} : vector<8x128xf32>, vector<128x128xf32>, vector<8x128xf32> -> vector<8x128xf32>
    %c2_34 = arith.constant 2 : index
    %c0_35 = arith.constant 0 : index
    %c0_36 = arith.constant 0 : index
    %48 = vector.load %arg6[%c2_34, %c0_35, %c0_36] : memref<5x128x128xf32, #tpu.memory_space<vmem>>, vector<1x128x128xf32>
    %49 = vector.shape_cast %48 : vector<1x128x128xf32> to vector<128x128xf32>
    %cst_37 = arith.constant dense<0.000000e+00> : vector<8x128xf32>
    %50 = tpu.matmul %0, %49, %cst_37 {dimension_numbers = #tpu.dot_dimension_numbers<[1], [0], [0], [1], [0, 0, 1, 1], [], []>} : vector<8x128xf32>, vector<128x128xf32>, vector<8x128xf32> -> vector<8x128xf32>
    %c1_38 = arith.constant 1 : index
    %c0_39 = arith.constant 0 : index
    %c0_40 = arith.constant 0 : index
    %51 = vector.load %arg2[%c1_38, %c0_39, %c0_40] : memref<4x128x128xf32, #tpu.memory_space<vmem>>, vector<1x128x128xf32>
    %52 = vector.shape_cast %51 : vector<1x128x128xf32> to vector<128x128xf32>
    %cst_41 = arith.constant dense<0.000000e+00> : vector<8x128xf32>
    %53 = tpu.matmul %41, %52, %cst_41 {dimension_numbers = #tpu.dot_dimension_numbers<[1], [0], [0], [1], [0, 0, 1, 1], [], []>} : vector<8x128xf32>, vector<128x128xf32>, vector<8x128xf32> -> vector<8x128xf32>
    %54 = arith.mulf %47, %47 : vector<8x128xf32>
    %55 = arith.addf %53, %54 : vector<8x128xf32>
    %56 = arith.addf %55, %50 : vector<8x128xf32>
    %c2_42 = arith.constant 2 : index
    %c0_43 = arith.constant 0 : index
    %c0_44 = arith.constant 0 : index
    %57 = vector.load %arg8[%c2_42, %c0_43, %c0_44] : memref<5x1x128xf32, #tpu.memory_space<vmem>>, vector<1x1x128xf32>
    %58 = vector.shape_cast %57 : vector<1x1x128xf32> to vector<1x128xf32>
    %59 = vector.broadcast %58 : vector<1x128xf32> to vector<8x128xf32>
    %60 = arith.addf %56, %59 : vector<8x128xf32>
    %cst_45 = arith.constant 0.000000e+00 : f32
    %61 = vector.broadcast %cst_45 : f32 to vector<8x128xf32>
    %62 = arith.cmpf ogt, %60, %61 : vector<8x128xf32>
    %cst_46 = arith.constant 2.000000e-01 : f32
    %63 = vector.broadcast %cst_46 : f32 to vector<8x128xf32>
    %64 = arith.mulf %63, %60 : vector<8x128xf32>
    %65 = arith.select %62, %60, %64 : vector<8x128xi1>, vector<8x128xf32>
    %66 = arith.addf %47, %47 : vector<8x128xf32>
    %cst_47 = arith.constant 0.000000e+00 : f32
    %67 = vector.broadcast %cst_47 : f32 to vector<8x128xf32>
    %68 = arith.cmpf ogt, %60, %67 : vector<8x128xf32>
    %c3 = arith.constant 3 : index
    %c0_48 = arith.constant 0 : index
    %c0_49 = arith.constant 0 : index
    %69 = vector.load %arg4[%c3, %c0_48, %c0_49] : memref<5x128x128xf32, #tpu.memory_space<vmem>>, vector<1x128x128xf32>
    %70 = vector.shape_cast %69 : vector<1x128x128xf32> to vector<128x128xf32>
    %cst_50 = arith.constant dense<0.000000e+00> : vector<8x128xf32>
    %71 = tpu.matmul %0, %70, %cst_50 {dimension_numbers = #tpu.dot_dimension_numbers<[1], [0], [0], [1], [0, 0, 1, 1], [], []>} : vector<8x128xf32>, vector<128x128xf32>, vector<8x128xf32> -> vector<8x128xf32>
    %c3_51 = arith.constant 3 : index
    %c0_52 = arith.constant 0 : index
    %c0_53 = arith.constant 0 : index
    %72 = vector.load %arg6[%c3_51, %c0_52, %c0_53] : memref<5x128x128xf32, #tpu.memory_space<vmem>>, vector<1x128x128xf32>
    %73 = vector.shape_cast %72 : vector<1x128x128xf32> to vector<128x128xf32>
    %cst_54 = arith.constant dense<0.000000e+00> : vector<8x128xf32>
    %74 = tpu.matmul %0, %73, %cst_54 {dimension_numbers = #tpu.dot_dimension_numbers<[1], [0], [0], [1], [0, 0, 1, 1], [], []>} : vector<8x128xf32>, vector<128x128xf32>, vector<8x128xf32> -> vector<8x128xf32>
    %c2_55 = arith.constant 2 : index
    %c0_56 = arith.constant 0 : index
    %c0_57 = arith.constant 0 : index
    %75 = vector.load %arg2[%c2_55, %c0_56, %c0_57] : memref<4x128x128xf32, #tpu.memory_space<vmem>>, vector<1x128x128xf32>
    %76 = vector.shape_cast %75 : vector<1x128x128xf32> to vector<128x128xf32>
    %cst_58 = arith.constant dense<0.000000e+00> : vector<8x128xf32>
    %77 = tpu.matmul %65, %76, %cst_58 {dimension_numbers = #tpu.dot_dimension_numbers<[1], [0], [0], [1], [0, 0, 1, 1], [], []>} : vector<8x128xf32>, vector<128x128xf32>, vector<8x128xf32> -> vector<8x128xf32>
    %78 = arith.mulf %71, %71 : vector<8x128xf32>
    %79 = arith.addf %77, %78 : vector<8x128xf32>
    %80 = arith.addf %79, %74 : vector<8x128xf32>
    %c3_59 = arith.constant 3 : index
    %c0_60 = arith.constant 0 : index
    %c0_61 = arith.constant 0 : index
    %81 = vector.load %arg8[%c3_59, %c0_60, %c0_61] : memref<5x1x128xf32, #tpu.memory_space<vmem>>, vector<1x1x128xf32>
    %82 = vector.shape_cast %81 : vector<1x1x128xf32> to vector<1x128xf32>
    %83 = vector.broadcast %82 : vector<1x128xf32> to vector<8x128xf32>
    %84 = arith.addf %80, %83 : vector<8x128xf32>
    %cst_62 = arith.constant 0.000000e+00 : f32
    %85 = vector.broadcast %cst_62 : f32 to vector<8x128xf32>
    %86 = arith.cmpf ogt, %84, %85 : vector<8x128xf32>
    %cst_63 = arith.constant 2.000000e-01 : f32
    %87 = vector.broadcast %cst_63 : f32 to vector<8x128xf32>
    %88 = arith.mulf %87, %84 : vector<8x128xf32>
    %89 = arith.select %86, %84, %88 : vector<8x128xi1>, vector<8x128xf32>
    %90 = arith.addf %71, %71 : vector<8x128xf32>
    %cst_64 = arith.constant 0.000000e+00 : f32
    %91 = vector.broadcast %cst_64 : f32 to vector<8x128xf32>
    %92 = arith.cmpf ogt, %84, %91 : vector<8x128xf32>
    %c4 = arith.constant 4 : index
    %c0_65 = arith.constant 0 : index
    %c0_66 = arith.constant 0 : index
    %93 = vector.load %arg4[%c4, %c0_65, %c0_66] : memref<5x128x128xf32, #tpu.memory_space<vmem>>, vector<1x128x128xf32>
    %94 = vector.shape_cast %93 : vector<1x128x128xf32> to vector<128x128xf32>
    %cst_67 = arith.constant dense<0.000000e+00> : vector<8x128xf32>
    %95 = tpu.matmul %0, %94, %cst_67 {dimension_numbers = #tpu.dot_dimension_numbers<[1], [0], [0], [1], [0, 0, 1, 1], [], []>} : vector<8x128xf32>, vector<128x128xf32>, vector<8x128xf32> -> vector<8x128xf32>
    %c4_68 = arith.constant 4 : index
    %c0_69 = arith.constant 0 : index
    %c0_70 = arith.constant 0 : index
    %96 = vector.load %arg6[%c4_68, %c0_69, %c0_70] : memref<5x128x128xf32, #tpu.memory_space<vmem>>, vector<1x128x128xf32>
    %97 = vector.shape_cast %96 : vector<1x128x128xf32> to vector<128x128xf32>
    %cst_71 = arith.constant dense<0.000000e+00> : vector<8x128xf32>
    %98 = tpu.matmul %0, %97, %cst_71 {dimension_numbers = #tpu.dot_dimension_numbers<[1], [0], [0], [1], [0, 0, 1, 1], [], []>} : vector<8x128xf32>, vector<128x128xf32>, vector<8x128xf32> -> vector<8x128xf32>
    %c3_72 = arith.constant 3 : index
    %c0_73 = arith.constant 0 : index
    %c0_74 = arith.constant 0 : index
    %99 = vector.load %arg2[%c3_72, %c0_73, %c0_74] : memref<4x128x128xf32, #tpu.memory_space<vmem>>, vector<1x128x128xf32>
    %100 = vector.shape_cast %99 : vector<1x128x128xf32> to vector<128x128xf32>
    %cst_75 = arith.constant dense<0.000000e+00> : vector<8x128xf32>
    %101 = tpu.matmul %89, %100, %cst_75 {dimension_numbers = #tpu.dot_dimension_numbers<[1], [0], [0], [1], [0, 0, 1, 1], [], []>} : vector<8x128xf32>, vector<128x128xf32>, vector<8x128xf32> -> vector<8x128xf32>
    %102 = arith.mulf %95, %95 : vector<8x128xf32>
    %103 = arith.addf %101, %102 : vector<8x128xf32>
    %104 = arith.addf %103, %98 : vector<8x128xf32>
    %c4_76 = arith.constant 4 : index
    %c0_77 = arith.constant 0 : index
    %c0_78 = arith.constant 0 : index
    %105 = vector.load %arg8[%c4_76, %c0_77, %c0_78] : memref<5x1x128xf32, #tpu.memory_space<vmem>>, vector<1x1x128xf32>
    %106 = vector.shape_cast %105 : vector<1x1x128xf32> to vector<1x128xf32>
    %107 = vector.broadcast %106 : vector<1x128xf32> to vector<8x128xf32>
    %108 = arith.addf %104, %107 : vector<8x128xf32>
    %109 = arith.addf %95, %95 : vector<8x128xf32>
    %cst_79 = arith.constant 0.000000e+00 : f32
    %110 = vector.broadcast %cst_79 : f32 to vector<8x128xf32>
    %111 = arith.cmpf ogt, %108, %110 : vector<8x128xf32>
    %cst_80 = arith.constant 1.000000e+00 : f32
    %112 = vector.broadcast %cst_80 : f32 to vector<8x128xf32>
    %cst_81 = arith.constant 0.000000e+00 : f32
    %113 = vector.broadcast %cst_81 : f32 to vector<8x128xf32>
    %cst_82 = arith.constant 2.000000e-01 : f32
    %114 = vector.broadcast %cst_82 : f32 to vector<8x128xf32>
    %115 = arith.mulf %114, %112 : vector<8x128xf32>
    %116 = arith.select %111, %112, %115 : vector<8x128xi1>, vector<8x128xf32>
    %117 = arith.mulf %116, %109 : vector<8x128xf32>
    %c4_83 = arith.constant 4 : index
    %c0_84 = arith.constant 0 : index
    %c0_85 = arith.constant 0 : index
    %118 = vector.load %arg5[%c4_83, %c0_84, %c0_85] : memref<5x128x128xf32, #tpu.memory_space<vmem>>, vector<1x128x128xf32>
    %119 = vector.shape_cast %118 : vector<1x128x128xf32> to vector<128x128xf32>
    %cst_86 = arith.constant dense<0.000000e+00> : vector<8x128xf32>
    %120 = tpu.matmul %117, %119, %cst_86 {dimension_numbers = #tpu.dot_dimension_numbers<[1], [0], [0], [1], [0, 0, 1, 1], [], []>} : vector<8x128xf32>, vector<128x128xf32>, vector<8x128xf32> -> vector<8x128xf32>
    %121 = arith.addf %113, %120 : vector<8x128xf32>
    %c4_87 = arith.constant 4 : index
    %c0_88 = arith.constant 0 : index
    %c0_89 = arith.constant 0 : index
    %122 = vector.load %arg7[%c4_87, %c0_88, %c0_89] : memref<5x128x128xf32, #tpu.memory_space<vmem>>, vector<1x128x128xf32>
    %123 = vector.shape_cast %122 : vector<1x128x128xf32> to vector<128x128xf32>
    %cst_90 = arith.constant dense<0.000000e+00> : vector<8x128xf32>
    %124 = tpu.matmul %116, %123, %cst_90 {dimension_numbers = #tpu.dot_dimension_numbers<[1], [0], [0], [1], [0, 0, 1, 1], [], []>} : vector<8x128xf32>, vector<128x128xf32>, vector<8x128xf32> -> vector<8x128xf32>
    %125 = arith.addf %121, %124 : vector<8x128xf32>
    %c3_91 = arith.constant 3 : index
    %c0_92 = arith.constant 0 : index
    %c0_93 = arith.constant 0 : index
    %126 = vector.load %arg3[%c3_91, %c0_92, %c0_93] : memref<4x128x128xf32, #tpu.memory_space<vmem>>, vector<1x128x128xf32>
    %127 = vector.shape_cast %126 : vector<1x128x128xf32> to vector<128x128xf32>
    %cst_94 = arith.constant dense<0.000000e+00> : vector<8x128xf32>
    %128 = tpu.matmul %116, %127, %cst_94 {dimension_numbers = #tpu.dot_dimension_numbers<[1], [0], [0], [1], [0, 0, 1, 1], [], []>} : vector<8x128xf32>, vector<128x128xf32>, vector<8x128xf32> -> vector<8x128xf32>
    %cst_95 = arith.constant 2.000000e-01 : f32
    %129 = vector.broadcast %cst_95 : f32 to vector<8x128xf32>
    %130 = arith.mulf %129, %128 : vector<8x128xf32>
    %131 = arith.select %92, %128, %130 : vector<8x128xi1>, vector<8x128xf32>
    %132 = arith.mulf %131, %90 : vector<8x128xf32>
    %c3_96 = arith.constant 3 : index
    %c0_97 = arith.constant 0 : index
    %c0_98 = arith.constant 0 : index
    %133 = vector.load %arg5[%c3_96, %c0_97, %c0_98] : memref<5x128x128xf32, #tpu.memory_space<vmem>>, vector<1x128x128xf32>
    %134 = vector.shape_cast %133 : vector<1x128x128xf32> to vector<128x128xf32>
    %cst_99 = arith.constant dense<0.000000e+00> : vector<8x128xf32>
    %135 = tpu.matmul %132, %134, %cst_99 {dimension_numbers = #tpu.dot_dimension_numbers<[1], [0], [0], [1], [0, 0, 1, 1], [], []>} : vector<8x128xf32>, vector<128x128xf32>, vector<8x128xf32> -> vector<8x128xf32>
    %136 = arith.addf %125, %135 : vector<8x128xf32>
    %c3_100 = arith.constant 3 : index
    %c0_101 = arith.constant 0 : index
    %c0_102 = arith.constant 0 : index
    %137 = vector.load %arg7[%c3_100, %c0_101, %c0_102] : memref<5x128x128xf32, #tpu.memory_space<vmem>>, vector<1x128x128xf32>
    %138 = vector.shape_cast %137 : vector<1x128x128xf32> to vector<128x128xf32>
    %cst_103 = arith.constant dense<0.000000e+00> : vector<8x128xf32>
    %139 = tpu.matmul %131, %138, %cst_103 {dimension_numbers = #tpu.dot_dimension_numbers<[1], [0], [0], [1], [0, 0, 1, 1], [], []>} : vector<8x128xf32>, vector<128x128xf32>, vector<8x128xf32> -> vector<8x128xf32>
    %140 = arith.addf %136, %139 : vector<8x128xf32>
    %c2_104 = arith.constant 2 : index
    %c0_105 = arith.constant 0 : index
    %c0_106 = arith.constant 0 : index
    %141 = vector.load %arg3[%c2_104, %c0_105, %c0_106] : memref<4x128x128xf32, #tpu.memory_space<vmem>>, vector<1x128x128xf32>
    %142 = vector.shape_cast %141 : vector<1x128x128xf32> to vector<128x128xf32>
    %cst_107 = arith.constant dense<0.000000e+00> : vector<8x128xf32>
    %143 = tpu.matmul %131, %142, %cst_107 {dimension_numbers = #tpu.dot_dimension_numbers<[1], [0], [0], [1], [0, 0, 1, 1], [], []>} : vector<8x128xf32>, vector<128x128xf32>, vector<8x128xf32> -> vector<8x128xf32>
    %cst_108 = arith.constant 2.000000e-01 : f32
    %144 = vector.broadcast %cst_108 : f32 to vector<8x128xf32>
    %145 = arith.mulf %144, %143 : vector<8x128xf32>
    %146 = arith.select %68, %143, %145 : vector<8x128xi1>, vector<8x128xf32>
    %147 = arith.mulf %146, %66 : vector<8x128xf32>
    %c2_109 = arith.constant 2 : index
    %c0_110 = arith.constant 0 : index
    %c0_111 = arith.constant 0 : index
    %148 = vector.load %arg5[%c2_109, %c0_110, %c0_111] : memref<5x128x128xf32, #tpu.memory_space<vmem>>, vector<1x128x128xf32>
    %149 = vector.shape_cast %148 : vector<1x128x128xf32> to vector<128x128xf32>
    %cst_112 = arith.constant dense<0.000000e+00> : vector<8x128xf32>
    %150 = tpu.matmul %147, %149, %cst_112 {dimension_numbers = #tpu.dot_dimension_numbers<[1], [0], [0], [1], [0, 0, 1, 1], [], []>} : vector<8x128xf32>, vector<128x128xf32>, vector<8x128xf32> -> vector<8x128xf32>
    %151 = arith.addf %140, %150 : vector<8x128xf32>
    %c2_113 = arith.constant 2 : index
    %c0_114 = arith.constant 0 : index
    %c0_115 = arith.constant 0 : index
    %152 = vector.load %arg7[%c2_113, %c0_114, %c0_115] : memref<5x128x128xf32, #tpu.memory_space<vmem>>, vector<1x128x128xf32>
    %153 = vector.shape_cast %152 : vector<1x128x128xf32> to vector<128x128xf32>
    %cst_116 = arith.constant dense<0.000000e+00> : vector<8x128xf32>
    %154 = tpu.matmul %146, %153, %cst_116 {dimension_numbers = #tpu.dot_dimension_numbers<[1], [0], [0], [1], [0, 0, 1, 1], [], []>} : vector<8x128xf32>, vector<128x128xf32>, vector<8x128xf32> -> vector<8x128xf32>
    %155 = arith.addf %151, %154 : vector<8x128xf32>
    %c1_117 = arith.constant 1 : index
    %c0_118 = arith.constant 0 : index
    %c0_119 = arith.constant 0 : index
    %156 = vector.load %arg3[%c1_117, %c0_118, %c0_119] : memref<4x128x128xf32, #tpu.memory_space<vmem>>, vector<1x128x128xf32>
    %157 = vector.shape_cast %156 : vector<1x128x128xf32> to vector<128x128xf32>
    %cst_120 = arith.constant dense<0.000000e+00> : vector<8x128xf32>
    %158 = tpu.matmul %146, %157, %cst_120 {dimension_numbers = #tpu.dot_dimension_numbers<[1], [0], [0], [1], [0, 0, 1, 1], [], []>} : vector<8x128xf32>, vector<128x128xf32>, vector<8x128xf32> -> vector<8x128xf32>
    %cst_121 = arith.constant 2.000000e-01 : f32
    %159 = vector.broadcast %cst_121 : f32 to vector<8x128xf32>
    %160 = arith.mulf %159, %158 : vector<8x128xf32>
    %161 = arith.select %44, %158, %160 : vector<8x128xi1>, vector<8x128xf32>
    %162 = arith.mulf %161, %42 : vector<8x128xf32>
    %c1_122 = arith.constant 1 : index
    %c0_123 = arith.constant 0 : index
    %c0_124 = arith.constant 0 : index
    %163 = vector.load %arg5[%c1_122, %c0_123, %c0_124] : memref<5x128x128xf32, #tpu.memory_space<vmem>>, vector<1x128x128xf32>
    %164 = vector.shape_cast %163 : vector<1x128x128xf32> to vector<128x128xf32>
    %cst_125 = arith.constant dense<0.000000e+00> : vector<8x128xf32>
    %165 = tpu.matmul %162, %164, %cst_125 {dimension_numbers = #tpu.dot_dimension_numbers<[1], [0], [0], [1], [0, 0, 1, 1], [], []>} : vector<8x128xf32>, vector<128x128xf32>, vector<8x128xf32> -> vector<8x128xf32>
    %166 = arith.addf %155, %165 : vector<8x128xf32>
    %c1_126 = arith.constant 1 : index
    %c0_127 = arith.constant 0 : index
    %c0_128 = arith.constant 0 : index
    %167 = vector.load %arg7[%c1_126, %c0_127, %c0_128] : memref<5x128x128xf32, #tpu.memory_space<vmem>>, vector<1x128x128xf32>
    %168 = vector.shape_cast %167 : vector<1x128x128xf32> to vector<128x128xf32>
    %cst_129 = arith.constant dense<0.000000e+00> : vector<8x128xf32>
    %169 = tpu.matmul %161, %168, %cst_129 {dimension_numbers = #tpu.dot_dimension_numbers<[1], [0], [0], [1], [0, 0, 1, 1], [], []>} : vector<8x128xf32>, vector<128x128xf32>, vector<8x128xf32> -> vector<8x128xf32>
    %170 = arith.addf %166, %169 : vector<8x128xf32>
    %c0_130 = arith.constant 0 : index
    %c0_131 = arith.constant 0 : index
    %c0_132 = arith.constant 0 : index
    %171 = vector.load %arg3[%c0_130, %c0_131, %c0_132] : memref<4x128x128xf32, #tpu.memory_space<vmem>>, vector<1x128x128xf32>
    %172 = vector.shape_cast %171 : vector<1x128x128xf32> to vector<128x128xf32>
    %cst_133 = arith.constant dense<0.000000e+00> : vector<8x128xf32>
    %173 = tpu.matmul %161, %172, %cst_133 {dimension_numbers = #tpu.dot_dimension_numbers<[1], [0], [0], [1], [0, 0, 1, 1], [], []>} : vector<8x128xf32>, vector<128x128xf32>, vector<8x128xf32> -> vector<8x128xf32>
    %cst_134 = arith.constant 2.000000e-01 : f32
    %174 = vector.broadcast %cst_134 : f32 to vector<8x128xf32>
    %175 = arith.mulf %174, %173 : vector<8x128xf32>
    %176 = arith.select %20, %173, %175 : vector<8x128xi1>, vector<8x128xf32>
    %177 = arith.mulf %176, %18 : vector<8x128xf32>
    %c0_135 = arith.constant 0 : index
    %c0_136 = arith.constant 0 : index
    %c0_137 = arith.constant 0 : index
    %178 = vector.load %arg5[%c0_135, %c0_136, %c0_137] : memref<5x128x128xf32, #tpu.memory_space<vmem>>, vector<1x128x128xf32>
    %179 = vector.shape_cast %178 : vector<1x128x128xf32> to vector<128x128xf32>
    %cst_138 = arith.constant dense<0.000000e+00> : vector<8x128xf32>
    %180 = tpu.matmul %177, %179, %cst_138 {dimension_numbers = #tpu.dot_dimension_numbers<[1], [0], [0], [1], [0, 0, 1, 1], [], []>} : vector<8x128xf32>, vector<128x128xf32>, vector<8x128xf32> -> vector<8x128xf32>
    %181 = arith.addf %170, %180 : vector<8x128xf32>
    %c0_139 = arith.constant 0 : index
    %c0_140 = arith.constant 0 : index
    %c0_141 = arith.constant 0 : index
    %182 = vector.load %arg7[%c0_139, %c0_140, %c0_141] : memref<5x128x128xf32, #tpu.memory_space<vmem>>, vector<1x128x128xf32>
    %183 = vector.shape_cast %182 : vector<1x128x128xf32> to vector<128x128xf32>
    %cst_142 = arith.constant dense<0.000000e+00> : vector<8x128xf32>
    %184 = tpu.matmul %176, %183, %cst_142 {dimension_numbers = #tpu.dot_dimension_numbers<[1], [0], [0], [1], [0, 0, 1, 1], [], []>} : vector<8x128xf32>, vector<128x128xf32>, vector<8x128xf32> -> vector<8x128xf32>
    %185 = arith.addf %181, %184 : vector<8x128xf32>
    %cst_143 = arith.constant 5.000000e-01 : f32
    %186 = vector.broadcast %cst_143 : f32 to vector<8x128xf32>
    %187 = arith.mulf %186, %185 : vector<8x128xf32>
    %cst_144 = arith.constant 5.000000e-01 : f32
    %188 = vector.broadcast %cst_144 : f32 to vector<8x128xf32>
    %189 = arith.mulf %188, %0 : vector<8x128xf32>
    %190 = arith.addf %187, %189 : vector<8x128xf32>
    %c0_145 = arith.constant 0 : index
    %c0_146 = arith.constant 0 : index
    %191 = vector.load %arg9[%c0_145, %c0_146] : memref<8x128xf32, #tpu.memory_space<vmem>>, vector<8x128xf32>
    tpu.vector_store %arg9[%c0_145, %c0_146], %190 {strides = array<i32>} : memref<8x128xf32, #tpu.memory_space<vmem>>, vector<8x128xf32>,
    return
  }
  func.func @transform_0(%arg0: i32) -> (i32, i32) {
    %c0_i32 = arith.constant 0 : i32
    %c0_i32_0 = arith.constant 0 : i32
    return %arg0, %c0_i32 : i32, i32
  }
  func.func @transform_1(%arg0: i32) -> (i32, i32, i32) {
    %c0_i32 = arith.constant 0 : i32
    %c0_i32_0 = arith.constant 0 : i32
    %c0_i32_1 = arith.constant 0 : i32
    %c0_i32_2 = arith.constant 0 : i32
    return %c0_i32, %c0_i32_0, %c0_i32_1 : i32, i32, i32
  }
  func.func @transform_2(%arg0: i32) -> (i32, i32, i32) {
    %c0_i32 = arith.constant 0 : i32
    %c0_i32_0 = arith.constant 0 : i32
    %c0_i32_1 = arith.constant 0 : i32
    %c0_i32_2 = arith.constant 0 : i32
    return %c0_i32, %c0_i32_0, %c0_i32_1 : i32, i32, i32
  }
  func.func @transform_3(%arg0: i32) -> (i32, i32, i32) {
    %c0_i32 = arith.constant 0 : i32
    %c0_i32_0 = arith.constant 0 : i32
    %c0_i32_1 = arith.constant 0 : i32
    %c0_i32_2 = arith.constant 0 : i32
    return %c0_i32, %c0_i32_0, %c0_i32_1 : i32, i32, i32
  }
  func.func @transform_4(%arg0: i32) -> (i32, i32, i32) {
    %c0_i32 = arith.constant 0 : i32
    %c0_i32_0 = arith.constant 0 : i32
    %c0_i32_1 = arith.constant 0 : i32
    %c0_i32_2 = arith.constant 0 : i32
    return %c0_i32, %c0_i32_0, %c0_i32_1 : i32, i32, i32
  }
  func.func @transform_5(%arg0: i32) -> (i32, i32, i32) {
    %c0_i32 = arith.constant 0 : i32
    %c0_i32_0 = arith.constant 0 : i32
    %c0_i32_1 = arith.constant 0 : i32
    %c0_i32_2 = arith.constant 0 : i32
    return %c0_i32, %c0_i32_0, %c0_i32_1 : i32, i32, i32
  }
  func.func @transform_6(%arg0: i32) -> (i32, i32, i32) {
    %c0_i32 = arith.constant 0 : i32
    %c0_i32_0 = arith.constant 0 : i32
    %c0_i32_1 = arith.constant 0 : i32
    %c0_i32_2 = arith.constant 0 : i32
    return %c0_i32, %c0_i32_0, %c0_i32_1 : i32, i32, i32
  }
  func.func @transform_7(%arg0: i32) -> (i32, i32, i32) {
    %c0_i32 = arith.constant 0 : i32
    %c0_i32_0 = arith.constant 0 : i32
    %c0_i32_1 = arith.constant 0 : i32
    %c0_i32_2 = arith.constant 0 : i32
    return %c0_i32, %c0_i32_0, %c0_i32_1 : i32, i32, i32
  }
  func.func @transform_8(%arg0: i32) -> (i32, i32) {
    %c0_i32 = arith.constant 0 : i32
    %c0_i32_0 = arith.constant 0 : i32
    return %arg0, %c0_i32 : i32, i32
  }
}

</mosaic_0001>

<llo_original>
// kernel: tpu_custom_call.1
$region0: #{tpu_custom_call.1}
  #allocation0 [shape = 'u32[]', space=smem, size = 0x4, offset = 0x4, fixed_abs, tag = 'smem constant byte address 0x4 - core index']
  #allocation1 [shape = 'u32[144,128]{1,0:T(1,128)}', space=vmem, size = 0x12000, scoped, tag = 'internal scratch']
  %s0 = inlined_call_operand.hbm [shape: f32[16,128], index: 0, kind: input, shape index: {}]
  %s1 = inlined_call_operand.hbm [shape: f32[4,128,128], index: 1, kind: input, shape index: {}]
  %s2 = inlined_call_operand.hbm [shape: f32[4,128,128], index: 2, kind: input, shape index: {}]
  %s3 = inlined_call_operand.hbm [shape: f32[5,128,128], index: 3, kind: input, shape index: {}]
  %s4 = inlined_call_operand.hbm [shape: f32[5,128,128], index: 4, kind: input, shape index: {}]
  %s5 = inlined_call_operand.hbm [shape: f32[5,128,128], index: 5, kind: input, shape index: {}]
  %s6 = inlined_call_operand.hbm [shape: f32[5,128,128], index: 6, kind: input, shape index: {}]
  %s7 = inlined_call_operand.vmem [shape: f32[5,1,128], index: 7, kind: input, shape index: {}]
  %s8 = inlined_call_operand.hbm [shape: f32[16,128], index: 8, kind: output, shape index: {}]
  %s9 = sld [smem:[#allocation0]]
  $region93: #{tpu_custom_call.1} parent=0
    _
  %s11 = ssub.s32 1, %s9
  %s12 = scalar_select 0, %s11, %s9
  $region1: #{tpu_custom_call.1} parent=0
    #allocation2 [shape = 'u8[8192]{0}', space=vmem, size = 0x2000, scoped, tag = 'input window, operand 0']
    #allocation3 [shape = 's32[2]{0}', space=sflag, size = 0x8, scoped, tag = 'scoped memory for tpu_custom_call.1']
    #allocation4 [shape = 's32[2]{0}', space=sflag, size = 0x8, scoped, tag = 'scoped memory for tpu_custom_call.1']
    #allocation5 [shape = 'u8[262144]{0}', space=vmem, size = 0x40000, scoped, tag = 'input window, operand 1, single buffered']
    #allocation6 [shape = 's32[1]{0}', space=sflag, size = 0x4, scoped, tag = 'scoped memory for tpu_custom_call.1']
    #allocation7 [shape = 'u8[262144]{0}', space=vmem, size = 0x40000, scoped, tag = 'input window, operand 2, single buffered']
    #allocation8 [shape = 'u8[327680]{0}', space=vmem, size = 0x50000, scoped, tag = 'input window, operand 3, single buffered']
    #allocation9 [shape = 's32[1]{0}', space=sflag, size = 0x4, scoped, tag = 'scoped memory for tpu_custom_call.1']
    #allocation10 [shape = 'u8[327680]{0}', space=vmem, size = 0x50000, scoped, tag = 'input window, operand 4, single buffered']
    #allocation11 [shape = 'u8[327680]{0}', space=vmem, size = 0x50000, scoped, tag = 'input window, operand 5, single buffered']
    #allocation12 [shape = 's32[1]{0}', space=sflag, size = 0x4, scoped, tag = 'scoped memory for tpu_custom_call.1']
    #allocation13 [shape = 'u8[327680]{0}', space=vmem, size = 0x50000, scoped, tag = 'input window, operand 6, single buffered']
    #allocation14 [shape = 'u8[8192]{0}', space=vmem, size = 0x2000, scoped, tag = 'output window, operand 0']
    %13 = vsyncpa [#allocation3], 0
    %s14 = scalar_lea.sflag [#allocation3], 1
    %15 = vsyncpa %s14, 0
    %16 = vsyncpa [#allocation6], 0
    %17 = vsyncpa [#allocation9], 0
    %18 = vsyncpa [#allocation12], 0
    %19 = vsyncpa [#allocation4], 0
    %s20 = scalar_lea.sflag [#allocation4], 1
    %21 = vsyncpa %s20, 0
    loop: start=0, step=1, limit=4
    $region2: #{tpu_custom_call.1} parent=1 // loop_pre_header
      _
    $region3: #{tpu_custom_call.1} parent=1 // loop_header
      %s23 = sphi 0, %s27
      %p24 = scmp.ge.s32.totalorder %s23, 4
      %s33 = sphi 0, %s35
      %s36 = sphi 0, %s33
      %s37 = sphi 0, %s36
      %s53 = sphi 0, %s37
      %s57 = sphi 0, %s57
      %s59 = sphi 0, %s57
      %s60 = sphi 0, %s59
      %s74 = sphi 0, %s60
      %s78 = sphi 0, %s78
      %s80 = sphi 0, %s78
      %s81 = sphi 0, %s80
      %s95 = sphi 0, %s81
      %s99 = sphi 0, %s99
      %s101 = sphi 0, %s99
      %s102 = sphi 0, %s101
      %s116 = sphi 0, %s102
      %s120 = sphi 0, %s120
      %s122 = sphi 0, %s120
      %s123 = sphi 0, %s122
      %s137 = sphi 0, %s123
      %s141 = sphi 0, %s141
      %s143 = sphi 0, %s141
      %s144 = sphi 0, %s143
      %s158 = sphi 0, %s144
      %s162 = sphi 0, %s162
      %s164 = sphi 0, %s162
      %s165 = sphi 0, %s164
      %s179 = sphi 0, %s165
      %s183 = sphi 0, %s183
      %s185 = sphi 0, %s183
      %s186 = sphi 0, %s185
      %s200 = sphi 0, %s186
      %s206 = sphi 0, %s208
      %s209 = sphi 0, %s206
      %s210 = sphi 0, %s209
      %s226 = sphi 0, %s210
    $region4: #{tpu_custom_call.1} parent=1 // loop_header_branch
      %26 = sbr.rel (%p24) target = $region8
    $region5: #{tpu_custom_call.1} parent=1 // loop_body
      %s28 = ssub.s32 %s23, 1
      %s29 = ssub.s32 %s23, 2
      %s30 = sadd.s32 %s23, 1
      %s31 = ssub.s32 %s23, %s30
      %p32 = scmp.eq.s32.totalorder %s31, 0
      %s34 = sadd.s32 %s33, 1
      %s35 = scalar_select %p32, %s33, %s34
      %p38 = pneg %p32
      %p39 = scmp.eq.s32.totalorder %s23, 1
      %p40 = por %p38, %p39
      %p41 = scmp.ne.s32.totalorder %s33, %s36
      %p42 = scmp.eq.s32.totalorder %s23, 0
      %p43 = por %p41, %p42
      %p44 = scmp.ne.s32.totalorder %s33, %s36
      %p45 = scmp.eq.s32.totalorder %s28, 1
      %p46 = por %p44, %p45
      %p47 = scmp.ne.s32.totalorder %s36, %s37
      %p48 = scmp.eq.s32.totalorder %s28, 0
      %p49 = por %p47, %p48
      %p50 = scmp.ne.s32.totalorder %s36, %s37
      %p51 = scmp.eq.s32.totalorder %s29, 1
      %p52 = por %p50, %p51
      %p54 = scmp.ne.s32.totalorder %s37, %s53
      %p55 = scmp.eq.s32.totalorder %s29, 0
      %p56 = por %p54, %p55
      %s58 = sadd.s32 %s57, 1
      %p61 = scmp.eq.s32.totalorder %s23, 1
      %p62 = scmp.ne.s32.totalorder %s57, %s59
      %p63 = scmp.eq.s32.totalorder %s23, 0
      %p64 = por %p62, %p63
      %p65 = scmp.ne.s32.totalorder %s57, %s59
      %p66 = scmp.eq.s32.totalorder %s28, 1
      %p67 = por %p65, %p66
      %p68 = scmp.ne.s32.totalorder %s59, %s60
      %p69 = scmp.eq.s32.totalorder %s28, 0
      %p70 = por %p68, %p69
      %p71 = scmp.ne.s32.totalorder %s59, %s60
      %p72 = scmp.eq.s32.totalorder %s29, 1
      %p73 = por %p71, %p72
      %p75 = scmp.ne.s32.totalorder %s60, %s74
      %p76 = scmp.eq.s32.totalorder %s29, 0
      %p77 = por %p75, %p76
      %s79 = sadd.s32 %s78, 1
      %p82 = scmp.eq.s32.totalorder %s23, 1
      %p83 = scmp.ne.s32.totalorder %s78, %s80
      %p84 = scmp.eq.s32.totalorder %s23, 0
      %p85 = por %p83, %p84
      %p86 = scmp.ne.s32.totalorder %s78, %s80
      %p87 = scmp.eq.s32.totalorder %s28, 1
      %p88 = por %p86, %p87
      %p89 = scmp.ne.s32.totalorder %s80, %s81
      %p90 = scmp.eq.s32.totalorder %s28, 0
      %p91 = por %p89, %p90
      %p92 = scmp.ne.s32.totalorder %s80, %s81
      %p93 = scmp.eq.s32.totalorder %s29, 1
      %p94 = por %p92, %p93
      %p96 = scmp.ne.s32.totalorder %s81, %s95
      %p97 = scmp.eq.s32.totalorder %s29, 0
      %p98 = por %p96, %p97
      %s100 = sadd.s32 %s99, 1
      %p103 = scmp.eq.s32.totalorder %s23, 1
      %p104 = scmp.ne.s32.totalorder %s99, %s101
      %p105 = scmp.eq.s32.totalorder %s23, 0
      %p106 = por %p104, %p105
      %p107 = scmp.ne.s32.totalorder %s99, %s101
      %p108 = scmp.eq.s32.totalorder %s28, 1
      %p109 = por %p107, %p108
      %p110 = scmp.ne.s32.totalorder %s101, %s102
      %p111 = scmp.eq.s32.totalorder %s28, 0
      %p112 = por %p110, %p111
      %p113 = scmp.ne.s32.totalorder %s101, %s102
      %p114 = scmp.eq.s32.totalorder %s29, 1
      %p115 = por %p113, %p114
      %p117 = scmp.ne.s32.totalorder %s102, %s116
      %p118 = scmp.eq.s32.totalorder %s29, 0
      %p119 = por %p117, %p118
      %s121 = sadd.s32 %s120, 1
      %p124 = scmp.eq.s32.totalorder %s23, 1
      %p125 = scmp.ne.s32.totalorder %s120, %s122
      %p126 = scmp.eq.s32.totalorder %s23, 0
      %p127 = por %p125, %p126
      %p128 = scmp.ne.s32.totalorder %s120, %s122
      %p129 = scmp.eq.s32.totalorder %s28, 1
      %p130 = por %p128, %p129
      %p131 = scmp.ne.s32.totalorder %s122, %s123
      %p132 = scmp.eq.s32.totalorder %s28, 0
      %p133 = por %p131, %p132
      %p134 = scmp.ne.s32.totalorder %s122, %s123
      %p135 = scmp.eq.s32.totalorder %s29, 1
      %p136 = por %p134, %p135
      %p138 = scmp.ne.s32.totalorder %s123, %s137
      %p139 = scmp.eq.s32.totalorder %s29, 0
      %p140 = por %p138, %p139
      %s142 = sadd.s32 %s141, 1
      %p145 = scmp.eq.s32.totalorder %s23, 1
      %p146 = scmp.ne.s32.totalorder %s141, %s143
      %p147 = scmp.eq.s32.totalorder %s23, 0
      %p148 = por %p146, %p147
      %p149 = scmp.ne.s32.totalorder %s141, %s143
      %p150 = scmp.eq.s32.totalorder %s28, 1
      %p151 = por %p149, %p150
      %p152 = scmp.ne.s32.totalorder %s143, %s144
      %p153 = scmp.eq.s32.totalorder %s28, 0
      %p154 = por %p152, %p153
      %p155 = scmp.ne.s32.totalorder %s143, %s144
      %p156 = scmp.eq.s32.totalorder %s29, 1
      %p157 = por %p155, %p156
      %p159 = scmp.ne.s32.totalorder %s144, %s158
      %p160 = scmp.eq.s32.totalorder %s29, 0
      %p161 = por %p159, %p160
      %s163 = sadd.s32 %s162, 1
      %p166 = scmp.eq.s32.totalorder %s23, 1
      %p167 = scmp.ne.s32.totalorder %s162, %s164
      %p168 = scmp.eq.s32.totalorder %s23, 0
      %p169 = por %p167, %p168
      %p170 = scmp.ne.s32.totalorder %s162, %s164
      %p171 = scmp.eq.s32.totalorder %s28, 1
      %p172 = por %p170, %p171
      %p173 = scmp.ne.s32.totalorder %s164, %s165
      %p174 = scmp.eq.s32.totalorder %s28, 0
      %p175 = por %p173, %p174
      %p176 = scmp.ne.s32.totalorder %s164, %s165
      %p177 = scmp.eq.s32.totalorder %s29, 1
      %p178 = por %p176, %p177
      %p180 = scmp.ne.s32.totalorder %s165, %s179
      %p181 = scmp.eq.s32.totalorder %s29, 0
      %p182 = por %p180, %p181
      %s184 = sadd.s32 %s183, 1
      %p187 = scmp.eq.s32.totalorder %s23, 1
      %p188 = scmp.ne.s32.totalorder %s183, %s185
      %p189 = scmp.eq.s32.totalorder %s23, 0
      %p190 = por %p188, %p189
      %p191 = scmp.ne.s32.totalorder %s183, %s185
      %p192 = scmp.eq.s32.totalorder %s28, 1
      %p193 = por %p191, %p192
      %p194 = scmp.ne.s32.totalorder %s185, %s186
      %p195 = scmp.eq.s32.totalorder %s28, 0
      %p196 = por %p194, %p195
      %p197 = scmp.ne.s32.totalorder %s185, %s186
      %p198 = scmp.eq.s32.totalorder %s29, 1
      %p199 = por %p197, %p198
      %p201 = scmp.ne.s32.totalorder %s186, %s200
      %p202 = scmp.eq.s32.totalorder %s29, 0
      %p203 = por %p201, %p202
      %s204 = ssub.s32 %s23, %s30
      %p205 = scmp.eq.s32.totalorder %s204, 0
      %s207 = sadd.s32 %s206, 1
      %s208 = scalar_select %p205, %s206, %s207
      %p211 = pneg %p205
      %p212 = scmp.eq.s32.totalorder %s23, 1
      %p213 = por %p211, %p212
      %p214 = scmp.ne.s32.totalorder %s206, %s209
      %p215 = scmp.eq.s32.totalorder %s23, 0
      %p216 = por %p214, %p215
      %p217 = scmp.ne.s32.totalorder %s206, %s209
      %p218 = scmp.eq.s32.totalorder %s28, 1
      %p219 = por %p217, %p218
      %p220 = scmp.ne.s32.totalorder %s209, %s210
      %p221 = scmp.eq.s32.totalorder %s28, 0
      %p222 = por %p220, %p221
      %p223 = scmp.ne.s32.totalorder %s209, %s210
      %p224 = scmp.eq.s32.totalorder %s29, 1
      %p225 = por %p223, %p224
      %p227 = scmp.ne.s32.totalorder %s210, %s226
      %p228 = scmp.eq.s32.totalorder %s29, 0
      %p229 = por %p227, %p228
      %p230 = scmp.le.s32.totalorder 1, %s23
      %p231 = scmp.lt.s32.totalorder %s23, 3
      %p232 = pnand %p230, %p231
      %p233 = pneg %p232
      // Predicated region
      $region9: #{tpu_custom_call.1} parent=5 // pred_check
        _
      $region10: #{tpu_custom_call.1} parent=5 // pred_check_branch
        %235 = sbr.rel (%p232) target = $region12
      $region11: #{tpu_custom_call.1} parent=5 // pred_region
        %s236 = ssub.s32 %s23, 1
        // Predicated region
        $region13: #{tpu_custom_call.1} parent=11 // pred_check
          %p237 = pneg %p70
        $region14: #{tpu_custom_call.1} parent=11 // pred_check_branch
          %239 = sbr.rel (%p237) target = $region16
        $region15: #{tpu_custom_call.1} parent=11 // pred_region
          %s241 = ssub.s32 8192, 8192
          %242 = vsyncadd [#allocation6], %s241
          %s243 = sshll.u32 [#allocation5], 4
          %s244 = int_to_ptr.vmem [resolvable:$true] %s243
          %249 = dma.hbm_to_vmem [thread:$0]  %s1, 8192, %s244, [#allocation6], 128, 128, 8
        $region16: #{tpu_custom_call.1} parent=11 // pred_fallthru
          _
        // Predicated region
        $region17: #{tpu_custom_call.1} parent=11 // pred_check
          %p250 = pneg %p91
        $region18: #{tpu_custom_call.1} parent=11 // pred_check_branch
          %252 = sbr.rel (%p250) target = $region20
        $region19: #{tpu_custom_call.1} parent=11 // pred_region
          %s254 = ssub.s32 8192, 8192
          %255 = vsyncadd [#allocation6], %s254
          %s256 = sshll.u32 [#allocation7], 4
          %s257 = int_to_ptr.vmem [resolvable:$true] %s256
          %262 = dma.hbm_to_vmem [thread:$0]  %s2, 8192, %s257, [#allocation6], 128, 128, 8
        $region20: #{tpu_custom_call.1} parent=11 // pred_fallthru
          _
        // Predicated region
        $region21: #{tpu_custom_call.1} parent=11 // pred_check
          %p263 = pneg %p112
        $region22: #{tpu_custom_call.1} parent=11 // pred_check_branch
          %265 = sbr.rel (%p263) target = $region24
        $region23: #{tpu_custom_call.1} parent=11 // pred_region
          %s267 = ssub.s32 10240, 10240
          %268 = vsyncadd [#allocation9], %s267
          %s269 = sshll.u32 [#allocation8], 4
          %s270 = int_to_ptr.vmem [resolvable:$true] %s269
          %275 = dma.hbm_to_vmem [thread:$0]  %s3, 10240, %s270, [#allocation9], 128, 128, 8
        $region24: #{tpu_custom_call.1} parent=11 // pred_fallthru
          _
        // Predicated region
        $region25: #{tpu_custom_call.1} parent=11 // pred_check
          %p276 = pneg %p133
        $region26: #{tpu_custom_call.1} parent=11 // pred_check_branch
          %278 = sbr.rel (%p276) target = $region28
        $region27: #{tpu_custom_call.1} parent=11 // pred_region
          %s280 = ssub.s32 10240, 10240
          %281 = vsyncadd [#allocation9], %s280
          %s282 = sshll.u32 [#allocation10], 4
          %s283 = int_to_ptr.vmem [resolvable:$true] %s282
          %288 = dma.hbm_to_vmem [thread:$0]  %s4, 10240, %s283, [#allocation9], 128, 128, 8
        $region28: #{tpu_custom_call.1} parent=11 // pred_fallthru
          _
        // Predicated region
        $region29: #{tpu_custom_call.1} parent=11 // pred_check
          %p289 = pneg %p154
        $region30: #{tpu_custom_call.1} parent=11 // pred_check_branch
          %291 = sbr.rel (%p289) target = $region32
        $region31: #{tpu_custom_call.1} parent=11 // pred_region
          %s293 = ssub.s32 10240, 10240
          %294 = vsyncadd [#allocation12], %s293
          %s295 = sshll.u32 [#allocation11], 4
          %s296 = int_to_ptr.vmem [resolvable:$true] %s295
          %301 = dma.hbm_to_vmem [thread:$0]  %s5, 10240, %s296, [#allocation12], 128, 128, 8
        $region32: #{tpu_custom_call.1} parent=11 // pred_fallthru
          _
        // Predicated region
        $region33: #{tpu_custom_call.1} parent=11 // pred_check
          %p302 = pneg %p175
        $region34: #{tpu_custom_call.1} parent=11 // pred_check_branch
          %304 = sbr.rel (%p302) target = $region36
        $region35: #{tpu_custom_call.1} parent=11 // pred_region
          %s306 = ssub.s32 10240, 10240
          %307 = vsyncadd [#allocation12], %s306
          %s308 = sshll.u32 [#allocation13], 4
          %s309 = int_to_ptr.vmem [resolvable:$true] %s308
          %314 = dma.hbm_to_vmem [thread:$0]  %s6, 10240, %s309, [#allocation12], 128, 128, 8
        $region36: #{tpu_custom_call.1} parent=11 // pred_fallthru
          _
        // Predicated region
        $region37: #{tpu_custom_call.1} parent=11 // pred_check
          %p315 = pneg %p196
        $region38: #{tpu_custom_call.1} parent=11 // pred_check_branch
          %317 = sbr.rel (%p315) target = $region40
        $region39: #{tpu_custom_call.1} parent=11 // pred_region
          _
        $region40: #{tpu_custom_call.1} parent=11 // pred_fallthru
          _
      $region12: #{tpu_custom_call.1} parent=5 // pred_fallthru
        _
      %p318 = scmp.lt.s32.totalorder %s23, 2
      // Predicated region
      $region41: #{tpu_custom_call.1} parent=5 // pred_check
        %p319 = pneg %p318
      $region42: #{tpu_custom_call.1} parent=5 // pred_check_branch
        %321 = sbr.rel (%p319) target = $region44
      $region43: #{tpu_custom_call.1} parent=5 // pred_region
        // Predicated region
        $region45: #{tpu_custom_call.1} parent=43 // pred_check
          %p322 = pneg %p43
        $region46: #{tpu_custom_call.1} parent=43 // pred_check_branch
          %324 = sbr.rel (%p322) target = $region48
        $region47: #{tpu_custom_call.1} parent=43 // pred_region
          %s325 = sand.u32 %s33, 1
          %s326 = scalar_lea.sflag [#allocation3], %s325
          %s327 = sand.u32 %s33, 1
          %s328 = smul.addr %s327, 8
          %s329 = scalar_lea.vmem [#allocation2], %s328
          %s331 = ssub.s32 128, 128
          %332 = vsyncadd %s326, %s331
          %s333 = smul.addr %s23, 128
          %s334 = scalar_lea.hbm %s0, %s333
          %s336 = sshll.u32 %s329, 4
          %s337 = int_to_ptr.vmem [resolvable:$true] %s336
          %339 = dma.hbm_to_vmem [thread:$0]  %s334, 128, %s337, %s326
        $region48: #{tpu_custom_call.1} parent=43 // pred_fallthru
          _
      $region44: #{tpu_custom_call.1} parent=5 // pred_fallthru
        _
      %p340 = scmp.le.s32.totalorder 1, %s23
      %p341 = scmp.lt.s32.totalorder %s23, 3
      %p342 = pnand %p340, %p341
      %p343 = pneg %p342
      // Predicated region
      $region49: #{tpu_custom_call.1} parent=5 // pred_check
        _
      $region50: #{tpu_custom_call.1} parent=5 // pred_check_branch
        %345 = sbr.rel (%p342) target = $region52
      $region51: #{tpu_custom_call.1} parent=5 // pred_region
        %s346 = ssub.s32 %s23, 1
        %s347 = sand.u32 %s36, 1
        %s348 = scalar_lea.sflag [#allocation3], %s347
        %s349 = sand.u32 %s36, 1
        %s350 = smul.addr %s349, 8
        %s351 = scalar_lea.vmem [#allocation2], %s350
        // Predicated region
        $region53: #{tpu_custom_call.1} parent=51 // pred_check
          %p352 = pneg %p49
        $region54: #{tpu_custom_call.1} parent=51 // pred_check_branch
          %354 = sbr.rel (%p352) target = $region56
        $region55: #{tpu_custom_call.1} parent=51 // pred_region
          %355 = dma.done %s348, 128
        $region56: #{tpu_custom_call.1} parent=51 // pred_fallthru
          _
        // Predicated region
        $region57: #{tpu_custom_call.1} parent=51 // pred_check
          %p356 = pneg %p70
        $region58: #{tpu_custom_call.1} parent=51 // pred_check_branch
          %358 = sbr.rel (%p356) target = $region60
        $region59: #{tpu_custom_call.1} parent=51 // pred_region
          %359 = dma.done [#allocation6], 8192
        $region60: #{tpu_custom_call.1} parent=51 // pred_fallthru
          _
        // Predicated region
        $region61: #{tpu_custom_call.1} parent=51 // pred_check
          %p360 = pneg %p91
        $region62: #{tpu_custom_call.1} parent=51 // pred_check_branch
          %362 = sbr.rel (%p360) target = $region64
        $region63: #{tpu_custom_call.1} parent=51 // pred_region
          %363 = dma.done [#allocation6], 8192
        $region64: #{tpu_custom_call.1} parent=51 // pred_fallthru
          _
        // Predicated region
        $region65: #{tpu_custom_call.1} parent=51 // pred_check
          %p364 = pneg %p112
        $region66: #{tpu_custom_call.1} parent=51 // pred_check_branch
          %366 = sbr.rel (%p364) target = $region68
        $region67: #{tpu_custom_call.1} parent=51 // pred_region
          %367 = dma.done [#allocation9], 10240
        $region68: #{tpu_custom_call.1} parent=51 // pred_fallthru
          _
        // Predicated region
        $region69: #{tpu_custom_call.1} parent=51 // pred_check
          %p368 = pneg %p133
        $region70: #{tpu_custom_call.1} parent=51 // pred_check_branch
          %370 = sbr.rel (%p368) target = $region72
        $region71: #{tpu_custom_call.1} parent=51 // pred_region
          %371 = dma.done [#allocation9], 10240
        $region72: #{tpu_custom_call.1} parent=51 // pred_fallthru
          _
        // Predicated region
        $region73: #{tpu_custom_call.1} parent=51 // pred_check
          %p372 = pneg %p154
        $region74: #{tpu_custom_call.1} parent=51 // pred_check_branch
          %374 = sbr.rel (%p372) target = $region76
        $region75: #{tpu_custom_call.1} parent=51 // pred_region
          %375 = dma.done [#allocation12], 10240
        $region76: #{tpu_custom_call.1} parent=51 // pred_fallthru
          _
        // Predicated region
        $region77: #{tpu_custom_call.1} parent=51 // pred_check
          %p376 = pneg %p175
        $region78: #{tpu_custom_call.1} parent=51 // pred_check_branch
          %378 = sbr.rel (%p376) target = $region80
        $region79: #{tpu_custom_call.1} parent=51 // pred_region
          %379 = dma.done [#allocation12], 10240
        $region80: #{tpu_custom_call.1} parent=51 // pred_fallthru
          _
        %s380 = sand.u32 %s36, 1
        %s381 = scalar_lea.sflag [#allocation3], %s380
        %s382 = sand.u32 %s36, 1
        %s383 = smul.addr %s382, 8
        %s384 = scalar_lea.vmem [#allocation2], %s383
        %p385 = pneg %p49
        %p386 = pneg %p46
        %p387 = pneg %p70
        %p388 = pneg %p67
        %p389 = pneg %p91
        %p390 = pneg %p88
        %p391 = pneg %p112
        %p392 = pneg %p109
        %p393 = pneg %p133
        %p394 = pneg %p130
        %p395 = pneg %p154
        %p396 = pneg %p151
        %p397 = pneg %p175
        %p398 = pneg %p172
        %p399 = pneg %p196
        %p400 = pneg %p193
        %p401 = pneg %p222
        %p402 = pneg %p219
        %s403 = sand.u32 %s209, 1
        %s404 = scalar_lea.sflag [#allocation4], %s403
        %s405 = sand.u32 %s209, 1
        %s406 = smul.addr %s405, 8
        %s407 = scalar_lea.vmem [#allocation14], %s406
        %v408 = vld [vmem:[%s351] sm:$0xff]
        %v409 = vld [vmem:[#allocation8] sm:$0xff]
        %v410 = vld [vmem:[#allocation8 + $0x8] sm:$0xff]
        %v411 = vld [vmem:[#allocation8 + $0x10] sm:$0xff]
        %v412 = vld [vmem:[#allocation8 + $0x18] sm:$0xff]
        %v413 = vld [vmem:[#allocation8 + $0x20] sm:$0xff]
        %v414 = vld [vmem:[#allocation8 + $0x28] sm:$0xff]
        %v415 = vld [vmem:[#allocation8 + $0x30] sm:$0xff]
        %v416 = vld [vmem:[#allocation8 + $0x38] sm:$0xff]
        %v417 = vld [vmem:[#allocation8 + $0x40] sm:$0xff]
        %v418 = vld [vmem:[#allocation8 + $0x48] sm:$0xff]
        %v419 = vld [vmem:[#allocation8 + $0x50] sm:$0xff]
        %v420 = vld [vmem:[#allocation8 + $0x58] sm:$0xff]
        %v421 = vld [vmem:[#allocation8 + $0x60] sm:$0xff]
        %v422 = vld [vmem:[#allocation8 + $0x68] sm:$0xff]
        %v423 = vld [vmem:[#allocation8 + $0x70] sm:$0xff]
        %v424 = vld [vmem:[#allocation8 + $0x78] sm:$0xff]
        %425 = vmatprep.subr.mxu0 0.0
        %426 = vmatpush1.msra.mxu0 %v409
        %427 = vmatprep.subr.mxu0 0.0
        %428 = vmatpush1.msra.mxu0 %v410
        %429 = vmatprep.subr.mxu0 0.0
        %430 = vmatpush1.msra.mxu0 %v411
        %431 = vmatprep.subr.mxu0 0.0
        %432 = vmatpush1.msra.mxu0 %v412
        %433 = vmatprep.subr.mxu0 0.0
        %434 = vmatpush1.msra.mxu0 %v413
        %435 = vmatprep.subr.mxu0 0.0
        %436 = vmatpush1.msra.mxu0 %v414
        %437 = vmatprep.subr.mxu0 0.0
        %438 = vmatpush1.msra.mxu0 %v415
        %439 = vmatprep.subr.mxu0 0.0
        %440 = vmatpush1.msra.mxu0 %v416
        %441 = vmatprep.subr.mxu0 0.0
        %442 = vmatpush1.msra.mxu0 %v417
        %443 = vmatprep.subr.mxu0 0.0
        %444 = vmatpush1.msra.mxu0 %v418
        %445 = vmatprep.subr.mxu0 0.0
        %446 = vmatpush1.msra.mxu0 %v419
        %447 = vmatprep.subr.mxu0 0.0
        %448 = vmatpush1.msra.mxu0 %v420
        %449 = vmatprep.subr.mxu0 0.0
        %450 = vmatpush1.msra.mxu0 %v421
        %451 = vmatprep.subr.mxu0 0.0
        %452 = vmatpush1.msra.mxu0 %v422
        %453 = vmatprep.subr.mxu0 0.0
        %454 = vmatpush1.msra.mxu0 %v423
        %455 = vmatprep.subr.mxu0 0.0
        %456 = vmatpush1.msra.mxu0 %v424
        %457 = vmatprep.subr.mxu0 0.0
        %458 = vmatpush1.msra.mxu0 0.0
        %459 = vmatprep.subr.mxu0 0.0
        %460 = vmatpush1.msra.mxu0 0.0
        %461 = vmatprep.subr.mxu0 0.0
        %462 = vmatpush1.msra.mxu0 0.0
        %463 = vmatprep.subr.mxu0 0.0
        %464 = vmatpush1.msra.mxu0 0.0
        %465 = vmatprep.subr.mxu0 0.0
        %466 = vmatpush1.msra.mxu0 0.0
        %467 = vmatprep.subr.mxu0 0.0
        %468 = vmatpush1.msra.mxu0 0.0
        %469 = vmatprep.subr.mxu0 0.0
        %470 = vmatpush1.msra.mxu0 0.0
        %471 = vmatprep.subr.mxu0 0.0
        %472 = vmatpush1.msra.mxu0 0.0
        %473 = vmatprep.subr.mxu0 0.0
        %474 = vmatpush1.msra.mxu0 0.0
        %475 = vmatprep.subr.mxu0 0.0
        %476 = vmatpush1.msra.mxu0 0.0
        %477 = vmatprep.subr.mxu0 0.0
        %478 = vmatpush1.msra.mxu0 0.0
        %479 = vmatprep.subr.mxu0 0.0
        %480 = vmatpush1.msra.mxu0 0.0
        %481 = vmatprep.subr.mxu0 0.0
        %482 = vmatpush1.msra.mxu0 0.0
        %483 = vmatprep.subr.mxu0 0.0
        %484 = vmatpush1.msra.mxu0 0.0
        %485 = vmatprep.subr.mxu0 0.0
        %486 = vmatpush1.msra.mxu0 0.0
        %487 = vmatprep.subr.mxu0 0.0
        %488 = vmatpush1.msra.mxu0 0.0
        %489 = vmatprep.mubr.f32.mxu0 0.0
        %490 = vmatmul.mubr.f32.gmra.mrb[0].mxu0 %v408
        %v491 = vpop.f32.mrb[0].mxu0
        %v492 = vadd.f32 0.0, %v491
        %v493 = vpop.f32.mrb[0].mxu0
        %494 = vdwg.mxu0
        %v495 = vld [vmem:[#allocation11] sm:$0xff]
        %v496 = vld [vmem:[#allocation11 + $0x8] sm:$0xff]
        %v497 = vld [vmem:[#allocation11 + $0x10] sm:$0xff]
        %v498 = vld [vmem:[#allocation11 + $0x18] sm:$0xff]
        %v499 = vld [vmem:[#allocation11 + $0x20] sm:$0xff]
        %v500 = vld [vmem:[#allocation11 + $0x28] sm:$0xff]
        %v501 = vld [vmem:[#allocation11 + $0x30] sm:$0xff]
        %v502 = vld [vmem:[#allocation11 + $0x38] sm:$0xff]
        %v503 = vld [vmem:[#allocation11 + $0x40] sm:$0xff]
        %v504 = vld [vmem:[#allocation11 + $0x48] sm:$0xff]
        %v505 = vld [vmem:[#allocation11 + $0x50] sm:$0xff]
        %v506 = vld [vmem:[#allocation11 + $0x58] sm:$0xff]
        %v507 = vld [vmem:[#allocation11 + $0x60] sm:$0xff]
        %v508 = vld [vmem:[#allocation11 + $0x68] sm:$0xff]
        %v509 = vld [vmem:[#allocation11 + $0x70] sm:$0xff]
        %v510 = vld [vmem:[#allocation11 + $0x78] sm:$0xff]
        %511 = vmatprep.subr.mxu0 0.0
        %512 = vmatpush1.msra.mxu0 %v495
        %513 = vmatprep.subr.mxu0 0.0
        %514 = vmatpush1.msra.mxu0 %v496
        %515 = vmatprep.subr.mxu0 0.0
        %516 = vmatpush1.msra.mxu0 %v497
        %517 = vmatprep.subr.mxu0 0.0
        %518 = vmatpush1.msra.mxu0 %v498
        %519 = vmatprep.subr.mxu0 0.0
        %520 = vmatpush1.msra.mxu0 %v499
        %521 = vmatprep.subr.mxu0 0.0
        %522 = vmatpush1.msra.mxu0 %v500
        %523 = vmatprep.subr.mxu0 0.0
        %524 = vmatpush1.msra.mxu0 %v501
        %525 = vmatprep.subr.mxu0 0.0
        %526 = vmatpush1.msra.mxu0 %v502
        %527 = vmatprep.subr.mxu0 0.0
        %528 = vmatpush1.msra.mxu0 %v503
        %529 = vmatprep.subr.mxu0 0.0
        %530 = vmatpush1.msra.mxu0 %v504
        %531 = vmatprep.subr.mxu0 0.0
        %532 = vmatpush1.msra.mxu0 %v505
        %533 = vmatprep.subr.mxu0 0.0
        %534 = vmatpush1.msra.mxu0 %v506
        %535 = vmatprep.subr.mxu0 0.0
        %536 = vmatpush1.msra.mxu0 %v507
        %537 = vmatprep.subr.mxu0 0.0
        %538 = vmatpush1.msra.mxu0 %v508
        %539 = vmatprep.subr.mxu0 0.0
        %540 = vmatpush1.msra.mxu0 %v509
        %541 = vmatprep.subr.mxu0 0.0
        %542 = vmatpush1.msra.mxu0 %v510
        %543 = vmatprep.subr.mxu0 0.0
        %544 = vmatpush1.msra.mxu0 0.0
        %545 = vmatprep.subr.mxu0 0.0
        %546 = vmatpush1.msra.mxu0 0.0
        %547 = vmatprep.subr.mxu0 0.0
        %548 = vmatpush1.msra.mxu0 0.0
        %549 = vmatprep.subr.mxu0 0.0
        %550 = vmatpush1.msra.mxu0 0.0
        %551 = vmatprep.subr.mxu0 0.0
        %552 = vmatpush1.msra.mxu0 0.0
        %553 = vmatprep.subr.mxu0 0.0
        %554 = vmatpush1.msra.mxu0 0.0
        %555 = vmatprep.subr.mxu0 0.0
        %556 = vmatpush1.msra.mxu0 0.0
        %557 = vmatprep.subr.mxu0 0.0
        %558 = vmatpush1.msra.mxu0 0.0
        %559 = vmatprep.subr.mxu0 0.0
        %560 = vmatpush1.msra.mxu0 0.0
        %561 = vmatprep.subr.mxu0 0.0
        %562 = vmatpush1.msra.mxu0 0.0
        %563 = vmatprep.subr.mxu0 0.0
        %564 = vmatpush1.msra.mxu0 0.0
        %565 = vmatprep.subr.mxu0 0.0
        %566 = vmatpush1.msra.mxu0 0.0
        %567 = vmatprep.subr.mxu0 0.0
        %568 = vmatpush1.msra.mxu0 0.0
        %569 = vmatprep.subr.mxu0 0.0
        %570 = vmatpush1.msra.mxu0 0.0
        %571 = vmatprep.subr.mxu0 0.0
        %572 = vmatpush1.msra.mxu0 0.0
        %573 = vmatprep.subr.mxu0 0.0
        %574 = vmatpush1.msra.mxu0 0.0
        %575 = vmatprep.mubr.f32.mxu0 0.0
        %576 = vmatmul.mubr.f32.gmra.mrb[0].mxu0 %v408
        %v577 = vpop.f32.mrb[0].mxu0
        %v578 = vadd.f32 0.0, %v577
        %v579 = vpop.f32.mrb[0].mxu0
        %580 = vdwg.mxu0
        %v581 = vmul.f32 %v492, %v492
        %v582 = vadd.f32 %v581, %v578
        %v583 = vld [vmem:[%s7] sm:$0x1]
        %v585 = vlaneseq
        %v586 = vshrl.u32 %v585, 7
        %v587 = vsub.s32 0, %v586
        %v588 = vrot.slane %v583, %v587
        %v590 = vadd.f32 %v582, %v588
        %vm591 = vcmp.gt.f32.partialorder %v590, 0.0
        %v592 = vmul.f32 %v590, 0.2
        %v593 = vsel %vm591, %v590, %v592
        %v594 = vadd.f32 %v492, %v492
        %s595 = scalar_lea.vmem [#allocation8], 128
        %v596 = vld [vmem:[%s595] sm:$0xff]
        %v597 = vld [vmem:[%s595 + $0x8] sm:$0xff]
        %v598 = vld [vmem:[%s595 + $0x10] sm:$0xff]
        %v599 = vld [vmem:[%s595 + $0x18] sm:$0xff]
        %v600 = vld [vmem:[%s595 + $0x20] sm:$0xff]
        %v601 = vld [vmem:[%s595 + $0x28] sm:$0xff]
        %v602 = vld [vmem:[%s595 + $0x30] sm:$0xff]
        %v603 = vld [vmem:[%s595 + $0x38] sm:$0xff]
        %v604 = vld [vmem:[%s595 + $0x40] sm:$0xff]
        %v605 = vld [vmem:[%s595 + $0x48] sm:$0xff]
        %v606 = vld [vmem:[%s595 + $0x50] sm:$0xff]
        %v607 = vld [vmem:[%s595 + $0x58] sm:$0xff]
        %v608 = vld [vmem:[%s595 + $0x60] sm:$0xff]
        %v609 = vld [vmem:[%s595 + $0x68] sm:$0xff]
        %v610 = vld [vmem:[%s595 + $0x70] sm:$0xff]
        %v611 = vld [vmem:[%s595 + $0x78] sm:$0xff]
        %612 = vmatprep.subr.mxu0 0.0
        %613 = vmatpush1.msra.mxu0 %v596
        %614 = vmatprep.subr.mxu0 0.0
        %615 = vmatpush1.msra.mxu0 %v597
        %616 = vmatprep.subr.mxu0 0.0
        %617 = vmatpush1.msra.mxu0 %v598
        %618 = vmatprep.subr.mxu0 0.0
        %619 = vmatpush1.msra.mxu0 %v599
        %620 = vmatprep.subr.mxu0 0.0
        %621 = vmatpush1.msra.mxu0 %v600
        %622 = vmatprep.subr.mxu0 0.0
        %623 = vmatpush1.msra.mxu0 %v601
        %624 = vmatprep.subr.mxu0 0.0
        %625 = vmatpush1.msra.mxu0 %v602
        %626 = vmatprep.subr.mxu0 0.0
        %627 = vmatpush1.msra.mxu0 %v603
        %628 = vmatprep.subr.mxu0 0.0
        %629 = vmatpush1.msra.mxu0 %v604
        %630 = vmatprep.subr.mxu0 0.0
        %631 = vmatpush1.msra.mxu0 %v605
        %632 = vmatprep.subr.mxu0 0.0
        %633 = vmatpush1.msra.mxu0 %v606
        %634 = vmatprep.subr.mxu0 0.0
        %635 = vmatpush1.msra.mxu0 %v607
        %636 = vmatprep.subr.mxu0 0.0
        %637 = vmatpush1.msra.mxu0 %v608
        %638 = vmatprep.subr.mxu0 0.0
        %639 = vmatpush1.msra.mxu0 %v609
        %640 = vmatprep.subr.mxu0 0.0
        %641 = vmatpush1.msra.mxu0 %v610
        %642 = vmatprep.subr.mxu0 0.0
        %643 = vmatpush1.msra.mxu0 %v611
        %644 = vmatprep.subr.mxu0 0.0
        %645 = vmatpush1.msra.mxu0 0.0
        %646 = vmatprep.subr.mxu0 0.0
        %647 = vmatpush1.msra.mxu0 0.0
        %648 = vmatprep.subr.mxu0 0.0
        %649 = vmatpush1.msra.mxu0 0.0
        %650 = vmatprep.subr.mxu0 0.0
        %651 = vmatpush1.msra.mxu0 0.0
        %652 = vmatprep.subr.mxu0 0.0
        %653 = vmatpush1.msra.mxu0 0.0
        %654 = vmatprep.subr.mxu0 0.0
        %655 = vmatpush1.msra.mxu0 0.0
        %656 = vmatprep.subr.mxu0 0.0
        %657 = vmatpush1.msra.mxu0 0.0
        %658 = vmatprep.subr.mxu0 0.0
        %659 = vmatpush1.msra.mxu0 0.0
        %660 = vmatprep.subr.mxu0 0.0
        %661 = vmatpush1.msra.mxu0 0.0
        %662 = vmatprep.subr.mxu0 0.0
        %663 = vmatpush1.msra.mxu0 0.0
        %664 = vmatprep.subr.mxu0 0.0
        %665 = vmatpush1.msra.mxu0 0.0
        %666 = vmatprep.subr.mxu0 0.0
        %667 = vmatpush1.msra.mxu0 0.0
        %668 = vmatprep.subr.mxu0 0.0
        %669 = vmatpush1.msra.mxu0 0.0
        %670 = vmatprep.subr.mxu0 0.0
        %671 = vmatpush1.msra.mxu0 0.0
        %672 = vmatprep.subr.mxu0 0.0
        %673 = vmatpush1.msra.mxu0 0.0
        %674 = vmatprep.subr.mxu0 0.0
        %675 = vmatpush1.msra.mxu0 0.0
        %676 = vmatprep.mubr.f32.mxu0 0.0
        %677 = vmatmul.mubr.f32.gmra.mrb[0].mxu0 %v408
        %v678 = vpop.f32.mrb[0].mxu0
        %v679 = vadd.f32 0.0, %v678
        %v680 = vpop.f32.mrb[0].mxu0
        %681 = vdwg.mxu0
        %s682 = scalar_lea.vmem [#allocation11], 128
        %v683 = vld [vmem:[%s682] sm:$0xff]
        %v684 = vld [vmem:[%s682 + $0x8] sm:$0xff]
        %v685 = vld [vmem:[%s682 + $0x10] sm:$0xff]
        %v686 = vld [vmem:[%s682 + $0x18] sm:$0xff]
        %v687 = vld [vmem:[%s682 + $0x20] sm:$0xff]
        %v688 = vld [vmem:[%s682 + $0x28] sm:$0xff]
        %v689 = vld [vmem:[%s682 + $0x30] sm:$0xff]
        %v690 = vld [vmem:[%s682 + $0x38] sm:$0xff]
        %v691 = vld [vmem:[%s682 + $0x40] sm:$0xff]
        %v692 = vld [vmem:[%s682 + $0x48] sm:$0xff]
        %v693 = vld [vmem:[%s682 + $0x50] sm:$0xff]
        %v694 = vld [vmem:[%s682 + $0x58] sm:$0xff]
        %v695 = vld [vmem:[%s682 + $0x60] sm:$0xff]
        %v696 = vld [vmem:[%s682 + $0x68] sm:$0xff]
        %v697 = vld [vmem:[%s682 + $0x70] sm:$0xff]
        %v698 = vld [vmem:[%s682 + $0x78] sm:$0xff]
        %699 = vmatprep.subr.mxu0 0.0
        %700 = vmatpush1.msra.mxu0 %v683
        %701 = vmatprep.subr.mxu0 0.0
        %702 = vmatpush1.msra.mxu0 %v684
        %703 = vmatprep.subr.mxu0 0.0
        %704 = vmatpush1.msra.mxu0 %v685
        %705 = vmatprep.subr.mxu0 0.0
        %706 = vmatpush1.msra.mxu0 %v686
        %707 = vmatprep.subr.mxu0 0.0
        %708 = vmatpush1.msra.mxu0 %v687
        %709 = vmatprep.subr.mxu0 0.0
        %710 = vmatpush1.msra.mxu0 %v688
        %711 = vmatprep.subr.mxu0 0.0
        %712 = vmatpush1.msra.mxu0 %v689
        %713 = vmatprep.subr.mxu0 0.0
        %714 = vmatpush1.msra.mxu0 %v690
        %715 = vmatprep.subr.mxu0 0.0
        %716 = vmatpush1.msra.mxu0 %v691
        %717 = vmatprep.subr.mxu0 0.0
        %718 = vmatpush1.msra.mxu0 %v692
        %719 = vmatprep.subr.mxu0 0.0
        %720 = vmatpush1.msra.mxu0 %v693
        %721 = vmatprep.subr.mxu0 0.0
        %722 = vmatpush1.msra.mxu0 %v694
        %723 = vmatprep.subr.mxu0 0.0
        %724 = vmatpush1.msra.mxu0 %v695
        %725 = vmatprep.subr.mxu0 0.0
        %726 = vmatpush1.msra.mxu0 %v696
        %727 = vmatprep.subr.mxu0 0.0
        %728 = vmatpush1.msra.mxu0 %v697
        %729 = vmatprep.subr.mxu0 0.0
        %730 = vmatpush1.msra.mxu0 %v698
        %731 = vmatprep.subr.mxu0 0.0
        %732 = vmatpush1.msra.mxu0 0.0
        %733 = vmatprep.subr.mxu0 0.0
        %734 = vmatpush1.msra.mxu0 0.0
        %735 = vmatprep.subr.mxu0 0.0
        %736 = vmatpush1.msra.mxu0 0.0
        %737 = vmatprep.subr.mxu0 0.0
        %738 = vmatpush1.msra.mxu0 0.0
        %739 = vmatprep.subr.mxu0 0.0
        %740 = vmatpush1.msra.mxu0 0.0
        %741 = vmatprep.subr.mxu0 0.0
        %742 = vmatpush1.msra.mxu0 0.0
        %743 = vmatprep.subr.mxu0 0.0
        %744 = vmatpush1.msra.mxu0 0.0
        %745 = vmatprep.subr.mxu0 0.0
        %746 = vmatpush1.msra.mxu0 0.0
        %747 = vmatprep.subr.mxu0 0.0
        %748 = vmatpush1.msra.mxu0 0.0
        %749 = vmatprep.subr.mxu0 0.0
        %750 = vmatpush1.msra.mxu0 0.0
        %751 = vmatprep.subr.mxu0 0.0
        %752 = vmatpush1.msra.mxu0 0.0
        %753 = vmatprep.subr.mxu0 0.0
        %754 = vmatpush1.msra.mxu0 0.0
        %755 = vmatprep.subr.mxu0 0.0
        %756 = vmatpush1.msra.mxu0 0.0
        %757 = vmatprep.subr.mxu0 0.0
        %758 = vmatpush1.msra.mxu0 0.0
        %759 = vmatprep.subr.mxu0 0.0
        %760 = vmatpush1.msra.mxu0 0.0
        %761 = vmatprep.subr.mxu0 0.0
        %762 = vmatpush1.msra.mxu0 0.0
        %763 = vmatprep.mubr.f32.mxu0 0.0
        %764 = vmatmul.mubr.f32.gmra.mrb[0].mxu0 %v408
        %v765 = vpop.f32.mrb[0].mxu0
        %v766 = vadd.f32 0.0, %v765
        %v767 = vpop.f32.mrb[0].mxu0
        %768 = vdwg.mxu0
        %v769 = vld [vmem:[#allocation5] sm:$0xff]
        %v770 = vld [vmem:[#allocation5 + $0x8] sm:$0xff]
        %v771 = vld [vmem:[#allocation5 + $0x10] sm:$0xff]
        %v772 = vld [vmem:[#allocation5 + $0x18] sm:$0xff]
        %v773 = vld [vmem:[#allocation5 + $0x20] sm:$0xff]
        %v774 = vld [vmem:[#allocation5 + $0x28] sm:$0xff]
        %v775 = vld [vmem:[#allocation5 + $0x30] sm:$0xff]
        %v776 = vld [vmem:[#allocation5 + $0x38] sm:$0xff]
        %v777 = vld [vmem:[#allocation5 + $0x40] sm:$0xff]
        %v778 = vld [vmem:[#allocation5 + $0x48] sm:$0xff]
        %v779 = vld [vmem:[#allocation5 + $0x50] sm:$0xff]
        %v780 = vld [vmem:[#allocation5 + $0x58] sm:$0xff]
        %v781 = vld [vmem:[#allocation5 + $0x60] sm:$0xff]
        %v782 = vld [vmem:[#allocation5 + $0x68] sm:$0xff]
        %v783 = vld [vmem:[#allocation5 + $0x70] sm:$0xff]
        %v784 = vld [vmem:[#allocation5 + $0x78] sm:$0xff]
        %v785 = vmul.f32 %v679, %v679
        %786 = vmatprep.subr.mxu0 0.0
        %787 = vmatpush1.msra.mxu0 %v769
        %788 = vmatprep.subr.mxu0 0.0
        %789 = vmatpush1.msra.mxu0 %v770
        %790 = vmatprep.subr.mxu0 0.0
        %791 = vmatpush1.msra.mxu0 %v771
        %792 = vmatprep.subr.mxu0 0.0
        %793 = vmatpush1.msra.mxu0 %v772
        %794 = vmatprep.subr.mxu0 0.0
        %795 = vmatpush1.msra.mxu0 %v773
        %796 = vmatprep.subr.mxu0 0.0
        %797 = vmatpush1.msra.mxu0 %v774
        %798 = vmatprep.subr.mxu0 0.0
        %799 = vmatpush1.msra.mxu0 %v775
        %800 = vmatprep.subr.mxu0 0.0
        %801 = vmatpush1.msra.mxu0 %v776
        %802 = vmatprep.subr.mxu0 0.0
        %803 = vmatpush1.msra.mxu0 %v777
        %804 = vmatprep.subr.mxu0 0.0
        %805 = vmatpush1.msra.mxu0 %v778
        %806 = vmatprep.subr.mxu0 0.0
        %807 = vmatpush1.msra.mxu0 %v779
        %808 = vmatprep.subr.mxu0 0.0
        %809 = vmatpush1.msra.mxu0 %v780
        %810 = vmatprep.subr.mxu0 0.0
        %811 = vmatpush1.msra.mxu0 %v781
        %812 = vmatprep.subr.mxu0 0.0
        %813 = vmatpush1.msra.mxu0 %v782
        %814 = vmatprep.subr.mxu0 0.0
        %815 = vmatpush1.msra.mxu0 %v783
        %816 = vmatprep.subr.mxu0 0.0
        %817 = vmatpush1.msra.mxu0 %v784
        %818 = vmatprep.subr.mxu0 0.0
        %819 = vmatpush1.msra.mxu0 0.0
        %820 = vmatprep.subr.mxu0 0.0
        %821 = vmatpush1.msra.mxu0 0.0
        %822 = vmatprep.subr.mxu0 0.0
        %823 = vmatpush1.msra.mxu0 0.0
        %824 = vmatprep.subr.mxu0 0.0
        %825 = vmatpush1.msra.mxu0 0.0
        %826 = vmatprep.subr.mxu0 0.0
        %827 = vmatpush1.msra.mxu0 0.0
        %828 = vmatprep.subr.mxu0 0.0
        %829 = vmatpush1.msra.mxu0 0.0
        %830 = vmatprep.subr.mxu0 0.0
        %831 = vmatpush1.msra.mxu0 0.0
        %832 = vmatprep.subr.mxu0 0.0
        %833 = vmatpush1.msra.mxu0 0.0
        %834 = vmatprep.subr.mxu0 0.0
        %835 = vmatpush1.msra.mxu0 0.0
        %836 = vmatprep.subr.mxu0 0.0
        %837 = vmatpush1.msra.mxu0 0.0
        %838 = vmatprep.subr.mxu0 0.0
        %839 = vmatpush1.msra.mxu0 0.0
        %840 = vmatprep.subr.mxu0 0.0
        %841 = vmatpush1.msra.mxu0 0.0
        %842 = vmatprep.subr.mxu0 0.0
        %843 = vmatpush1.msra.mxu0 0.0
        %844 = vmatprep.subr.mxu0 0.0
        %845 = vmatpush1.msra.mxu0 0.0
        %846 = vmatprep.subr.mxu0 0.0
        %847 = vmatpush1.msra.mxu0 0.0
        %848 = vmatprep.subr.mxu0 0.0
        %849 = vmatpush1.msra.mxu0 0.0
        %850 = vmatprep.mubr.f32.mxu0 0.0
        %851 = vmatmul.mubr.f32.gmra.mrb[0].mxu0 %v593
        %v852 = vpop.f32.mrb[0].mxu0
        %v853 = vadd.f32 %v785, %v852
        %v854 = vpop.f32.mrb[0].mxu0
        %855 = vdwg.mxu0
        %v856 = vadd.f32 %v853, %v766
        %s857 = scalar_lea.vmem %s7, 1
        %v858 = vld [vmem:[%s857] sm:$0x1]
        %v860 = vlaneseq
        %v861 = vshrl.u32 %v860, 7
        %v862 = vsub.s32 0, %v861
        %v863 = vrot.slane %v858, %v862
        %v865 = vadd.f32 %v856, %v863
        %vm866 = vcmp.gt.f32.partialorder %v865, 0.0
        %v867 = vmul.f32 %v865, 0.2
        %v868 = vsel %vm866, %v865, %v867
        %v869 = vadd.f32 %v679, %v679
        %s870 = scalar_lea.vmem [#allocation8], 256
        %v871 = vld [vmem:[%s870] sm:$0xff]
        %v872 = vld [vmem:[%s870 + $0x8] sm:$0xff]
        %v873 = vld [vmem:[%s870 + $0x10] sm:$0xff]
        %v874 = vld [vmem:[%s870 + $0x18] sm:$0xff]
        %v875 = vld [vmem:[%s870 + $0x20] sm:$0xff]
        %v876 = vld [vmem:[%s870 + $0x28] sm:$0xff]
        %v877 = vld [vmem:[%s870 + $0x30] sm:$0xff]
        %v878 = vld [vmem:[%s870 + $0x38] sm:$0xff]
        %v879 = vld [vmem:[%s870 + $0x40] sm:$0xff]
        %v880 = vld [vmem:[%s870 + $0x48] sm:$0xff]
        %v881 = vld [vmem:[%s870 + $0x50] sm:$0xff]
        %v882 = vld [vmem:[%s870 + $0x58] sm:$0xff]
        %v883 = vld [vmem:[%s870 + $0x60] sm:$0xff]
        %v884 = vld [vmem:[%s870 + $0x68] sm:$0xff]
        %v885 = vld [vmem:[%s870 + $0x70] sm:$0xff]
        %v886 = vld [vmem:[%s870 + $0x78] sm:$0xff]
        %887 = vmatprep.subr.mxu0 0.0
        %888 = vmatpush1.msra.mxu0 %v871
        %889 = vmatprep.subr.mxu0 0.0
        %890 = vmatpush1.msra.mxu0 %v872
        %891 = vmatprep.subr.mxu0 0.0
        %892 = vmatpush1.msra.mxu0 %v873
        %893 = vmatprep.subr.mxu0 0.0
        %894 = vmatpush1.msra.mxu0 %v874
        %895 = vmatprep.subr.mxu0 0.0
        %896 = vmatpush1.msra.mxu0 %v875
        %897 = vmatprep.subr.mxu0 0.0
        %898 = vmatpush1.msra.mxu0 %v876
        %899 = vmatprep.subr.mxu0 0.0
        %900 = vmatpush1.msra.mxu0 %v877
        %901 = vmatprep.subr.mxu0 0.0
        %902 = vmatpush1.msra.mxu0 %v878
        %903 = vmatprep.subr.mxu0 0.0
        %904 = vmatpush1.msra.mxu0 %v879
        %905 = vmatprep.subr.mxu0 0.0
        %906 = vmatpush1.msra.mxu0 %v880
        %907 = vmatprep.subr.mxu0 0.0
        %908 = vmatpush1.msra.mxu0 %v881
        %909 = vmatprep.subr.mxu0 0.0
        %910 = vmatpush1.msra.mxu0 %v882
        %911 = vmatprep.subr.mxu0 0.0
        %912 = vmatpush1.msra.mxu0 %v883
        %913 = vmatprep.subr.mxu0 0.0
        %914 = vmatpush1.msra.mxu0 %v884
        %915 = vmatprep.subr.mxu0 0.0
        %916 = vmatpush1.msra.mxu0 %v885
        %917 = vmatprep.subr.mxu0 0.0
        %918 = vmatpush1.msra.mxu0 %v886
        %919 = vmatprep.subr.mxu0 0.0
        %920 = vmatpush1.msra.mxu0 0.0
        %921 = vmatprep.subr.mxu0 0.0
        %922 = vmatpush1.msra.mxu0 0.0
        %923 = vmatprep.subr.mxu0 0.0
        %924 = vmatpush1.msra.mxu0 0.0
        %925 = vmatprep.subr.mxu0 0.0
        %926 = vmatpush1.msra.mxu0 0.0
        %927 = vmatprep.subr.mxu0 0.0
        %928 = vmatpush1.msra.mxu0 0.0
        %929 = vmatprep.subr.mxu0 0.0
        %930 = vmatpush1.msra.mxu0 0.0
        %931 = vmatprep.subr.mxu0 0.0
        %932 = vmatpush1.msra.mxu0 0.0
        %933 = vmatprep.subr.mxu0 0.0
        %934 = vmatpush1.msra.mxu0 0.0
        %935 = vmatprep.subr.mxu0 0.0
        %936 = vmatpush1.msra.mxu0 0.0
        %937 = vmatprep.subr.mxu0 0.0
        %938 = vmatpush1.msra.mxu0 0.0
        %939 = vmatprep.subr.mxu0 0.0
        %940 = vmatpush1.msra.mxu0 0.0
        %941 = vmatprep.subr.mxu0 0.0
        %942 = vmatpush1.msra.mxu0 0.0
        %943 = vmatprep.subr.mxu0 0.0
        %944 = vmatpush1.msra.mxu0 0.0
        %945 = vmatprep.subr.mxu0 0.0
        %946 = vmatpush1.msra.mxu0 0.0
        %947 = vmatprep.subr.mxu0 0.0
        %948 = vmatpush1.msra.mxu0 0.0
        %949 = vmatprep.subr.mxu0 0.0
        %950 = vmatpush1.msra.mxu0 0.0
        %951 = vmatprep.mubr.f32.mxu0 0.0
        %952 = vmatmul.mubr.f32.gmra.mrb[0].mxu0 %v408
        %v953 = vpop.f32.mrb[0].mxu0
        %v954 = vadd.f32 0.0, %v953
        %v955 = vpop.f32.mrb[0].mxu0
        %956 = vdwg.mxu0
        %s957 = scalar_lea.vmem [#allocation11], 256
        %v958 = vld [vmem:[%s957] sm:$0xff]
        %v959 = vld [vmem:[%s957 + $0x8] sm:$0xff]
        %v960 = vld [vmem:[%s957 + $0x10] sm:$0xff]
        %v961 = vld [vmem:[%s957 + $0x18] sm:$0xff]
        %v962 = vld [vmem:[%s957 + $0x20] sm:$0xff]
        %v963 = vld [vmem:[%s957 + $0x28] sm:$0xff]
        %v964 = vld [vmem:[%s957 + $0x30] sm:$0xff]
        %v965 = vld [vmem:[%s957 + $0x38] sm:$0xff]
        %v966 = vld [vmem:[%s957 + $0x40] sm:$0xff]
        %v967 = vld [vmem:[%s957 + $0x48] sm:$0xff]
        %v968 = vld [vmem:[%s957 + $0x50] sm:$0xff]
        %v969 = vld [vmem:[%s957 + $0x58] sm:$0xff]
        %v970 = vld [vmem:[%s957 + $0x60] sm:$0xff]
        %v971 = vld [vmem:[%s957 + $0x68] sm:$0xff]
        %v972 = vld [vmem:[%s957 + $0x70] sm:$0xff]
        %v973 = vld [vmem:[%s957 + $0x78] sm:$0xff]
        %974 = vmatprep.subr.mxu0 0.0
        %975 = vmatpush1.msra.mxu0 %v958
        %976 = vmatprep.subr.mxu0 0.0
        %977 = vmatpush1.msra.mxu0 %v959
        %978 = vmatprep.subr.mxu0 0.0
        %979 = vmatpush1.msra.mxu0 %v960
        %980 = vmatprep.subr.mxu0 0.0
        %981 = vmatpush1.msra.mxu0 %v961
        %982 = vmatprep.subr.mxu0 0.0
        %983 = vmatpush1.msra.mxu0 %v962
        %984 = vmatprep.subr.mxu0 0.0
        %985 = vmatpush1.msra.mxu0 %v963
        %986 = vmatprep.subr.mxu0 0.0
        %987 = vmatpush1.msra.mxu0 %v964
        %988 = vmatprep.subr.mxu0 0.0
        %989 = vmatpush1.msra.mxu0 %v965
        %990 = vmatprep.subr.mxu0 0.0
        %991 = vmatpush1.msra.mxu0 %v966
        %992 = vmatprep.subr.mxu0 0.0
        %993 = vmatpush1.msra.mxu0 %v967
        %994 = vmatprep.subr.mxu0 0.0
        %995 = vmatpush1.msra.mxu0 %v968
        %996 = vmatprep.subr.mxu0 0.0
        %997 = vmatpush1.msra.mxu0 %v969
        %998 = vmatprep.subr.mxu0 0.0
        %999 = vmatpush1.msra.mxu0 %v970
        %1000 = vmatprep.subr.mxu0 0.0
        %1001 = vmatpush1.msra.mxu0 %v971
        %1002 = vmatprep.subr.mxu0 0.0
        %1003 = vmatpush1.msra.mxu0 %v972
        %1004 = vmatprep.subr.mxu0 0.0
        %1005 = vmatpush1.msra.mxu0 %v973
        %1006 = vmatprep.subr.mxu0 0.0
        %1007 = vmatpush1.msra.mxu0 0.0
        %1008 = vmatprep.subr.mxu0 0.0
        %1009 = vmatpush1.msra.mxu0 0.0
        %1010 = vmatprep.subr.mxu0 0.0
        %1011 = vmatpush1.msra.mxu0 0.0
        %1012 = vmatprep.subr.mxu0 0.0
        %1013 = vmatpush1.msra.mxu0 0.0
        %1014 = vmatprep.subr.mxu0 0.0
        %1015 = vmatpush1.msra.mxu0 0.0
        %1016 = vmatprep.subr.mxu0 0.0
        %1017 = vmatpush1.msra.mxu0 0.0
        %1018 = vmatprep.subr.mxu0 0.0
        %1019 = vmatpush1.msra.mxu0 0.0
        %1020 = vmatprep.subr.mxu0 0.0
        %1021 = vmatpush1.msra.mxu0 0.0
        %1022 = vmatprep.subr.mxu0 0.0
        %1023 = vmatpush1.msra.mxu0 0.0
        %1024 = vmatprep.subr.mxu0 0.0
        %1025 = vmatpush1.msra.mxu0 0.0
        %1026 = vmatprep.subr.mxu0 0.0
        %1027 = vmatpush1.msra.mxu0 0.0
        %1028 = vmatprep.subr.mxu0 0.0
        %1029 = vmatpush1.msra.mxu0 0.0
        %1030 = vmatprep.subr.mxu0 0.0
        %1031 = vmatpush1.msra.mxu0 0.0
        %1032 = vmatprep.subr.mxu0 0.0
        %1033 = vmatpush1.msra.mxu0 0.0
        %1034 = vmatprep.subr.mxu0 0.0
        %1035 = vmatpush1.msra.mxu0 0.0
        %1036 = vmatprep.subr.mxu0 0.0
        %1037 = vmatpush1.msra.mxu0 0.0
        %1038 = vmatprep.mubr.f32.mxu0 0.0
        %1039 = vmatmul.mubr.f32.gmra.mrb[0].mxu0 %v408
        %v1040 = vpop.f32.mrb[0].mxu0
        %v1041 = vadd.f32 0.0, %v1040
        %v1042 = vpop.f32.mrb[0].mxu0
        %1043 = vdwg.mxu0
        %s1044 = scalar_lea.vmem [#allocation5], 128
        %v1045 = vld [vmem:[%s1044] sm:$0xff]
        %v1046 = vld [vmem:[%s1044 + $0x8] sm:$0xff]
        %v1047 = vld [vmem:[%s1044 + $0x10] sm:$0xff]
        %v1048 = vld [vmem:[%s1044 + $0x18] sm:$0xff]
        %v1049 = vld [vmem:[%s1044 + $0x20] sm:$0xff]
        %v1050 = vld [vmem:[%s1044 + $0x28] sm:$0xff]
        %v1051 = vld [vmem:[%s1044 + $0x30] sm:$0xff]
        %v1052 = vld [vmem:[%s1044 + $0x38] sm:$0xff]
        %v1053 = vld [vmem:[%s1044 + $0x40] sm:$0xff]
        %v1054 = vld [vmem:[%s1044 + $0x48] sm:$0xff]
        %v1055 = vld [vmem:[%s1044 + $0x50] sm:$0xff]
        %v1056 = vld [vmem:[%s1044 + $0x58] sm:$0xff]
        %v1057 = vld [vmem:[%s1044 + $0x60] sm:$0xff]
        %v1058 = vld [vmem:[%s1044 + $0x68] sm:$0xff]
        %v1059 = vld [vmem:[%s1044 + $0x70] sm:$0xff]
        %v1060 = vld [vmem:[%s1044 + $0x78] sm:$0xff]
        %v1061 = vmul.f32 %v954, %v954
        %1062 = vmatprep.subr.mxu0 0.0
        %1063 = vmatpush1.msra.mxu0 %v1045
        %1064 = vmatprep.subr.mxu0 0.0
        %1065 = vmatpush1.msra.mxu0 %v1046
        %1066 = vmatprep.subr.mxu0 0.0
        %1067 = vmatpush1.msra.mxu0 %v1047
        %1068 = vmatprep.subr.mxu0 0.0
        %1069 = vmatpush1.msra.mxu0 %v1048
        %1070 = vmatprep.subr.mxu0 0.0
        %1071 = vmatpush1.msra.mxu0 %v1049
        %1072 = vmatprep.subr.mxu0 0.0
        %1073 = vmatpush1.msra.mxu0 %v1050
        %1074 = vmatprep.subr.mxu0 0.0
        %1075 = vmatpush1.msra.mxu0 %v1051
        %1076 = vmatprep.subr.mxu0 0.0
        %1077 = vmatpush1.msra.mxu0 %v1052
        %1078 = vmatprep.subr.mxu0 0.0
        %1079 = vmatpush1.msra.mxu0 %v1053
        %1080 = vmatprep.subr.mxu0 0.0
        %1081 = vmatpush1.msra.mxu0 %v1054
        %1082 = vmatprep.subr.mxu0 0.0
        %1083 = vmatpush1.msra.mxu0 %v1055
        %1084 = vmatprep.subr.mxu0 0.0
        %1085 = vmatpush1.msra.mxu0 %v1056
        %1086 = vmatprep.subr.mxu0 0.0
        %1087 = vmatpush1.msra.mxu0 %v1057
        %1088 = vmatprep.subr.mxu0 0.0
        %1089 = vmatpush1.msra.mxu0 %v1058
        %1090 = vmatprep.subr.mxu0 0.0
        %1091 = vmatpush1.msra.mxu0 %v1059
        %1092 = vmatprep.subr.mxu0 0.0
        %1093 = vmatpush1.msra.mxu0 %v1060
        %1094 = vmatprep.subr.mxu0 0.0
        %1095 = vmatpush1.msra.mxu0 0.0
        %1096 = vmatprep.subr.mxu0 0.0
        %1097 = vmatpush1.msra.mxu0 0.0
        %1098 = vmatprep.subr.mxu0 0.0
        %1099 = vmatpush1.msra.mxu0 0.0
        %1100 = vmatprep.subr.mxu0 0.0
        %1101 = vmatpush1.msra.mxu0 0.0
        %1102 = vmatprep.subr.mxu0 0.0
        %1103 = vmatpush1.msra.mxu0 0.0
        %1104 = vmatprep.subr.mxu0 0.0
        %1105 = vmatpush1.msra.mxu0 0.0
        %1106 = vmatprep.subr.mxu0 0.0
        %1107 = vmatpush1.msra.mxu0 0.0
        %1108 = vmatprep.subr.mxu0 0.0
        %1109 = vmatpush1.msra.mxu0 0.0
        %1110 = vmatprep.subr.mxu0 0.0
        %1111 = vmatpush1.msra.mxu0 0.0
        %1112 = vmatprep.subr.mxu0 0.0
        %1113 = vmatpush1.msra.mxu0 0.0
        %1114 = vmatprep.subr.mxu0 0.0
        %1115 = vmatpush1.msra.mxu0 0.0
        %1116 = vmatprep.subr.mxu0 0.0
        %1117 = vmatpush1.msra.mxu0 0.0
        %1118 = vmatprep.subr.mxu0 0.0
        %1119 = vmatpush1.msra.mxu0 0.0
        %1120 = vmatprep.subr.mxu0 0.0
        %1121 = vmatpush1.msra.mxu0 0.0
        %1122 = vmatprep.subr.mxu0 0.0
        %1123 = vmatpush1.msra.mxu0 0.0
        %1124 = vmatprep.subr.mxu0 0.0
        %1125 = vmatpush1.msra.mxu0 0.0
        %1126 = vmatprep.mubr.f32.mxu0 0.0
        %1127 = vmatmul.mubr.f32.gmra.mrb[0].mxu0 %v868
        %v1128 = vpop.f32.mrb[0].mxu0
        %v1129 = vadd.f32 %v1061, %v1128
        %v1130 = vpop.f32.mrb[0].mxu0
        %1131 = vdwg.mxu0
        %v1132 = vadd.f32 %v1129, %v1041
        %s1133 = scalar_lea.vmem %s7, 2
        %v1134 = vld [vmem:[%s1133] sm:$0x1]
        %v1136 = vlaneseq
        %v1137 = vshrl.u32 %v1136, 7
        %v1138 = vsub.s32 0, %v1137
        %v1139 = vrot.slane %v1134, %v1138
        %v1141 = vadd.f32 %v1132, %v1139
        %vm1142 = vcmp.gt.f32.partialorder %v1141, 0.0
        %v1143 = vmul.f32 %v1141, 0.2
        %v1144 = vsel %vm1142, %v1141, %v1143
        %v1145 = vadd.f32 %v954, %v954
        %s1146 = scalar_lea.vmem [#allocation8], 384
        %v1147 = vld [vmem:[%s1146] sm:$0xff]
        %v1148 = vld [vmem:[%s1146 + $0x8] sm:$0xff]
        %v1149 = vld [vmem:[%s1146 + $0x10] sm:$0xff]
        %v1150 = vld [vmem:[%s1146 + $0x18] sm:$0xff]
        %v1151 = vld [vmem:[%s1146 + $0x20] sm:$0xff]
        %v1152 = vld [vmem:[%s1146 + $0x28] sm:$0xff]
        %v1153 = vld [vmem:[%s1146 + $0x30] sm:$0xff]
        %v1154 = vld [vmem:[%s1146 + $0x38] sm:$0xff]
        %v1155 = vld [vmem:[%s1146 + $0x40] sm:$0xff]
        %v1156 = vld [vmem:[%s1146 + $0x48] sm:$0xff]
        %v1157 = vld [vmem:[%s1146 + $0x50] sm:$0xff]
        %v1158 = vld [vmem:[%s1146 + $0x58] sm:$0xff]
        %v1159 = vld [vmem:[%s1146 + $0x60] sm:$0xff]
        %v1160 = vld [vmem:[%s1146 + $0x68] sm:$0xff]
        %v1161 = vld [vmem:[%s1146 + $0x70] sm:$0xff]
        %v1162 = vld [vmem:[%s1146 + $0x78] sm:$0xff]
        %1163 = vmatprep.subr.mxu0 0.0
        %1164 = vmatpush1.msra.mxu0 %v1147
        %1165 = vmatprep.subr.mxu0 0.0
        %1166 = vmatpush1.msra.mxu0 %v1148
        %1167 = vmatprep.subr.mxu0 0.0
        %1168 = vmatpush1.msra.mxu0 %v1149
        %1169 = vmatprep.subr.mxu0 0.0
        %1170 = vmatpush1.msra.mxu0 %v1150
        %1171 = vmatprep.subr.mxu0 0.0
        %1172 = vmatpush1.msra.mxu0 %v1151
        %1173 = vmatprep.subr.mxu0 0.0
        %1174 = vmatpush1.msra.mxu0 %v1152
        %1175 = vmatprep.subr.mxu0 0.0
        %1176 = vmatpush1.msra.mxu0 %v1153
        %1177 = vmatprep.subr.mxu0 0.0
        %1178 = vmatpush1.msra.mxu0 %v1154
        %1179 = vmatprep.subr.mxu0 0.0
        %1180 = vmatpush1.msra.mxu0 %v1155
        %1181 = vmatprep.subr.mxu0 0.0
        %1182 = vmatpush1.msra.mxu0 %v1156
        %1183 = vmatprep.subr.mxu0 0.0
        %1184 = vmatpush1.msra.mxu0 %v1157
        %1185 = vmatprep.subr.mxu0 0.0
        %1186 = vmatpush1.msra.mxu0 %v1158
        %1187 = vmatprep.subr.mxu0 0.0
        %1188 = vmatpush1.msra.mxu0 %v1159
        %1189 = vmatprep.subr.mxu0 0.0
        %1190 = vmatpush1.msra.mxu0 %v1160
        %1191 = vmatprep.subr.mxu0 0.0
        %1192 = vmatpush1.msra.mxu0 %v1161
        %1193 = vmatprep.subr.mxu0 0.0
        %1194 = vmatpush1.msra.mxu0 %v1162
        %1195 = vmatprep.subr.mxu0 0.0
        %1196 = vmatpush1.msra.mxu0 0.0
        %1197 = vmatprep.subr.mxu0 0.0
        %1198 = vmatpush1.msra.mxu0 0.0
        %1199 = vmatprep.subr.mxu0 0.0
        %1200 = vmatpush1.msra.mxu0 0.0
        %1201 = vmatprep.subr.mxu0 0.0
        %1202 = vmatpush1.msra.mxu0 0.0
        %1203 = vmatprep.subr.mxu0 0.0
        %1204 = vmatpush1.msra.mxu0 0.0
        %1205 = vmatprep.subr.mxu0 0.0
        %1206 = vmatpush1.msra.mxu0 0.0
        %1207 = vmatprep.subr.mxu0 0.0
        %1208 = vmatpush1.msra.mxu0 0.0
        %1209 = vmatprep.subr.mxu0 0.0
        %1210 = vmatpush1.msra.mxu0 0.0
        %1211 = vmatprep.subr.mxu0 0.0
        %1212 = vmatpush1.msra.mxu0 0.0
        %1213 = vmatprep.subr.mxu0 0.0
        %1214 = vmatpush1.msra.mxu0 0.0
        %1215 = vmatprep.subr.mxu0 0.0
        %1216 = vmatpush1.msra.mxu0 0.0
        %1217 = vmatprep.subr.mxu0 0.0
        %1218 = vmatpush1.msra.mxu0 0.0
        %1219 = vmatprep.subr.mxu0 0.0
        %1220 = vmatpush1.msra.mxu0 0.0
        %1221 = vmatprep.subr.mxu0 0.0
        %1222 = vmatpush1.msra.mxu0 0.0
        %1223 = vmatprep.subr.mxu0 0.0
        %1224 = vmatpush1.msra.mxu0 0.0
        %1225 = vmatprep.subr.mxu0 0.0
        %1226 = vmatpush1.msra.mxu0 0.0
        %1227 = vmatprep.mubr.f32.mxu0 0.0
        %1228 = vmatmul.mubr.f32.gmra.mrb[0].mxu0 %v408
        %v1229 = vpop.f32.mrb[0].mxu0
        %v1230 = vadd.f32 0.0, %v1229
        %v1231 = vpop.f32.mrb[0].mxu0
        %1232 = vdwg.mxu0
        %s1233 = scalar_lea.vmem [#allocation11], 384
        %v1234 = vld [vmem:[%s1233] sm:$0xff]
        %v1235 = vld [vmem:[%s1233 + $0x8] sm:$0xff]
        %v1236 = vld [vmem:[%s1233 + $0x10] sm:$0xff]
        %v1237 = vld [vmem:[%s1233 + $0x18] sm:$0xff]
        %v1238 = vld [vmem:[%s1233 + $0x20] sm:$0xff]
        %v1239 = vld [vmem:[%s1233 + $0x28] sm:$0xff]
        %v1240 = vld [vmem:[%s1233 + $0x30] sm:$0xff]
        %v1241 = vld [vmem:[%s1233 + $0x38] sm:$0xff]
        %v1242 = vld [vmem:[%s1233 + $0x40] sm:$0xff]
        %v1243 = vld [vmem:[%s1233 + $0x48] sm:$0xff]
        %v1244 = vld [vmem:[%s1233 + $0x50] sm:$0xff]
        %v1245 = vld [vmem:[%s1233 + $0x58] sm:$0xff]
        %v1246 = vld [vmem:[%s1233 + $0x60] sm:$0xff]
        %v1247 = vld [vmem:[%s1233 + $0x68] sm:$0xff]
        %v1248 = vld [vmem:[%s1233 + $0x70] sm:$0xff]
        %v1249 = vld [vmem:[%s1233 + $0x78] sm:$0xff]
        %1250 = vmatprep.subr.mxu0 0.0
        %1251 = vmatpush1.msra.mxu0 %v1234
        %1252 = vmatprep.subr.mxu0 0.0
        %1253 = vmatpush1.msra.mxu0 %v1235
        %1254 = vmatprep.subr.mxu0 0.0
        %1255 = vmatpush1.msra.mxu0 %v1236
        %1256 = vmatprep.subr.mxu0 0.0
        %1257 = vmatpush1.msra.mxu0 %v1237
        %1258 = vmatprep.subr.mxu0 0.0
        %1259 = vmatpush1.msra.mxu0 %v1238
        %1260 = vmatprep.subr.mxu0 0.0
        %1261 = vmatpush1.msra.mxu0 %v1239
        %1262 = vmatprep.subr.mxu0 0.0
        %1263 = vmatpush1.msra.mxu0 %v1240
        %1264 = vmatprep.subr.mxu0 0.0
        %1265 = vmatpush1.msra.mxu0 %v1241
        %1266 = vmatprep.subr.mxu0 0.0
        %1267 = vmatpush1.msra.mxu0 %v1242
        %1268 = vmatprep.subr.mxu0 0.0
        %1269 = vmatpush1.msra.mxu0 %v1243
        %1270 = vmatprep.subr.mxu0 0.0
        %1271 = vmatpush1.msra.mxu0 %v1244
        %1272 = vmatprep.subr.mxu0 0.0
        %1273 = vmatpush1.msra.mxu0 %v1245
        %1274 = vmatprep.subr.mxu0 0.0
        %1275 = vmatpush1.msra.mxu0 %v1246
        %1276 = vmatprep.subr.mxu0 0.0
        %1277 = vmatpush1.msra.mxu0 %v1247
        %1278 = vmatprep.subr.mxu0 0.0
        %1279 = vmatpush1.msra.mxu0 %v1248
        %1280 = vmatprep.subr.mxu0 0.0
        %1281 = vmatpush1.msra.mxu0 %v1249
        %1282 = vmatprep.subr.mxu0 0.0
        %1283 = vmatpush1.msra.mxu0 0.0
        %1284 = vmatprep.subr.mxu0 0.0
        %1285 = vmatpush1.msra.mxu0 0.0
        %1286 = vmatprep.subr.mxu0 0.0
        %1287 = vmatpush1.msra.mxu0 0.0
        %1288 = vmatprep.subr.mxu0 0.0
        %1289 = vmatpush1.msra.mxu0 0.0
        %1290 = vmatprep.subr.mxu0 0.0
        %1291 = vmatpush1.msra.mxu0 0.0
        %1292 = vmatprep.subr.mxu0 0.0
        %1293 = vmatpush1.msra.mxu0 0.0
        %1294 = vmatprep.subr.mxu0 0.0
        %1295 = vmatpush1.msra.mxu0 0.0
        %1296 = vmatprep.subr.mxu0 0.0
        %1297 = vmatpush1.msra.mxu0 0.0
        %1298 = vmatprep.subr.mxu0 0.0
        %1299 = vmatpush1.msra.mxu0 0.0
        %1300 = vmatprep.subr.mxu0 0.0
        %1301 = vmatpush1.msra.mxu0 0.0
        %1302 = vmatprep.subr.mxu0 0.0
        %1303 = vmatpush1.msra.mxu0 0.0
        %1304 = vmatprep.subr.mxu0 0.0
        %1305 = vmatpush1.msra.mxu0 0.0
        %1306 = vmatprep.subr.mxu0 0.0
        %1307 = vmatpush1.msra.mxu0 0.0
        %1308 = vmatprep.subr.mxu0 0.0
        %1309 = vmatpush1.msra.mxu0 0.0
        %1310 = vmatprep.subr.mxu0 0.0
        %1311 = vmatpush1.msra.mxu0 0.0
        %1312 = vmatprep.subr.mxu0 0.0
        %1313 = vmatpush1.msra.mxu0 0.0
        %1314 = vmatprep.mubr.f32.mxu0 0.0
        %1315 = vmatmul.mubr.f32.gmra.mrb[0].mxu0 %v408
        %v1316 = vpop.f32.mrb[0].mxu0
        %v1317 = vadd.f32 0.0, %v1316
        %v1318 = vpop.f32.mrb[0].mxu0
        %1319 = vdwg.mxu0
        %s1320 = scalar_lea.vmem [#allocation5], 256
        %v1321 = vld [vmem:[%s1320] sm:$0xff]
        %v1322 = vld [vmem:[%s1320 + $0x8] sm:$0xff]
        %v1323 = vld [vmem:[%s1320 + $0x10] sm:$0xff]
        %v1324 = vld [vmem:[%s1320 + $0x18] sm:$0xff]
        %v1325 = vld [vmem:[%s1320 + $0x20] sm:$0xff]
        %v1326 = vld [vmem:[%s1320 + $0x28] sm:$0xff]
        %v1327 = vld [vmem:[%s1320 + $0x30] sm:$0xff]
        %v1328 = vld [vmem:[%s1320 + $0x38] sm:$0xff]
        %v1329 = vld [vmem:[%s1320 + $0x40] sm:$0xff]
        %v1330 = vld [vmem:[%s1320 + $0x48] sm:$0xff]
        %v1331 = vld [vmem:[%s1320 + $0x50] sm:$0xff]
        %v1332 = vld [vmem:[%s1320 + $0x58] sm:$0xff]
        %v1333 = vld [vmem:[%s1320 + $0x60] sm:$0xff]
        %v1334 = vld [vmem:[%s1320 + $0x68] sm:$0xff]
        %v1335 = vld [vmem:[%s1320 + $0x70] sm:$0xff]
        %v1336 = vld [vmem:[%s1320 + $0x78] sm:$0xff]
        %v1337 = vmul.f32 %v1230, %v1230
        %1338 = vmatprep.subr.mxu0 0.0
        %1339 = vmatpush1.msra.mxu0 %v1321
        %1340 = vmatprep.subr.mxu0 0.0
        %1341 = vmatpush1.msra.mxu0 %v1322
        %1342 = vmatprep.subr.mxu0 0.0
        %1343 = vmatpush1.msra.mxu0 %v1323
        %1344 = vmatprep.subr.mxu0 0.0
        %1345 = vmatpush1.msra.mxu0 %v1324
        %1346 = vmatprep.subr.mxu0 0.0
        %1347 = vmatpush1.msra.mxu0 %v1325
        %1348 = vmatprep.subr.mxu0 0.0
        %1349 = vmatpush1.msra.mxu0 %v1326
        %1350 = vmatprep.subr.mxu0 0.0
        %1351 = vmatpush1.msra.mxu0 %v1327
        %1352 = vmatprep.subr.mxu0 0.0
        %1353 = vmatpush1.msra.mxu0 %v1328
        %1354 = vmatprep.subr.mxu0 0.0
        %1355 = vmatpush1.msra.mxu0 %v1329
        %1356 = vmatprep.subr.mxu0 0.0
        %1357 = vmatpush1.msra.mxu0 %v1330
        %1358 = vmatprep.subr.mxu0 0.0
        %1359 = vmatpush1.msra.mxu0 %v1331
        %1360 = vmatprep.subr.mxu0 0.0
        %1361 = vmatpush1.msra.mxu0 %v1332
        %1362 = vmatprep.subr.mxu0 0.0
        %1363 = vmatpush1.msra.mxu0 %v1333
        %1364 = vmatprep.subr.mxu0 0.0
        %1365 = vmatpush1.msra.mxu0 %v1334
        %1366 = vmatprep.subr.mxu0 0.0
        %1367 = vmatpush1.msra.mxu0 %v1335
        %1368 = vmatprep.subr.mxu0 0.0
        %1369 = vmatpush1.msra.mxu0 %v1336
        %1370 = vmatprep.subr.mxu0 0.0
        %1371 = vmatpush1.msra.mxu0 0.0
        %1372 = vmatprep.subr.mxu0 0.0
        %1373 = vmatpush1.msra.mxu0 0.0
        %1374 = vmatprep.subr.mxu0 0.0
        %1375 = vmatpush1.msra.mxu0 0.0
        %1376 = vmatprep.subr.mxu0 0.0
        %1377 = vmatpush1.msra.mxu0 0.0
        %1378 = vmatprep.subr.mxu0 0.0
        %1379 = vmatpush1.msra.mxu0 0.0
        %1380 = vmatprep.subr.mxu0 0.0
        %1381 = vmatpush1.msra.mxu0 0.0
        %1382 = vmatprep.subr.mxu0 0.0
        %1383 = vmatpush1.msra.mxu0 0.0
        %1384 = vmatprep.subr.mxu0 0.0
        %1385 = vmatpush1.msra.mxu0 0.0
        %1386 = vmatprep.subr.mxu0 0.0
        %1387 = vmatpush1.msra.mxu0 0.0
        %1388 = vmatprep.subr.mxu0 0.0
        %1389 = vmatpush1.msra.mxu0 0.0
        %1390 = vmatprep.subr.mxu0 0.0
        %1391 = vmatpush1.msra.mxu0 0.0
        %1392 = vmatprep.subr.mxu0 0.0
        %1393 = vmatpush1.msra.mxu0 0.0
        %1394 = vmatprep.subr.mxu0 0.0
        %1395 = vmatpush1.msra.mxu0 0.0
        %1396 = vmatprep.subr.mxu0 0.0
        %1397 = vmatpush1.msra.mxu0 0.0
        %1398 = vmatprep.subr.mxu0 0.0
        %1399 = vmatpush1.msra.mxu0 0.0
        %1400 = vmatprep.subr.mxu0 0.0
        %1401 = vmatpush1.msra.mxu0 0.0
        %1402 = vmatprep.mubr.f32.mxu0 0.0
        %1403 = vmatmul.mubr.f32.gmra.mrb[0].mxu0 %v1144
        %v1404 = vpop.f32.mrb[0].mxu0
        %v1405 = vadd.f32 %v1337, %v1404
        %v1406 = vpop.f32.mrb[0].mxu0
        %1407 = vdwg.mxu0
        %v1408 = vadd.f32 %v1405, %v1317
        %s1409 = scalar_lea.vmem %s7, 3
        %v1410 = vld [vmem:[%s1409] sm:$0x1]
        %v1412 = vlaneseq
        %v1413 = vshrl.u32 %v1412, 7
        %v1414 = vsub.s32 0, %v1413
        %v1415 = vrot.slane %v1410, %v1414
        %v1417 = vadd.f32 %v1408, %v1415
        %vm1418 = vcmp.gt.f32.partialorder %v1417, 0.0
        %v1419 = vmul.f32 %v1417, 0.2
        %v1420 = vsel %vm1418, %v1417, %v1419
        %v1421 = vadd.f32 %v1230, %v1230
        %s1422 = scalar_lea.vmem [#allocation8], 512
        %v1423 = vld [vmem:[%s1422] sm:$0xff]
        %v1424 = vld [vmem:[%s1422 + $0x8] sm:$0xff]
        %v1425 = vld [vmem:[%s1422 + $0x10] sm:$0xff]
        %v1426 = vld [vmem:[%s1422 + $0x18] sm:$0xff]
        %v1427 = vld [vmem:[%s1422 + $0x20] sm:$0xff]
        %v1428 = vld [vmem:[%s1422 + $0x28] sm:$0xff]
        %v1429 = vld [vmem:[%s1422 + $0x30] sm:$0xff]
        %v1430 = vld [vmem:[%s1422 + $0x38] sm:$0xff]
        %v1431 = vld [vmem:[%s1422 + $0x40] sm:$0xff]
        %v1432 = vld [vmem:[%s1422 + $0x48] sm:$0xff]
        %v1433 = vld [vmem:[%s1422 + $0x50] sm:$0xff]
        %v1434 = vld [vmem:[%s1422 + $0x58] sm:$0xff]
        %v1435 = vld [vmem:[%s1422 + $0x60] sm:$0xff]
        %v1436 = vld [vmem:[%s1422 + $0x68] sm:$0xff]
        %v1437 = vld [vmem:[%s1422 + $0x70] sm:$0xff]
        %v1438 = vld [vmem:[%s1422 + $0x78] sm:$0xff]
        %1439 = vmatprep.subr.mxu0 0.0
        %1440 = vmatpush1.msra.mxu0 %v1423
        %1441 = vmatprep.subr.mxu0 0.0
        %1442 = vmatpush1.msra.mxu0 %v1424
        %1443 = vmatprep.subr.mxu0 0.0
        %1444 = vmatpush1.msra.mxu0 %v1425
        %1445 = vmatprep.subr.mxu0 0.0
        %1446 = vmatpush1.msra.mxu0 %v1426
        %1447 = vmatprep.subr.mxu0 0.0
        %1448 = vmatpush1.msra.mxu0 %v1427
        %1449 = vmatprep.subr.mxu0 0.0
        %1450 = vmatpush1.msra.mxu0 %v1428
        %1451 = vmatprep.subr.mxu0 0.0
        %1452 = vmatpush1.msra.mxu0 %v1429
        %1453 = vmatprep.subr.mxu0 0.0
        %1454 = vmatpush1.msra.mxu0 %v1430
        %1455 = vmatprep.subr.mxu0 0.0
        %1456 = vmatpush1.msra.mxu0 %v1431
        %1457 = vmatprep.subr.mxu0 0.0
        %1458 = vmatpush1.msra.mxu0 %v1432
        %1459 = vmatprep.subr.mxu0 0.0
        %1460 = vmatpush1.msra.mxu0 %v1433
        %1461 = vmatprep.subr.mxu0 0.0
        %1462 = vmatpush1.msra.mxu0 %v1434
        %1463 = vmatprep.subr.mxu0 0.0
        %1464 = vmatpush1.msra.mxu0 %v1435
        %1465 = vmatprep.subr.mxu0 0.0
        %1466 = vmatpush1.msra.mxu0 %v1436
        %1467 = vmatprep.subr.mxu0 0.0
        %1468 = vmatpush1.msra.mxu0 %v1437
        %1469 = vmatprep.subr.mxu0 0.0
        %1470 = vmatpush1.msra.mxu0 %v1438
        %1471 = vmatprep.subr.mxu0 0.0
        %1472 = vmatpush1.msra.mxu0 0.0
        %1473 = vmatprep.subr.mxu0 0.0
        %1474 = vmatpush1.msra.mxu0 0.0
        %1475 = vmatprep.subr.mxu0 0.0
        %1476 = vmatpush1.msra.mxu0 0.0
        %1477 = vmatprep.subr.mxu0 0.0
        %1478 = vmatpush1.msra.mxu0 0.0
        %1479 = vmatprep.subr.mxu0 0.0
        %1480 = vmatpush1.msra.mxu0 0.0
        %1481 = vmatprep.subr.mxu0 0.0
        %1482 = vmatpush1.msra.mxu0 0.0
        %1483 = vmatprep.subr.mxu0 0.0
        %1484 = vmatpush1.msra.mxu0 0.0
        %1485 = vmatprep.subr.mxu0 0.0
        %1486 = vmatpush1.msra.mxu0 0.0
        %1487 = vmatprep.subr.mxu0 0.0
        %1488 = vmatpush1.msra.mxu0 0.0
        %1489 = vmatprep.subr.mxu0 0.0
        %1490 = vmatpush1.msra.mxu0 0.0
        %1491 = vmatprep.subr.mxu0 0.0
        %1492 = vmatpush1.msra.mxu0 0.0
        %1493 = vmatprep.subr.mxu0 0.0
        %1494 = vmatpush1.msra.mxu0 0.0
        %1495 = vmatprep.subr.mxu0 0.0
        %1496 = vmatpush1.msra.mxu0 0.0
        %1497 = vmatprep.subr.mxu0 0.0
        %1498 = vmatpush1.msra.mxu0 0.0
        %1499 = vmatprep.subr.mxu0 0.0
        %1500 = vmatpush1.msra.mxu0 0.0
        %1501 = vmatprep.subr.mxu0 0.0
        %1502 = vmatpush1.msra.mxu0 0.0
        %1503 = vmatprep.mubr.f32.mxu0 0.0
        %1504 = vmatmul.mubr.f32.gmra.mrb[0].mxu0 %v408
        %v1505 = vpop.f32.mrb[0].mxu0
        %v1506 = vadd.f32 0.0, %v1505
        %v1507 = vpop.f32.mrb[0].mxu0
        %1508 = vdwg.mxu0
        %s1509 = scalar_lea.vmem [#allocation11], 512
        %v1510 = vld [vmem:[%s1509] sm:$0xff]
        %v1511 = vld [vmem:[%s1509 + $0x8] sm:$0xff]
        %v1512 = vld [vmem:[%s1509 + $0x10] sm:$0xff]
        %v1513 = vld [vmem:[%s1509 + $0x18] sm:$0xff]
        %v1514 = vld [vmem:[%s1509 + $0x20] sm:$0xff]
        %v1515 = vld [vmem:[%s1509 + $0x28] sm:$0xff]
        %v1516 = vld [vmem:[%s1509 + $0x30] sm:$0xff]
        %v1517 = vld [vmem:[%s1509 + $0x38] sm:$0xff]
        %v1518 = vld [vmem:[%s1509 + $0x40] sm:$0xff]
        %v1519 = vld [vmem:[%s1509 + $0x48] sm:$0xff]
        %v1520 = vld [vmem:[%s1509 + $0x50] sm:$0xff]
        %v1521 = vld [vmem:[%s1509 + $0x58] sm:$0xff]
        %v1522 = vld [vmem:[%s1509 + $0x60] sm:$0xff]
        %v1523 = vld [vmem:[%s1509 + $0x68] sm:$0xff]
        %v1524 = vld [vmem:[%s1509 + $0x70] sm:$0xff]
        %v1525 = vld [vmem:[%s1509 + $0x78] sm:$0xff]
        %1526 = vmatprep.subr.mxu0 0.0
        %1527 = vmatpush1.msra.mxu0 %v1510
        %1528 = vmatprep.subr.mxu0 0.0
        %1529 = vmatpush1.msra.mxu0 %v1511
        %1530 = vmatprep.subr.mxu0 0.0
        %1531 = vmatpush1.msra.mxu0 %v1512
        %1532 = vmatprep.subr.mxu0 0.0
        %1533 = vmatpush1.msra.mxu0 %v1513
        %1534 = vmatprep.subr.mxu0 0.0
        %1535 = vmatpush1.msra.mxu0 %v1514
        %1536 = vmatprep.subr.mxu0 0.0
        %1537 = vmatpush1.msra.mxu0 %v1515
        %1538 = vmatprep.subr.mxu0 0.0
        %1539 = vmatpush1.msra.mxu0 %v1516
        %1540 = vmatprep.subr.mxu0 0.0
        %1541 = vmatpush1.msra.mxu0 %v1517
        %1542 = vmatprep.subr.mxu0 0.0
        %1543 = vmatpush1.msra.mxu0 %v1518
        %1544 = vmatprep.subr.mxu0 0.0
        %1545 = vmatpush1.msra.mxu0 %v1519
        %1546 = vmatprep.subr.mxu0 0.0
        %1547 = vmatpush1.msra.mxu0 %v1520
        %1548 = vmatprep.subr.mxu0 0.0
        %1549 = vmatpush1.msra.mxu0 %v1521
        %1550 = vmatprep.subr.mxu0 0.0
        %1551 = vmatpush1.msra.mxu0 %v1522
        %1552 = vmatprep.subr.mxu0 0.0
        %1553 = vmatpush1.msra.mxu0 %v1523
        %1554 = vmatprep.subr.mxu0 0.0
        %1555 = vmatpush1.msra.mxu0 %v1524
        %1556 = vmatprep.subr.mxu0 0.0
        %1557 = vmatpush1.msra.mxu0 %v1525
        %1558 = vmatprep.subr.mxu0 0.0
        %1559 = vmatpush1.msra.mxu0 0.0
        %1560 = vmatprep.subr.mxu0 0.0
        %1561 = vmatpush1.msra.mxu0 0.0
        %1562 = vmatprep.subr.mxu0 0.0
        %1563 = vmatpush1.msra.mxu0 0.0
        %1564 = vmatprep.subr.mxu0 0.0
        %1565 = vmatpush1.msra.mxu0 0.0
        %1566 = vmatprep.subr.mxu0 0.0
        %1567 = vmatpush1.msra.mxu0 0.0
        %1568 = vmatprep.subr.mxu0 0.0
        %1569 = vmatpush1.msra.mxu0 0.0
        %1570 = vmatprep.subr.mxu0 0.0
        %1571 = vmatpush1.msra.mxu0 0.0
        %1572 = vmatprep.subr.mxu0 0.0
        %1573 = vmatpush1.msra.mxu0 0.0
        %1574 = vmatprep.subr.mxu0 0.0
        %1575 = vmatpush1.msra.mxu0 0.0
        %1576 = vmatprep.subr.mxu0 0.0
        %1577 = vmatpush1.msra.mxu0 0.0
        %1578 = vmatprep.subr.mxu0 0.0
        %1579 = vmatpush1.msra.mxu0 0.0
        %1580 = vmatprep.subr.mxu0 0.0
        %1581 = vmatpush1.msra.mxu0 0.0
        %1582 = vmatprep.subr.mxu0 0.0
        %1583 = vmatpush1.msra.mxu0 0.0
        %1584 = vmatprep.subr.mxu0 0.0
        %1585 = vmatpush1.msra.mxu0 0.0
        %1586 = vmatprep.subr.mxu0 0.0
        %1587 = vmatpush1.msra.mxu0 0.0
        %1588 = vmatprep.subr.mxu0 0.0
        %1589 = vmatpush1.msra.mxu0 0.0
        %1590 = vmatprep.mubr.f32.mxu0 0.0
        %1591 = vmatmul.mubr.f32.gmra.mrb[0].mxu0 %v408
        %v1592 = vpop.f32.mrb[0].mxu0
        %v1593 = vadd.f32 0.0, %v1592
        %v1594 = vpop.f32.mrb[0].mxu0
        %1595 = vdwg.mxu0
        %s1596 = scalar_lea.vmem [#allocation5], 384
        %v1597 = vld [vmem:[%s1596] sm:$0xff]
        %v1598 = vld [vmem:[%s1596 + $0x8] sm:$0xff]
        %v1599 = vld [vmem:[%s1596 + $0x10] sm:$0xff]
        %v1600 = vld [vmem:[%s1596 + $0x18] sm:$0xff]
        %v1601 = vld [vmem:[%s1596 + $0x20] sm:$0xff]
        %v1602 = vld [vmem:[%s1596 + $0x28] sm:$0xff]
        %v1603 = vld [vmem:[%s1596 + $0x30] sm:$0xff]
        %v1604 = vld [vmem:[%s1596 + $0x38] sm:$0xff]
        %v1605 = vld [vmem:[%s1596 + $0x40] sm:$0xff]
        %v1606 = vld [vmem:[%s1596 + $0x48] sm:$0xff]
        %v1607 = vld [vmem:[%s1596 + $0x50] sm:$0xff]
        %v1608 = vld [vmem:[%s1596 + $0x58] sm:$0xff]
        %v1609 = vld [vmem:[%s1596 + $0x60] sm:$0xff]
        %v1610 = vld [vmem:[%s1596 + $0x68] sm:$0xff]
        %v1611 = vld [vmem:[%s1596 + $0x70] sm:$0xff]
        %v1612 = vld [vmem:[%s1596 + $0x78] sm:$0xff]
        %v1613 = vmul.f32 %v1506, %v1506
        %1614 = vmatprep.subr.mxu0 0.0
        %1615 = vmatpush1.msra.mxu0 %v1597
        %1616 = vmatprep.subr.mxu0 0.0
        %1617 = vmatpush1.msra.mxu0 %v1598
        %1618 = vmatprep.subr.mxu0 0.0
        %1619 = vmatpush1.msra.mxu0 %v1599
        %1620 = vmatprep.subr.mxu0 0.0
        %1621 = vmatpush1.msra.mxu0 %v1600
        %1622 = vmatprep.subr.mxu0 0.0
        %1623 = vmatpush1.msra.mxu0 %v1601
        %1624 = vmatprep.subr.mxu0 0.0
        %1625 = vmatpush1.msra.mxu0 %v1602
        %1626 = vmatprep.subr.mxu0 0.0
        %1627 = vmatpush1.msra.mxu0 %v1603
        %1628 = vmatprep.subr.mxu0 0.0
        %1629 = vmatpush1.msra.mxu0 %v1604
        %1630 = vmatprep.subr.mxu0 0.0
        %1631 = vmatpush1.msra.mxu0 %v1605
        %1632 = vmatprep.subr.mxu0 0.0
        %1633 = vmatpush1.msra.mxu0 %v1606
        %1634 = vmatprep.subr.mxu0 0.0
        %1635 = vmatpush1.msra.mxu0 %v1607
        %1636 = vmatprep.subr.mxu0 0.0
        %1637 = vmatpush1.msra.mxu0 %v1608
        %1638 = vmatprep.subr.mxu0 0.0
        %1639 = vmatpush1.msra.mxu0 %v1609
        %1640 = vmatprep.subr.mxu0 0.0
        %1641 = vmatpush1.msra.mxu0 %v1610
        %1642 = vmatprep.subr.mxu0 0.0
        %1643 = vmatpush1.msra.mxu0 %v1611
        %1644 = vmatprep.subr.mxu0 0.0
        %1645 = vmatpush1.msra.mxu0 %v1612
        %1646 = vmatprep.subr.mxu0 0.0
        %1647 = vmatpush1.msra.mxu0 0.0
        %1648 = vmatprep.subr.mxu0 0.0
        %1649 = vmatpush1.msra.mxu0 0.0
        %1650 = vmatprep.subr.mxu0 0.0
        %1651 = vmatpush1.msra.mxu0 0.0
        %1652 = vmatprep.subr.mxu0 0.0
        %1653 = vmatpush1.msra.mxu0 0.0
        %1654 = vmatprep.subr.mxu0 0.0
        %1655 = vmatpush1.msra.mxu0 0.0
        %1656 = vmatprep.subr.mxu0 0.0
        %1657 = vmatpush1.msra.mxu0 0.0
        %1658 = vmatprep.subr.mxu0 0.0
        %1659 = vmatpush1.msra.mxu0 0.0
        %1660 = vmatprep.subr.mxu0 0.0
        %1661 = vmatpush1.msra.mxu0 0.0
        %1662 = vmatprep.subr.mxu0 0.0
        %1663 = vmatpush1.msra.mxu0 0.0
        %1664 = vmatprep.subr.mxu0 0.0
        %1665 = vmatpush1.msra.mxu0 0.0
        %1666 = vmatprep.subr.mxu0 0.0
        %1667 = vmatpush1.msra.mxu0 0.0
        %1668 = vmatprep.subr.mxu0 0.0
        %1669 = vmatpush1.msra.mxu0 0.0
        %1670 = vmatprep.subr.mxu0 0.0
        %1671 = vmatpush1.msra.mxu0 0.0
        %1672 = vmatprep.subr.mxu0 0.0
        %1673 = vmatpush1.msra.mxu0 0.0
        %1674 = vmatprep.subr.mxu0 0.0
        %1675 = vmatpush1.msra.mxu0 0.0
        %1676 = vmatprep.subr.mxu0 0.0
        %1677 = vmatpush1.msra.mxu0 0.0
        %1678 = vmatprep.mubr.f32.mxu0 0.0
        %1679 = vmatmul.mubr.f32.gmra.mrb[0].mxu0 %v1420
        %v1680 = vpop.f32.mrb[0].mxu0
        %v1681 = vadd.f32 %v1613, %v1680
        %v1682 = vpop.f32.mrb[0].mxu0
        %1683 = vdwg.mxu0
        %v1684 = vadd.f32 %v1681, %v1593
        %s1685 = scalar_lea.vmem %s7, 4
        %v1686 = vld [vmem:[%s1685] sm:$0x1]
        %v1688 = vlaneseq
        %v1689 = vshrl.u32 %v1688, 7
        %v1690 = vsub.s32 0, %v1689
        %v1691 = vrot.slane %v1686, %v1690
        %v1693 = vadd.f32 %v1684, %v1691
        %v1694 = vadd.f32 %v1506, %v1506
        %vm1695 = vcmp.gt.f32.partialorder %v1693, 0.0
        %v1696 = vsel %vm1695, 1.0, 0.2
        %v1697 = vmul.f32 %v1696, %v1694
        %s1698 = scalar_lea.vmem [#allocation10], 512
        %v1699 = vld [vmem:[%s1698] sm:$0xff]
        %v1700 = vld [vmem:[%s1698 + $0x8] sm:$0xff]
        %v1701 = vld [vmem:[%s1698 + $0x10] sm:$0xff]
        %v1702 = vld [vmem:[%s1698 + $0x18] sm:$0xff]
        %v1703 = vld [vmem:[%s1698 + $0x20] sm:$0xff]
        %v1704 = vld [vmem:[%s1698 + $0x28] sm:$0xff]
        %v1705 = vld [vmem:[%s1698 + $0x30] sm:$0xff]
        %v1706 = vld [vmem:[%s1698 + $0x38] sm:$0xff]
        %v1707 = vld [vmem:[%s1698 + $0x40] sm:$0xff]
        %v1708 = vld [vmem:[%s1698 + $0x48] sm:$0xff]
        %v1709 = vld [vmem:[%s1698 + $0x50] sm:$0xff]
        %v1710 = vld [vmem:[%s1698 + $0x58] sm:$0xff]
        %v1711 = vld [vmem:[%s1698 + $0x60] sm:$0xff]
        %v1712 = vld [vmem:[%s1698 + $0x68] sm:$0xff]
        %v1713 = vld [vmem:[%s1698 + $0x70] sm:$0xff]
        %v1714 = vld [vmem:[%s1698 + $0x78] sm:$0xff]
        %s1715 = scalar_lea.vmem [#allocation13], 512
        %v1716 = vld [vmem:[%s1715] sm:$0xff]
        %v1717 = vld [vmem:[%s1715 + $0x8] sm:$0xff]
        %v1718 = vld [vmem:[%s1715 + $0x10] sm:$0xff]
        %v1719 = vld [vmem:[%s1715 + $0x18] sm:$0xff]
        %v1720 = vld [vmem:[%s1715 + $0x20] sm:$0xff]
        %v1721 = vld [vmem:[%s1715 + $0x28] sm:$0xff]
        %v1722 = vld [vmem:[%s1715 + $0x30] sm:$0xff]
        %v1723 = vld [vmem:[%s1715 + $0x38] sm:$0xff]
        %v1724 = vld [vmem:[%s1715 + $0x40] sm:$0xff]
        %v1725 = vld [vmem:[%s1715 + $0x48] sm:$0xff]
        %v1726 = vld [vmem:[%s1715 + $0x50] sm:$0xff]
        %v1727 = vld [vmem:[%s1715 + $0x58] sm:$0xff]
        %v1728 = vld [vmem:[%s1715 + $0x60] sm:$0xff]
        %v1729 = vld [vmem:[%s1715 + $0x68] sm:$0xff]
        %v1730 = vld [vmem:[%s1715 + $0x70] sm:$0xff]
        %v1731 = vld [vmem:[%s1715 + $0x78] sm:$0xff]
        %1732 = vmatprep.subr.mxu0 0.0
        %1733 = vmatpush1.msra.mxu0 %v1716
        %1734 = vmatprep.subr.mxu0 0.0
        %1735 = vmatpush1.msra.mxu0 %v1717
        %1736 = vmatprep.subr.mxu0 0.0
        %1737 = vmatpush1.msra.mxu0 %v1718
        %1738 = vmatprep.subr.mxu0 0.0
        %1739 = vmatpush1.msra.mxu0 %v1719
        %1740 = vmatprep.subr.mxu0 0.0
        %1741 = vmatpush1.msra.mxu0 %v1720
        %1742 = vmatprep.subr.mxu0 0.0
        %1743 = vmatpush1.msra.mxu0 %v1721
        %1744 = vmatprep.subr.mxu0 0.0
        %1745 = vmatpush1.msra.mxu0 %v1722
        %1746 = vmatprep.subr.mxu0 0.0
        %1747 = vmatpush1.msra.mxu0 %v1723
        %1748 = vmatprep.subr.mxu0 0.0
        %1749 = vmatpush1.msra.mxu0 %v1724
        %1750 = vmatprep.subr.mxu0 0.0
        %1751 = vmatpush1.msra.mxu0 %v1725
        %1752 = vmatprep.subr.mxu0 0.0
        %1753 = vmatpush1.msra.mxu0 %v1726
        %1754 = vmatprep.subr.mxu0 0.0
        %1755 = vmatpush1.msra.mxu0 %v1727
        %1756 = vmatprep.subr.mxu0 0.0
        %1757 = vmatpush1.msra.mxu0 %v1728
        %1758 = vmatprep.subr.mxu0 0.0
        %1759 = vmatpush1.msra.mxu0 %v1729
        %1760 = vmatprep.subr.mxu0 0.0
        %1761 = vmatpush1.msra.mxu0 %v1730
        %1762 = vmatprep.subr.mxu0 0.0
        %1763 = vmatpush1.msra.mxu0 %v1731
        %1764 = vmatprep.subr.mxu0 0.0
        %1765 = vmatpush1.msra.mxu0 0.0
        %1766 = vmatprep.subr.mxu0 0.0
        %1767 = vmatpush1.msra.mxu0 0.0
        %1768 = vmatprep.subr.mxu0 0.0
        %1769 = vmatpush1.msra.mxu0 0.0
        %1770 = vmatprep.subr.mxu0 0.0
        %1771 = vmatpush1.msra.mxu0 0.0
        %1772 = vmatprep.subr.mxu0 0.0
        %1773 = vmatpush1.msra.mxu0 0.0
        %1774 = vmatprep.subr.mxu0 0.0
        %1775 = vmatpush1.msra.mxu0 0.0
        %1776 = vmatprep.subr.mxu0 0.0
        %1777 = vmatpush1.msra.mxu0 0.0
        %1778 = vmatprep.subr.mxu0 0.0
        %1779 = vmatpush1.msra.mxu0 0.0
        %1780 = vmatprep.subr.mxu0 0.0
        %1781 = vmatpush1.msra.mxu0 0.0
        %1782 = vmatprep.subr.mxu0 0.0
        %1783 = vmatpush1.msra.mxu0 0.0
        %1784 = vmatprep.subr.mxu0 0.0
        %1785 = vmatpush1.msra.mxu0 0.0
        %1786 = vmatprep.subr.mxu0 0.0
        %1787 = vmatpush1.msra.mxu0 0.0
        %1788 = vmatprep.subr.mxu0 0.0
        %1789 = vmatpush1.msra.mxu0 0.0
        %1790 = vmatprep.subr.mxu0 0.0
        %1791 = vmatpush1.msra.mxu0 0.0
        %1792 = vmatprep.subr.mxu0 0.0
        %1793 = vmatpush1.msra.mxu0 0.0
        %1794 = vmatprep.subr.mxu0 0.0
        %1795 = vmatpush1.msra.mxu0 0.0
        %1796 = vmatprep.mubr.f32.mxu0 0.0
        %1797 = vmatmul.mubr.f32.gmra.mrb[0].mxu0 %v1696
        %v1798 = vpop.f32.mrb[0].mxu0
        %v1799 = vadd.f32 0.0, %v1798
        %v1800 = vpop.f32.mrb[0].mxu0
        %1801 = vdwg.mxu0
        %1802 = vmatprep.subr.mxu0 0.0
        %1803 = vmatpush1.msra.mxu0 %v1699
        %1804 = vmatprep.subr.mxu0 0.0
        %1805 = vmatpush1.msra.mxu0 %v1700
        %1806 = vmatprep.subr.mxu0 0.0
        %1807 = vmatpush1.msra.mxu0 %v1701
        %1808 = vmatprep.subr.mxu0 0.0
        %1809 = vmatpush1.msra.mxu0 %v1702
        %1810 = vmatprep.subr.mxu0 0.0
        %1811 = vmatpush1.msra.mxu0 %v1703
        %1812 = vmatprep.subr.mxu0 0.0
        %1813 = vmatpush1.msra.mxu0 %v1704
        %1814 = vmatprep.subr.mxu0 0.0
        %1815 = vmatpush1.msra.mxu0 %v1705
        %1816 = vmatprep.subr.mxu0 0.0
        %1817 = vmatpush1.msra.mxu0 %v1706
        %1818 = vmatprep.subr.mxu0 0.0
        %1819 = vmatpush1.msra.mxu0 %v1707
        %1820 = vmatprep.subr.mxu0 0.0
        %1821 = vmatpush1.msra.mxu0 %v1708
        %1822 = vmatprep.subr.mxu0 0.0
        %1823 = vmatpush1.msra.mxu0 %v1709
        %1824 = vmatprep.subr.mxu0 0.0
        %1825 = vmatpush1.msra.mxu0 %v1710
        %1826 = vmatprep.subr.mxu0 0.0
        %1827 = vmatpush1.msra.mxu0 %v1711
        %1828 = vmatprep.subr.mxu0 0.0
        %1829 = vmatpush1.msra.mxu0 %v1712
        %1830 = vmatprep.subr.mxu0 0.0
        %1831 = vmatpush1.msra.mxu0 %v1713
        %1832 = vmatprep.subr.mxu0 0.0
        %1833 = vmatpush1.msra.mxu0 %v1714
        %1834 = vmatprep.subr.mxu0 0.0
        %1835 = vmatpush1.msra.mxu0 0.0
        %1836 = vmatprep.subr.mxu0 0.0
        %1837 = vmatpush1.msra.mxu0 0.0
        %1838 = vmatprep.subr.mxu0 0.0
        %1839 = vmatpush1.msra.mxu0 0.0
        %1840 = vmatprep.subr.mxu0 0.0
        %1841 = vmatpush1.msra.mxu0 0.0
        %1842 = vmatprep.subr.mxu0 0.0
        %1843 = vmatpush1.msra.mxu0 0.0
        %1844 = vmatprep.subr.mxu0 0.0
        %1845 = vmatpush1.msra.mxu0 0.0
        %1846 = vmatprep.subr.mxu0 0.0
        %1847 = vmatpush1.msra.mxu0 0.0
        %1848 = vmatprep.subr.mxu0 0.0
        %1849 = vmatpush1.msra.mxu0 0.0
        %1850 = vmatprep.subr.mxu0 0.0
        %1851 = vmatpush1.msra.mxu0 0.0
        %1852 = vmatprep.subr.mxu0 0.0
        %1853 = vmatpush1.msra.mxu0 0.0
        %1854 = vmatprep.subr.mxu0 0.0
        %1855 = vmatpush1.msra.mxu0 0.0
        %1856 = vmatprep.subr.mxu0 0.0
        %1857 = vmatpush1.msra.mxu0 0.0
        %1858 = vmatprep.subr.mxu0 0.0
        %1859 = vmatpush1.msra.mxu0 0.0
        %1860 = vmatprep.subr.mxu0 0.0
        %1861 = vmatpush1.msra.mxu0 0.0
        %1862 = vmatprep.subr.mxu0 0.0
        %1863 = vmatpush1.msra.mxu0 0.0
        %1864 = vmatprep.subr.mxu0 0.0
        %1865 = vmatpush1.msra.mxu0 0.0
        %1866 = vmatprep.mubr.f32.mxu0 0.0
        %1867 = vmatmul.mubr.f32.gmra.mrb[0].mxu0 %v1697
        %v1868 = vpop.f32.mrb[0].mxu0
        %v1869 = vadd.f32 %v1799, %v1868
        %v1870 = vpop.f32.mrb[0].mxu0
        %1871 = vdwg.mxu0
        %s1872 = scalar_lea.vmem [#allocation7], 384
        %v1873 = vld [vmem:[%s1872] sm:$0xff]
        %v1874 = vld [vmem:[%s1872 + $0x8] sm:$0xff]
        %v1875 = vld [vmem:[%s1872 + $0x10] sm:$0xff]
        %v1876 = vld [vmem:[%s1872 + $0x18] sm:$0xff]
        %v1877 = vld [vmem:[%s1872 + $0x20] sm:$0xff]
        %v1878 = vld [vmem:[%s1872 + $0x28] sm:$0xff]
        %v1879 = vld [vmem:[%s1872 + $0x30] sm:$0xff]
        %v1880 = vld [vmem:[%s1872 + $0x38] sm:$0xff]
        %v1881 = vld [vmem:[%s1872 + $0x40] sm:$0xff]
        %v1882 = vld [vmem:[%s1872 + $0x48] sm:$0xff]
        %v1883 = vld [vmem:[%s1872 + $0x50] sm:$0xff]
        %v1884 = vld [vmem:[%s1872 + $0x58] sm:$0xff]
        %v1885 = vld [vmem:[%s1872 + $0x60] sm:$0xff]
        %v1886 = vld [vmem:[%s1872 + $0x68] sm:$0xff]
        %v1887 = vld [vmem:[%s1872 + $0x70] sm:$0xff]
        %v1888 = vld [vmem:[%s1872 + $0x78] sm:$0xff]
        %1889 = vmatprep.subr.mxu0 0.0
        %1890 = vmatpush1.msra.mxu0 %v1873
        %1891 = vmatprep.subr.mxu0 0.0
        %1892 = vmatpush1.msra.mxu0 %v1874
        %1893 = vmatprep.subr.mxu0 0.0
        %1894 = vmatpush1.msra.mxu0 %v1875
        %1895 = vmatprep.subr.mxu0 0.0
        %1896 = vmatpush1.msra.mxu0 %v1876
        %1897 = vmatprep.subr.mxu0 0.0
        %1898 = vmatpush1.msra.mxu0 %v1877
        %1899 = vmatprep.subr.mxu0 0.0
        %1900 = vmatpush1.msra.mxu0 %v1878
        %1901 = vmatprep.subr.mxu0 0.0
        %1902 = vmatpush1.msra.mxu0 %v1879
        %1903 = vmatprep.subr.mxu0 0.0
        %1904 = vmatpush1.msra.mxu0 %v1880
        %1905 = vmatprep.subr.mxu0 0.0
        %1906 = vmatpush1.msra.mxu0 %v1881
        %1907 = vmatprep.subr.mxu0 0.0
        %1908 = vmatpush1.msra.mxu0 %v1882
        %1909 = vmatprep.subr.mxu0 0.0
        %1910 = vmatpush1.msra.mxu0 %v1883
        %1911 = vmatprep.subr.mxu0 0.0
        %1912 = vmatpush1.msra.mxu0 %v1884
        %1913 = vmatprep.subr.mxu0 0.0
        %1914 = vmatpush1.msra.mxu0 %v1885
        %1915 = vmatprep.subr.mxu0 0.0
        %1916 = vmatpush1.msra.mxu0 %v1886
        %1917 = vmatprep.subr.mxu0 0.0
        %1918 = vmatpush1.msra.mxu0 %v1887
        %1919 = vmatprep.subr.mxu0 0.0
        %1920 = vmatpush1.msra.mxu0 %v1888
        %1921 = vmatprep.subr.mxu0 0.0
        %1922 = vmatpush1.msra.mxu0 0.0
        %1923 = vmatprep.subr.mxu0 0.0
        %1924 = vmatpush1.msra.mxu0 0.0
        %1925 = vmatprep.subr.mxu0 0.0
        %1926 = vmatpush1.msra.mxu0 0.0
        %1927 = vmatprep.subr.mxu0 0.0
        %1928 = vmatpush1.msra.mxu0 0.0
        %1929 = vmatprep.subr.mxu0 0.0
        %1930 = vmatpush1.msra.mxu0 0.0
        %1931 = vmatprep.subr.mxu0 0.0
        %1932 = vmatpush1.msra.mxu0 0.0
        %1933 = vmatprep.subr.mxu0 0.0
        %1934 = vmatpush1.msra.mxu0 0.0
        %1935 = vmatprep.subr.mxu0 0.0
        %1936 = vmatpush1.msra.mxu0 0.0
        %1937 = vmatprep.subr.mxu0 0.0
        %1938 = vmatpush1.msra.mxu0 0.0
        %1939 = vmatprep.subr.mxu0 0.0
        %1940 = vmatpush1.msra.mxu0 0.0
        %1941 = vmatprep.subr.mxu0 0.0
        %1942 = vmatpush1.msra.mxu0 0.0
        %1943 = vmatprep.subr.mxu0 0.0
        %1944 = vmatpush1.msra.mxu0 0.0
        %1945 = vmatprep.subr.mxu0 0.0
        %1946 = vmatpush1.msra.mxu0 0.0
        %1947 = vmatprep.subr.mxu0 0.0
        %1948 = vmatpush1.msra.mxu0 0.0
        %1949 = vmatprep.subr.mxu0 0.0
        %1950 = vmatpush1.msra.mxu0 0.0
        %1951 = vmatprep.subr.mxu0 0.0
        %1952 = vmatpush1.msra.mxu0 0.0
        %1953 = vmatprep.mubr.f32.mxu0 0.0
        %1954 = vmatmul.mubr.f32.gmra.mrb[0].mxu0 %v1696
        %v1955 = vpop.f32.mrb[0].mxu0
        %v1956 = vadd.f32 0.0, %v1955
        %v1957 = vpop.f32.mrb[0].mxu0
        %1958 = vdwg.mxu0
        %v1959 = vmul.f32 %v1956, 0.2
        %v1960 = vsel %vm1418, %v1956, %v1959
        %v1961 = vmul.f32 %v1960, %v1421
        %s1962 = scalar_lea.vmem [#allocation10], 384
        %v1963 = vld [vmem:[%s1962] sm:$0xff]
        %v1964 = vld [vmem:[%s1962 + $0x8] sm:$0xff]
        %v1965 = vld [vmem:[%s1962 + $0x10] sm:$0xff]
        %v1966 = vld [vmem:[%s1962 + $0x18] sm:$0xff]
        %v1967 = vld [vmem:[%s1962 + $0x20] sm:$0xff]
        %v1968 = vld [vmem:[%s1962 + $0x28] sm:$0xff]
        %v1969 = vld [vmem:[%s1962 + $0x30] sm:$0xff]
        %v1970 = vld [vmem:[%s1962 + $0x38] sm:$0xff]
        %v1971 = vld [vmem:[%s1962 + $0x40] sm:$0xff]
        %v1972 = vld [vmem:[%s1962 + $0x48] sm:$0xff]
        %v1973 = vld [vmem:[%s1962 + $0x50] sm:$0xff]
        %v1974 = vld [vmem:[%s1962 + $0x58] sm:$0xff]
        %v1975 = vld [vmem:[%s1962 + $0x60] sm:$0xff]
        %v1976 = vld [vmem:[%s1962 + $0x68] sm:$0xff]
        %v1977 = vld [vmem:[%s1962 + $0x70] sm:$0xff]
        %v1978 = vld [vmem:[%s1962 + $0x78] sm:$0xff]
        %1979 = vmatprep.subr.mxu0 0.0
        %1980 = vmatpush1.msra.mxu0 %v1963
        %1981 = vmatprep.subr.mxu0 0.0
        %1982 = vmatpush1.msra.mxu0 %v1964
        %1983 = vmatprep.subr.mxu0 0.0
        %1984 = vmatpush1.msra.mxu0 %v1965
        %1985 = vmatprep.subr.mxu0 0.0
        %1986 = vmatpush1.msra.mxu0 %v1966
        %1987 = vmatprep.subr.mxu0 0.0
        %1988 = vmatpush1.msra.mxu0 %v1967
        %1989 = vmatprep.subr.mxu0 0.0
        %1990 = vmatpush1.msra.mxu0 %v1968
        %1991 = vmatprep.subr.mxu0 0.0
        %1992 = vmatpush1.msra.mxu0 %v1969
        %1993 = vmatprep.subr.mxu0 0.0
        %1994 = vmatpush1.msra.mxu0 %v1970
        %1995 = vmatprep.subr.mxu0 0.0
        %1996 = vmatpush1.msra.mxu0 %v1971
        %1997 = vmatprep.subr.mxu0 0.0
        %1998 = vmatpush1.msra.mxu0 %v1972
        %1999 = vmatprep.subr.mxu0 0.0
        %2000 = vmatpush1.msra.mxu0 %v1973
        %2001 = vmatprep.subr.mxu0 0.0
        %2002 = vmatpush1.msra.mxu0 %v1974
        %2003 = vmatprep.subr.mxu0 0.0
        %2004 = vmatpush1.msra.mxu0 %v1975
        %2005 = vmatprep.subr.mxu0 0.0
        %2006 = vmatpush1.msra.mxu0 %v1976
        %2007 = vmatprep.subr.mxu0 0.0
        %2008 = vmatpush1.msra.mxu0 %v1977
        %2009 = vmatprep.subr.mxu0 0.0
        %2010 = vmatpush1.msra.mxu0 %v1978
        %2011 = vmatprep.subr.mxu0 0.0
        %2012 = vmatpush1.msra.mxu0 0.0
        %2013 = vmatprep.subr.mxu0 0.0
        %2014 = vmatpush1.msra.mxu0 0.0
        %2015 = vmatprep.subr.mxu0 0.0
        %2016 = vmatpush1.msra.mxu0 0.0
        %2017 = vmatprep.subr.mxu0 0.0
        %2018 = vmatpush1.msra.mxu0 0.0
        %2019 = vmatprep.subr.mxu0 0.0
        %2020 = vmatpush1.msra.mxu0 0.0
        %2021 = vmatprep.subr.mxu0 0.0
        %2022 = vmatpush1.msra.mxu0 0.0
        %2023 = vmatprep.subr.mxu0 0.0
        %2024 = vmatpush1.msra.mxu0 0.0
        %2025 = vmatprep.subr.mxu0 0.0
        %2026 = vmatpush1.msra.mxu0 0.0
        %2027 = vmatprep.subr.mxu0 0.0
        %2028 = vmatpush1.msra.mxu0 0.0
        %2029 = vmatprep.subr.mxu0 0.0
        %2030 = vmatpush1.msra.mxu0 0.0
        %2031 = vmatprep.subr.mxu0 0.0
        %2032 = vmatpush1.msra.mxu0 0.0
        %2033 = vmatprep.subr.mxu0 0.0
        %2034 = vmatpush1.msra.mxu0 0.0
        %2035 = vmatprep.subr.mxu0 0.0
        %2036 = vmatpush1.msra.mxu0 0.0
        %2037 = vmatprep.subr.mxu0 0.0
        %2038 = vmatpush1.msra.mxu0 0.0
        %2039 = vmatprep.subr.mxu0 0.0
        %2040 = vmatpush1.msra.mxu0 0.0
        %2041 = vmatprep.subr.mxu0 0.0
        %2042 = vmatpush1.msra.mxu0 0.0
        %2043 = vmatprep.mubr.f32.mxu0 0.0
        %2044 = vmatmul.mubr.f32.gmra.mrb[0].mxu0 %v1961
        %v2045 = vpop.f32.mrb[0].mxu0
        %v2046 = vadd.f32 0.0, %v2045
        %v2047 = vpop.f32.mrb[0].mxu0
        %2048 = vdwg.mxu0
        %v2049 = vadd.f32 %v1869, %v2046
        %s2050 = scalar_lea.vmem [#allocation13], 384
        %v2051 = vld [vmem:[%s2050] sm:$0xff]
        %v2052 = vld [vmem:[%s2050 + $0x8] sm:$0xff]
        %v2053 = vld [vmem:[%s2050 + $0x10] sm:$0xff]
        %v2054 = vld [vmem:[%s2050 + $0x18] sm:$0xff]
        %v2055 = vld [vmem:[%s2050 + $0x20] sm:$0xff]
        %v2056 = vld [vmem:[%s2050 + $0x28] sm:$0xff]
        %v2057 = vld [vmem:[%s2050 + $0x30] sm:$0xff]
        %v2058 = vld [vmem:[%s2050 + $0x38] sm:$0xff]
        %v2059 = vld [vmem:[%s2050 + $0x40] sm:$0xff]
        %v2060 = vld [vmem:[%s2050 + $0x48] sm:$0xff]
        %v2061 = vld [vmem:[%s2050 + $0x50] sm:$0xff]
        %v2062 = vld [vmem:[%s2050 + $0x58] sm:$0xff]
        %v2063 = vld [vmem:[%s2050 + $0x60] sm:$0xff]
        %v2064 = vld [vmem:[%s2050 + $0x68] sm:$0xff]
        %v2065 = vld [vmem:[%s2050 + $0x70] sm:$0xff]
        %v2066 = vld [vmem:[%s2050 + $0x78] sm:$0xff]
        %2067 = vmatprep.subr.mxu0 0.0
        %2068 = vmatpush1.msra.mxu0 %v2051
        %2069 = vmatprep.subr.mxu0 0.0
        %2070 = vmatpush1.msra.mxu0 %v2052
        %2071 = vmatprep.subr.mxu0 0.0
        %2072 = vmatpush1.msra.mxu0 %v2053
        %2073 = vmatprep.subr.mxu0 0.0
        %2074 = vmatpush1.msra.mxu0 %v2054
        %2075 = vmatprep.subr.mxu0 0.0
        %2076 = vmatpush1.msra.mxu0 %v2055
        %2077 = vmatprep.subr.mxu0 0.0
        %2078 = vmatpush1.msra.mxu0 %v2056
        %2079 = vmatprep.subr.mxu0 0.0
        %2080 = vmatpush1.msra.mxu0 %v2057
        %2081 = vmatprep.subr.mxu0 0.0
        %2082 = vmatpush1.msra.mxu0 %v2058
        %2083 = vmatprep.subr.mxu0 0.0
        %2084 = vmatpush1.msra.mxu0 %v2059
        %2085 = vmatprep.subr.mxu0 0.0
        %2086 = vmatpush1.msra.mxu0 %v2060
        %2087 = vmatprep.subr.mxu0 0.0
        %2088 = vmatpush1.msra.mxu0 %v2061
        %2089 = vmatprep.subr.mxu0 0.0
        %2090 = vmatpush1.msra.mxu0 %v2062
        %2091 = vmatprep.subr.mxu0 0.0
        %2092 = vmatpush1.msra.mxu0 %v2063
        %2093 = vmatprep.subr.mxu0 0.0
        %2094 = vmatpush1.msra.mxu0 %v2064
        %2095 = vmatprep.subr.mxu0 0.0
        %2096 = vmatpush1.msra.mxu0 %v2065
        %2097 = vmatprep.subr.mxu0 0.0
        %2098 = vmatpush1.msra.mxu0 %v2066
        %2099 = vmatprep.subr.mxu0 0.0
        %2100 = vmatpush1.msra.mxu0 0.0
        %2101 = vmatprep.subr.mxu0 0.0
        %2102 = vmatpush1.msra.mxu0 0.0
        %2103 = vmatprep.subr.mxu0 0.0
        %2104 = vmatpush1.msra.mxu0 0.0
        %2105 = vmatprep.subr.mxu0 0.0
        %2106 = vmatpush1.msra.mxu0 0.0
        %2107 = vmatprep.subr.mxu0 0.0
        %2108 = vmatpush1.msra.mxu0 0.0
        %2109 = vmatprep.subr.mxu0 0.0
        %2110 = vmatpush1.msra.mxu0 0.0
        %2111 = vmatprep.subr.mxu0 0.0
        %2112 = vmatpush1.msra.mxu0 0.0
        %2113 = vmatprep.subr.mxu0 0.0
        %2114 = vmatpush1.msra.mxu0 0.0
        %2115 = vmatprep.subr.mxu0 0.0
        %2116 = vmatpush1.msra.mxu0 0.0
        %2117 = vmatprep.subr.mxu0 0.0
        %2118 = vmatpush1.msra.mxu0 0.0
        %2119 = vmatprep.subr.mxu0 0.0
        %2120 = vmatpush1.msra.mxu0 0.0
        %2121 = vmatprep.subr.mxu0 0.0
        %2122 = vmatpush1.msra.mxu0 0.0
        %2123 = vmatprep.subr.mxu0 0.0
        %2124 = vmatpush1.msra.mxu0 0.0
        %2125 = vmatprep.subr.mxu0 0.0
        %2126 = vmatpush1.msra.mxu0 0.0
        %2127 = vmatprep.subr.mxu0 0.0
        %2128 = vmatpush1.msra.mxu0 0.0
        %2129 = vmatprep.subr.mxu0 0.0
        %2130 = vmatpush1.msra.mxu0 0.0
        %2131 = vmatprep.mubr.f32.mxu0 0.0
        %2132 = vmatmul.mubr.f32.gmra.mrb[0].mxu0 %v1960
        %v2133 = vpop.f32.mrb[0].mxu0
        %v2134 = vadd.f32 0.0, %v2133
        %v2135 = vpop.f32.mrb[0].mxu0
        %2136 = vdwg.mxu0
        %v2137 = vadd.f32 %v2049, %v2134
        %s2138 = scalar_lea.vmem [#allocation7], 256
        %v2139 = vld [vmem:[%s2138] sm:$0xff]
        %v2140 = vld [vmem:[%s2138 + $0x8] sm:$0xff]
        %v2141 = vld [vmem:[%s2138 + $0x10] sm:$0xff]
        %v2142 = vld [vmem:[%s2138 + $0x18] sm:$0xff]
        %v2143 = vld [vmem:[%s2138 + $0x20] sm:$0xff]
        %v2144 = vld [vmem:[%s2138 + $0x28] sm:$0xff]
        %v2145 = vld [vmem:[%s2138 + $0x30] sm:$0xff]
        %v2146 = vld [vmem:[%s2138 + $0x38] sm:$0xff]
        %v2147 = vld [vmem:[%s2138 + $0x40] sm:$0xff]
        %v2148 = vld [vmem:[%s2138 + $0x48] sm:$0xff]
        %v2149 = vld [vmem:[%s2138 + $0x50] sm:$0xff]
        %v2150 = vld [vmem:[%s2138 + $0x58] sm:$0xff]
        %v2151 = vld [vmem:[%s2138 + $0x60] sm:$0xff]
        %v2152 = vld [vmem:[%s2138 + $0x68] sm:$0xff]
        %v2153 = vld [vmem:[%s2138 + $0x70] sm:$0xff]
        %v2154 = vld [vmem:[%s2138 + $0x78] sm:$0xff]
        %2155 = vmatprep.subr.mxu0 0.0
        %2156 = vmatpush1.msra.mxu0 %v2139
        %2157 = vmatprep.subr.mxu0 0.0
        %2158 = vmatpush1.msra.mxu0 %v2140
        %2159 = vmatprep.subr.mxu0 0.0
        %2160 = vmatpush1.msra.mxu0 %v2141
        %2161 = vmatprep.subr.mxu0 0.0
        %2162 = vmatpush1.msra.mxu0 %v2142
        %2163 = vmatprep.subr.mxu0 0.0
        %2164 = vmatpush1.msra.mxu0 %v2143
        %2165 = vmatprep.subr.mxu0 0.0
        %2166 = vmatpush1.msra.mxu0 %v2144
        %2167 = vmatprep.subr.mxu0 0.0
        %2168 = vmatpush1.msra.mxu0 %v2145
        %2169 = vmatprep.subr.mxu0 0.0
        %2170 = vmatpush1.msra.mxu0 %v2146
        %2171 = vmatprep.subr.mxu0 0.0
        %2172 = vmatpush1.msra.mxu0 %v2147
        %2173 = vmatprep.subr.mxu0 0.0
        %2174 = vmatpush1.msra.mxu0 %v2148
        %2175 = vmatprep.subr.mxu0 0.0
        %2176 = vmatpush1.msra.mxu0 %v2149
        %2177 = vmatprep.subr.mxu0 0.0
        %2178 = vmatpush1.msra.mxu0 %v2150
        %2179 = vmatprep.subr.mxu0 0.0
        %2180 = vmatpush1.msra.mxu0 %v2151
        %2181 = vmatprep.subr.mxu0 0.0
        %2182 = vmatpush1.msra.mxu0 %v2152
        %2183 = vmatprep.subr.mxu0 0.0
        %2184 = vmatpush1.msra.mxu0 %v2153
        %2185 = vmatprep.subr.mxu0 0.0
        %2186 = vmatpush1.msra.mxu0 %v2154
        %2187 = vmatprep.subr.mxu0 0.0
        %2188 = vmatpush1.msra.mxu0 0.0
        %2189 = vmatprep.subr.mxu0 0.0
        %2190 = vmatpush1.msra.mxu0 0.0
        %2191 = vmatprep.subr.mxu0 0.0
        %2192 = vmatpush1.msra.mxu0 0.0
        %2193 = vmatprep.subr.mxu0 0.0
        %2194 = vmatpush1.msra.mxu0 0.0
        %2195 = vmatprep.subr.mxu0 0.0
        %2196 = vmatpush1.msra.mxu0 0.0
        %2197 = vmatprep.subr.mxu0 0.0
        %2198 = vmatpush1.msra.mxu0 0.0
        %2199 = vmatprep.subr.mxu0 0.0
        %2200 = vmatpush1.msra.mxu0 0.0
        %2201 = vmatprep.subr.mxu0 0.0
        %2202 = vmatpush1.msra.mxu0 0.0
        %2203 = vmatprep.subr.mxu0 0.0
        %2204 = vmatpush1.msra.mxu0 0.0
        %2205 = vmatprep.subr.mxu0 0.0
        %2206 = vmatpush1.msra.mxu0 0.0
        %2207 = vmatprep.subr.mxu0 0.0
        %2208 = vmatpush1.msra.mxu0 0.0
        %2209 = vmatprep.subr.mxu0 0.0
        %2210 = vmatpush1.msra.mxu0 0.0
        %2211 = vmatprep.subr.mxu0 0.0
        %2212 = vmatpush1.msra.mxu0 0.0
        %2213 = vmatprep.subr.mxu0 0.0
        %2214 = vmatpush1.msra.mxu0 0.0
        %2215 = vmatprep.subr.mxu0 0.0
        %2216 = vmatpush1.msra.mxu0 0.0
        %2217 = vmatprep.subr.mxu0 0.0
        %2218 = vmatpush1.msra.mxu0 0.0
        %2219 = vmatprep.mubr.f32.mxu0 0.0
        %2220 = vmatmul.mubr.f32.gmra.mrb[0].mxu0 %v1960
        %v2221 = vpop.f32.mrb[0].mxu0
        %v2222 = vadd.f32 0.0, %v2221
        %v2223 = vpop.f32.mrb[0].mxu0
        %2224 = vdwg.mxu0
        %v2225 = vmul.f32 %v2222, 0.2
        %v2226 = vsel %vm1142, %v2222, %v2225
        %v2227 = vmul.f32 %v2226, %v1145
        %s2228 = scalar_lea.vmem [#allocation10], 256
        %v2229 = vld [vmem:[%s2228] sm:$0xff]
        %v2230 = vld [vmem:[%s2228 + $0x8] sm:$0xff]
        %v2231 = vld [vmem:[%s2228 + $0x10] sm:$0xff]
        %v2232 = vld [vmem:[%s2228 + $0x18] sm:$0xff]
        %v2233 = vld [vmem:[%s2228 + $0x20] sm:$0xff]
        %v2234 = vld [vmem:[%s2228 + $0x28] sm:$0xff]
        %v2235 = vld [vmem:[%s2228 + $0x30] sm:$0xff]
        %v2236 = vld [vmem:[%s2228 + $0x38] sm:$0xff]
        %v2237 = vld [vmem:[%s2228 + $0x40] sm:$0xff]
        %v2238 = vld [vmem:[%s2228 + $0x48] sm:$0xff]
        %v2239 = vld [vmem:[%s2228 + $0x50] sm:$0xff]
        %v2240 = vld [vmem:[%s2228 + $0x58] sm:$0xff]
        %v2241 = vld [vmem:[%s2228 + $0x60] sm:$0xff]
        %v2242 = vld [vmem:[%s2228 + $0x68] sm:$0xff]
        %v2243 = vld [vmem:[%s2228 + $0x70] sm:$0xff]
        %v2244 = vld [vmem:[%s2228 + $0x78] sm:$0xff]
        %2245 = vmatprep.subr.mxu0 0.0
        %2246 = vmatpush1.msra.mxu0 %v2229
        %2247 = vmatprep.subr.mxu0 0.0
        %2248 = vmatpush1.msra.mxu0 %v2230
        %2249 = vmatprep.subr.mxu0 0.0
        %2250 = vmatpush1.msra.mxu0 %v2231
        %2251 = vmatprep.subr.mxu0 0.0
        %2252 = vmatpush1.msra.mxu0 %v2232
        %2253 = vmatprep.subr.mxu0 0.0
        %2254 = vmatpush1.msra.mxu0 %v2233
        %2255 = vmatprep.subr.mxu0 0.0
        %2256 = vmatpush1.msra.mxu0 %v2234
        %2257 = vmatprep.subr.mxu0 0.0
        %2258 = vmatpush1.msra.mxu0 %v2235
        %2259 = vmatprep.subr.mxu0 0.0
        %2260 = vmatpush1.msra.mxu0 %v2236
        %2261 = vmatprep.subr.mxu0 0.0
        %2262 = vmatpush1.msra.mxu0 %v2237
        %2263 = vmatprep.subr.mxu0 0.0
        %2264 = vmatpush1.msra.mxu0 %v2238
        %2265 = vmatprep.subr.mxu0 0.0
        %2266 = vmatpush1.msra.mxu0 %v2239
        %2267 = vmatprep.subr.mxu0 0.0
        %2268 = vmatpush1.msra.mxu0 %v2240
        %2269 = vmatprep.subr.mxu0 0.0
        %2270 = vmatpush1.msra.mxu0 %v2241
        %2271 = vmatprep.subr.mxu0 0.0
        %2272 = vmatpush1.msra.mxu0 %v2242
        %2273 = vmatprep.subr.mxu0 0.0
        %2274 = vmatpush1.msra.mxu0 %v2243
        %2275 = vmatprep.subr.mxu0 0.0
        %2276 = vmatpush1.msra.mxu0 %v2244
        %2277 = vmatprep.subr.mxu0 0.0
        %2278 = vmatpush1.msra.mxu0 0.0
        %2279 = vmatprep.subr.mxu0 0.0
        %2280 = vmatpush1.msra.mxu0 0.0
        %2281 = vmatprep.subr.mxu0 0.0
        %2282 = vmatpush1.msra.mxu0 0.0
        %2283 = vmatprep.subr.mxu0 0.0
        %2284 = vmatpush1.msra.mxu0 0.0
        %2285 = vmatprep.subr.mxu0 0.0
        %2286 = vmatpush1.msra.mxu0 0.0
        %2287 = vmatprep.subr.mxu0 0.0
        %2288 = vmatpush1.msra.mxu0 0.0
        %2289 = vmatprep.subr.mxu0 0.0
        %2290 = vmatpush1.msra.mxu0 0.0
        %2291 = vmatprep.subr.mxu0 0.0
        %2292 = vmatpush1.msra.mxu0 0.0
        %2293 = vmatprep.subr.mxu0 0.0
        %2294 = vmatpush1.msra.mxu0 0.0
        %2295 = vmatprep.subr.mxu0 0.0
        %2296 = vmatpush1.msra.mxu0 0.0
        %2297 = vmatprep.subr.mxu0 0.0
        %2298 = vmatpush1.msra.mxu0 0.0
        %2299 = vmatprep.subr.mxu0 0.0
        %2300 = vmatpush1.msra.mxu0 0.0
        %2301 = vmatprep.subr.mxu0 0.0
        %2302 = vmatpush1.msra.mxu0 0.0
        %2303 = vmatprep.subr.mxu0 0.0
        %2304 = vmatpush1.msra.mxu0 0.0
        %2305 = vmatprep.subr.mxu0 0.0
        %2306 = vmatpush1.msra.mxu0 0.0
        %2307 = vmatprep.subr.mxu0 0.0
        %2308 = vmatpush1.msra.mxu0 0.0
        %2309 = vmatprep.mubr.f32.mxu0 0.0
        %2310 = vmatmul.mubr.f32.gmra.mrb[0].mxu0 %v2227
        %v2311 = vpop.f32.mrb[0].mxu0
        %v2312 = vadd.f32 0.0, %v2311
        %v2313 = vpop.f32.mrb[0].mxu0
        %2314 = vdwg.mxu0
        %v2315 = vadd.f32 %v2137, %v2312
        %s2316 = scalar_lea.vmem [#allocation13], 256
        %v2317 = vld [vmem:[%s2316] sm:$0xff]
        %v2318 = vld [vmem:[%s2316 + $0x8] sm:$0xff]
        %v2319 = vld [vmem:[%s2316 + $0x10] sm:$0xff]
        %v2320 = vld [vmem:[%s2316 + $0x18] sm:$0xff]
        %v2321 = vld [vmem:[%s2316 + $0x20] sm:$0xff]
        %v2322 = vld [vmem:[%s2316 + $0x28] sm:$0xff]
        %v2323 = vld [vmem:[%s2316 + $0x30] sm:$0xff]
        %v2324 = vld [vmem:[%s2316 + $0x38] sm:$0xff]
        %v2325 = vld [vmem:[%s2316 + $0x40] sm:$0xff]
        %v2326 = vld [vmem:[%s2316 + $0x48] sm:$0xff]
        %v2327 = vld [vmem:[%s2316 + $0x50] sm:$0xff]
        %v2328 = vld [vmem:[%s2316 + $0x58] sm:$0xff]
        %v2329 = vld [vmem:[%s2316 + $0x60] sm:$0xff]
        %v2330 = vld [vmem:[%s2316 + $0x68] sm:$0xff]
        %v2331 = vld [vmem:[%s2316 + $0x70] sm:$0xff]
        %v2332 = vld [vmem:[%s2316 + $0x78] sm:$0xff]
        %2333 = vmatprep.subr.mxu0 0.0
        %2334 = vmatpush1.msra.mxu0 %v2317
        %2335 = vmatprep.subr.mxu0 0.0
        %2336 = vmatpush1.msra.mxu0 %v2318
        %2337 = vmatprep.subr.mxu0 0.0
        %2338 = vmatpush1.msra.mxu0 %v2319
        %2339 = vmatprep.subr.mxu0 0.0
        %2340 = vmatpush1.msra.mxu0 %v2320
        %2341 = vmatprep.subr.mxu0 0.0
        %2342 = vmatpush1.msra.mxu0 %v2321
        %2343 = vmatprep.subr.mxu0 0.0
        %2344 = vmatpush1.msra.mxu0 %v2322
        %2345 = vmatprep.subr.mxu0 0.0
        %2346 = vmatpush1.msra.mxu0 %v2323
        %2347 = vmatprep.subr.mxu0 0.0
        %2348 = vmatpush1.msra.mxu0 %v2324
        %2349 = vmatprep.subr.mxu0 0.0
        %2350 = vmatpush1.msra.mxu0 %v2325
        %2351 = vmatprep.subr.mxu0 0.0
        %2352 = vmatpush1.msra.mxu0 %v2326
        %2353 = vmatprep.subr.mxu0 0.0
        %2354 = vmatpush1.msra.mxu0 %v2327
        %2355 = vmatprep.subr.mxu0 0.0
        %2356 = vmatpush1.msra.mxu0 %v2328
        %2357 = vmatprep.subr.mxu0 0.0
        %2358 = vmatpush1.msra.mxu0 %v2329
        %2359 = vmatprep.subr.mxu0 0.0
        %2360 = vmatpush1.msra.mxu0 %v2330
        %2361 = vmatprep.subr.mxu0 0.0
        %2362 = vmatpush1.msra.mxu0 %v2331
        %2363 = vmatprep.subr.mxu0 0.0
        %2364 = vmatpush1.msra.mxu0 %v2332
        %2365 = vmatprep.subr.mxu0 0.0
        %2366 = vmatpush1.msra.mxu0 0.0
        %2367 = vmatprep.subr.mxu0 0.0
        %2368 = vmatpush1.msra.mxu0 0.0
        %2369 = vmatprep.subr.mxu0 0.0
        %2370 = vmatpush1.msra.mxu0 0.0
        %2371 = vmatprep.subr.mxu0 0.0
        %2372 = vmatpush1.msra.mxu0 0.0
        %2373 = vmatprep.subr.mxu0 0.0
        %2374 = vmatpush1.msra.mxu0 0.0
        %2375 = vmatprep.subr.mxu0 0.0
        %2376 = vmatpush1.msra.mxu0 0.0
        %2377 = vmatprep.subr.mxu0 0.0
        %2378 = vmatpush1.msra.mxu0 0.0
        %2379 = vmatprep.subr.mxu0 0.0
        %2380 = vmatpush1.msra.mxu0 0.0
        %2381 = vmatprep.subr.mxu0 0.0
        %2382 = vmatpush1.msra.mxu0 0.0
        %2383 = vmatprep.subr.mxu0 0.0
        %2384 = vmatpush1.msra.mxu0 0.0
        %2385 = vmatprep.subr.mxu0 0.0
        %2386 = vmatpush1.msra.mxu0 0.0
        %2387 = vmatprep.subr.mxu0 0.0
        %2388 = vmatpush1.msra.mxu0 0.0
        %2389 = vmatprep.subr.mxu0 0.0
        %2390 = vmatpush1.msra.mxu0 0.0
        %2391 = vmatprep.subr.mxu0 0.0
        %2392 = vmatpush1.msra.mxu0 0.0
        %2393 = vmatprep.subr.mxu0 0.0
        %2394 = vmatpush1.msra.mxu0 0.0
        %2395 = vmatprep.subr.mxu0 0.0
        %2396 = vmatpush1.msra.mxu0 0.0
        %2397 = vmatprep.mubr.f32.mxu0 0.0
        %2398 = vmatmul.mubr.f32.gmra.mrb[0].mxu0 %v2226
        %v2399 = vpop.f32.mrb[0].mxu0
        %v2400 = vadd.f32 0.0, %v2399
        %v2401 = vpop.f32.mrb[0].mxu0
        %2402 = vdwg.mxu0
        %v2403 = vadd.f32 %v2315, %v2400
        %s2404 = scalar_lea.vmem [#allocation7], 128
        %v2405 = vld [vmem:[%s2404] sm:$0xff]
        %v2406 = vld [vmem:[%s2404 + $0x8] sm:$0xff]
        %v2407 = vld [vmem:[%s2404 + $0x10] sm:$0xff]
        %v2408 = vld [vmem:[%s2404 + $0x18] sm:$0xff]
        %v2409 = vld [vmem:[%s2404 + $0x20] sm:$0xff]
        %v2410 = vld [vmem:[%s2404 + $0x28] sm:$0xff]
        %v2411 = vld [vmem:[%s2404 + $0x30] sm:$0xff]
        %v2412 = vld [vmem:[%s2404 + $0x38] sm:$0xff]
        %v2413 = vld [vmem:[%s2404 + $0x40] sm:$0xff]
        %v2414 = vld [vmem:[%s2404 + $0x48] sm:$0xff]
        %v2415 = vld [vmem:[%s2404 + $0x50] sm:$0xff]
        %v2416 = vld [vmem:[%s2404 + $0x58] sm:$0xff]
        %v2417 = vld [vmem:[%s2404 + $0x60] sm:$0xff]
        %v2418 = vld [vmem:[%s2404 + $0x68] sm:$0xff]
        %v2419 = vld [vmem:[%s2404 + $0x70] sm:$0xff]
        %v2420 = vld [vmem:[%s2404 + $0x78] sm:$0xff]
        %2421 = vmatprep.subr.mxu0 0.0
        %2422 = vmatpush1.msra.mxu0 %v2405
        %2423 = vmatprep.subr.mxu0 0.0
        %2424 = vmatpush1.msra.mxu0 %v2406
        %2425 = vmatprep.subr.mxu0 0.0
        %2426 = vmatpush1.msra.mxu0 %v2407
        %2427 = vmatprep.subr.mxu0 0.0
        %2428 = vmatpush1.msra.mxu0 %v2408
        %2429 = vmatprep.subr.mxu0 0.0
        %2430 = vmatpush1.msra.mxu0 %v2409
        %2431 = vmatprep.subr.mxu0 0.0
        %2432 = vmatpush1.msra.mxu0 %v2410
        %2433 = vmatprep.subr.mxu0 0.0
        %2434 = vmatpush1.msra.mxu0 %v2411
        %2435 = vmatprep.subr.mxu0 0.0
        %2436 = vmatpush1.msra.mxu0 %v2412
        %2437 = vmatprep.subr.mxu0 0.0
        %2438 = vmatpush1.msra.mxu0 %v2413
        %2439 = vmatprep.subr.mxu0 0.0
        %2440 = vmatpush1.msra.mxu0 %v2414
        %2441 = vmatprep.subr.mxu0 0.0
        %2442 = vmatpush1.msra.mxu0 %v2415
        %2443 = vmatprep.subr.mxu0 0.0
        %2444 = vmatpush1.msra.mxu0 %v2416
        %2445 = vmatprep.subr.mxu0 0.0
        %2446 = vmatpush1.msra.mxu0 %v2417
        %2447 = vmatprep.subr.mxu0 0.0
        %2448 = vmatpush1.msra.mxu0 %v2418
        %2449 = vmatprep.subr.mxu0 0.0
        %2450 = vmatpush1.msra.mxu0 %v2419
        %2451 = vmatprep.subr.mxu0 0.0
        %2452 = vmatpush1.msra.mxu0 %v2420
        %2453 = vmatprep.subr.mxu0 0.0
        %2454 = vmatpush1.msra.mxu0 0.0
        %2455 = vmatprep.subr.mxu0 0.0
        %2456 = vmatpush1.msra.mxu0 0.0
        %2457 = vmatprep.subr.mxu0 0.0
        %2458 = vmatpush1.msra.mxu0 0.0
        %2459 = vmatprep.subr.mxu0 0.0
        %2460 = vmatpush1.msra.mxu0 0.0
        %2461 = vmatprep.subr.mxu0 0.0
        %2462 = vmatpush1.msra.mxu0 0.0
        %2463 = vmatprep.subr.mxu0 0.0
        %2464 = vmatpush1.msra.mxu0 0.0
        %2465 = vmatprep.subr.mxu0 0.0
        %2466 = vmatpush1.msra.mxu0 0.0
        %2467 = vmatprep.subr.mxu0 0.0
        %2468 = vmatpush1.msra.mxu0 0.0
        %2469 = vmatprep.subr.mxu0 0.0
        %2470 = vmatpush1.msra.mxu0 0.0
        %2471 = vmatprep.subr.mxu0 0.0
        %2472 = vmatpush1.msra.mxu0 0.0
        %2473 = vmatprep.subr.mxu0 0.0
        %2474 = vmatpush1.msra.mxu0 0.0
        %2475 = vmatprep.subr.mxu0 0.0
        %2476 = vmatpush1.msra.mxu0 0.0
        %2477 = vmatprep.subr.mxu0 0.0
        %2478 = vmatpush1.msra.mxu0 0.0
        %2479 = vmatprep.subr.mxu0 0.0
        %2480 = vmatpush1.msra.mxu0 0.0
        %2481 = vmatprep.subr.mxu0 0.0
        %2482 = vmatpush1.msra.mxu0 0.0
        %2483 = vmatprep.subr.mxu0 0.0
        %2484 = vmatpush1.msra.mxu0 0.0
        %2485 = vmatprep.mubr.f32.mxu0 0.0
        %2486 = vmatmul.mubr.f32.gmra.mrb[0].mxu0 %v2226
        %v2487 = vpop.f32.mrb[0].mxu0
        %v2488 = vadd.f32 0.0, %v2487
        %v2489 = vpop.f32.mrb[0].mxu0
        %2490 = vdwg.mxu0
        %v2491 = vmul.f32 %v2488, 0.2
        %v2492 = vsel %vm866, %v2488, %v2491
        %v2493 = vmul.f32 %v2492, %v869
        %s2494 = scalar_lea.vmem [#allocation10], 128
        %v2495 = vld [vmem:[%s2494] sm:$0xff]
        %v2496 = vld [vmem:[%s2494 + $0x8] sm:$0xff]
        %v2497 = vld [vmem:[%s2494 + $0x10] sm:$0xff]
        %v2498 = vld [vmem:[%s2494 + $0x18] sm:$0xff]
        %v2499 = vld [vmem:[%s2494 + $0x20] sm:$0xff]
        %v2500 = vld [vmem:[%s2494 + $0x28] sm:$0xff]
        %v2501 = vld [vmem:[%s2494 + $0x30] sm:$0xff]
        %v2502 = vld [vmem:[%s2494 + $0x38] sm:$0xff]
        %v2503 = vld [vmem:[%s2494 + $0x40] sm:$0xff]
        %v2504 = vld [vmem:[%s2494 + $0x48] sm:$0xff]
        %v2505 = vld [vmem:[%s2494 + $0x50] sm:$0xff]
        %v2506 = vld [vmem:[%s2494 + $0x58] sm:$0xff]
        %v2507 = vld [vmem:[%s2494 + $0x60] sm:$0xff]
        %v2508 = vld [vmem:[%s2494 + $0x68] sm:$0xff]
        %v2509 = vld [vmem:[%s2494 + $0x70] sm:$0xff]
        %v2510 = vld [vmem:[%s2494 + $0x78] sm:$0xff]
        %2511 = vmatprep.subr.mxu0 0.0
        %2512 = vmatpush1.msra.mxu0 %v2495
        %2513 = vmatprep.subr.mxu0 0.0
        %2514 = vmatpush1.msra.mxu0 %v2496
        %2515 = vmatprep.subr.mxu0 0.0
        %2516 = vmatpush1.msra.mxu0 %v2497
        %2517 = vmatprep.subr.mxu0 0.0
        %2518 = vmatpush1.msra.mxu0 %v2498
        %2519 = vmatprep.subr.mxu0 0.0
        %2520 = vmatpush1.msra.mxu0 %v2499
        %2521 = vmatprep.subr.mxu0 0.0
        %2522 = vmatpush1.msra.mxu0 %v2500
        %2523 = vmatprep.subr.mxu0 0.0
        %2524 = vmatpush1.msra.mxu0 %v2501
        %2525 = vmatprep.subr.mxu0 0.0
        %2526 = vmatpush1.msra.mxu0 %v2502
        %2527 = vmatprep.subr.mxu0 0.0
        %2528 = vmatpush1.msra.mxu0 %v2503
        %2529 = vmatprep.subr.mxu0 0.0
        %2530 = vmatpush1.msra.mxu0 %v2504
        %2531 = vmatprep.subr.mxu0 0.0
        %2532 = vmatpush1.msra.mxu0 %v2505
        %2533 = vmatprep.subr.mxu0 0.0
        %2534 = vmatpush1.msra.mxu0 %v2506
        %2535 = vmatprep.subr.mxu0 0.0
        %2536 = vmatpush1.msra.mxu0 %v2507
        %2537 = vmatprep.subr.mxu0 0.0
        %2538 = vmatpush1.msra.mxu0 %v2508
        %2539 = vmatprep.subr.mxu0 0.0
        %2540 = vmatpush1.msra.mxu0 %v2509
        %2541 = vmatprep.subr.mxu0 0.0
        %2542 = vmatpush1.msra.mxu0 %v2510
        %2543 = vmatprep.subr.mxu0 0.0
        %2544 = vmatpush1.msra.mxu0 0.0
        %2545 = vmatprep.subr.mxu0 0.0
        %2546 = vmatpush1.msra.mxu0 0.0
        %2547 = vmatprep.subr.mxu0 0.0
        %2548 = vmatpush1.msra.mxu0 0.0
        %2549 = vmatprep.subr.mxu0 0.0
        %2550 = vmatpush1.msra.mxu0 0.0
        %2551 = vmatprep.subr.mxu0 0.0
        %2552 = vmatpush1.msra.mxu0 0.0
        %2553 = vmatprep.subr.mxu0 0.0
        %2554 = vmatpush1.msra.mxu0 0.0
        %2555 = vmatprep.subr.mxu0 0.0
        %2556 = vmatpush1.msra.mxu0 0.0
        %2557 = vmatprep.subr.mxu0 0.0
        %2558 = vmatpush1.msra.mxu0 0.0
        %2559 = vmatprep.subr.mxu0 0.0
        %2560 = vmatpush1.msra.mxu0 0.0
        %2561 = vmatprep.subr.mxu0 0.0
        %2562 = vmatpush1.msra.mxu0 0.0
        %2563 = vmatprep.subr.mxu0 0.0
        %2564 = vmatpush1.msra.mxu0 0.0
        %2565 = vmatprep.subr.mxu0 0.0
        %2566 = vmatpush1.msra.mxu0 0.0
        %2567 = vmatprep.subr.mxu0 0.0
        %2568 = vmatpush1.msra.mxu0 0.0
        %2569 = vmatprep.subr.mxu0 0.0
        %2570 = vmatpush1.msra.mxu0 0.0
        %2571 = vmatprep.subr.mxu0 0.0
        %2572 = vmatpush1.msra.mxu0 0.0
        %2573 = vmatprep.subr.mxu0 0.0
        %2574 = vmatpush1.msra.mxu0 0.0
        %2575 = vmatprep.mubr.f32.mxu0 0.0
        %2576 = vmatmul.mubr.f32.gmra.mrb[0].mxu0 %v2493
        %v2577 = vpop.f32.mrb[0].mxu0
        %v2578 = vadd.f32 0.0, %v2577
        %v2579 = vpop.f32.mrb[0].mxu0
        %2580 = vdwg.mxu0
        %v2581 = vadd.f32 %v2403, %v2578
        %s2582 = scalar_lea.vmem [#allocation13], 128
        %v2583 = vld [vmem:[%s2582] sm:$0xff]
        %v2584 = vld [vmem:[%s2582 + $0x8] sm:$0xff]
        %v2585 = vld [vmem:[%s2582 + $0x10] sm:$0xff]
        %v2586 = vld [vmem:[%s2582 + $0x18] sm:$0xff]
        %v2587 = vld [vmem:[%s2582 + $0x20] sm:$0xff]
        %v2588 = vld [vmem:[%s2582 + $0x28] sm:$0xff]
        %v2589 = vld [vmem:[%s2582 + $0x30] sm:$0xff]
        %v2590 = vld [vmem:[%s2582 + $0x38] sm:$0xff]
        %v2591 = vld [vmem:[%s2582 + $0x40] sm:$0xff]
        %v2592 = vld [vmem:[%s2582 + $0x48] sm:$0xff]
        %v2593 = vld [vmem:[%s2582 + $0x50] sm:$0xff]
        %v2594 = vld [vmem:[%s2582 + $0x58] sm:$0xff]
        %v2595 = vld [vmem:[%s2582 + $0x60] sm:$0xff]
        %v2596 = vld [vmem:[%s2582 + $0x68] sm:$0xff]
        %v2597 = vld [vmem:[%s2582 + $0x70] sm:$0xff]
        %v2598 = vld [vmem:[%s2582 + $0x78] sm:$0xff]
        %2599 = vmatprep.subr.mxu0 0.0
        %2600 = vmatpush1.msra.mxu0 %v2583
        %2601 = vmatprep.subr.mxu0 0.0
        %2602 = vmatpush1.msra.mxu0 %v2584
        %2603 = vmatprep.subr.mxu0 0.0
        %2604 = vmatpush1.msra.mxu0 %v2585
        %2605 = vmatprep.subr.mxu0 0.0
        %2606 = vmatpush1.msra.mxu0 %v2586
        %2607 = vmatprep.subr.mxu0 0.0
        %2608 = vmatpush1.msra.mxu0 %v2587
        %2609 = vmatprep.subr.mxu0 0.0
        %2610 = vmatpush1.msra.mxu0 %v2588
        %2611 = vmatprep.subr.mxu0 0.0
        %2612 = vmatpush1.msra.mxu0 %v2589
        %2613 = vmatprep.subr.mxu0 0.0
        %2614 = vmatpush1.msra.mxu0 %v2590
        %2615 = vmatprep.subr.mxu0 0.0
        %2616 = vmatpush1.msra.mxu0 %v2591
        %2617 = vmatprep.subr.mxu0 0.0
        %2618 = vmatpush1.msra.mxu0 %v2592
        %2619 = vmatprep.subr.mxu0 0.0
        %2620 = vmatpush1.msra.mxu0 %v2593
        %2621 = vmatprep.subr.mxu0 0.0
        %2622 = vmatpush1.msra.mxu0 %v2594
        %2623 = vmatprep.subr.mxu0 0.0
        %2624 = vmatpush1.msra.mxu0 %v2595
        %2625 = vmatprep.subr.mxu0 0.0
        %2626 = vmatpush1.msra.mxu0 %v2596
        %2627 = vmatprep.subr.mxu0 0.0
        %2628 = vmatpush1.msra.mxu0 %v2597
        %2629 = vmatprep.subr.mxu0 0.0
        %2630 = vmatpush1.msra.mxu0 %v2598
        %2631 = vmatprep.subr.mxu0 0.0
        %2632 = vmatpush1.msra.mxu0 0.0
        %2633 = vmatprep.subr.mxu0 0.0
        %2634 = vmatpush1.msra.mxu0 0.0
        %2635 = vmatprep.subr.mxu0 0.0
        %2636 = vmatpush1.msra.mxu0 0.0
        %2637 = vmatprep.subr.mxu0 0.0
        %2638 = vmatpush1.msra.mxu0 0.0
        %2639 = vmatprep.subr.mxu0 0.0
        %2640 = vmatpush1.msra.mxu0 0.0
        %2641 = vmatprep.subr.mxu0 0.0
        %2642 = vmatpush1.msra.mxu0 0.0
        %2643 = vmatprep.subr.mxu0 0.0
        %2644 = vmatpush1.msra.mxu0 0.0
        %2645 = vmatprep.subr.mxu0 0.0
        %2646 = vmatpush1.msra.mxu0 0.0
        %2647 = vmatprep.subr.mxu0 0.0
        %2648 = vmatpush1.msra.mxu0 0.0
        %2649 = vmatprep.subr.mxu0 0.0
        %2650 = vmatpush1.msra.mxu0 0.0
        %2651 = vmatprep.subr.mxu0 0.0
        %2652 = vmatpush1.msra.mxu0 0.0
        %2653 = vmatprep.subr.mxu0 0.0
        %2654 = vmatpush1.msra.mxu0 0.0
        %2655 = vmatprep.subr.mxu0 0.0
        %2656 = vmatpush1.msra.mxu0 0.0
        %2657 = vmatprep.subr.mxu0 0.0
        %2658 = vmatpush1.msra.mxu0 0.0
        %2659 = vmatprep.subr.mxu0 0.0
        %2660 = vmatpush1.msra.mxu0 0.0
        %2661 = vmatprep.subr.mxu0 0.0
        %2662 = vmatpush1.msra.mxu0 0.0
        %2663 = vmatprep.mubr.f32.mxu0 0.0
        %2664 = vmatmul.mubr.f32.gmra.mrb[0].mxu0 %v2492
        %v2665 = vpop.f32.mrb[0].mxu0
        %v2666 = vadd.f32 0.0, %v2665
        %v2667 = vpop.f32.mrb[0].mxu0
        %2668 = vdwg.mxu0
        %v2669 = vadd.f32 %v2581, %v2666
        %v2670 = vld [vmem:[#allocation7] sm:$0xff]
        %v2671 = vld [vmem:[#allocation7 + $0x8] sm:$0xff]
        %v2672 = vld [vmem:[#allocation7 + $0x10] sm:$0xff]
        %v2673 = vld [vmem:[#allocation7 + $0x18] sm:$0xff]
        %v2674 = vld [vmem:[#allocation7 + $0x20] sm:$0xff]
        %v2675 = vld [vmem:[#allocation7 + $0x28] sm:$0xff]
        %v2676 = vld [vmem:[#allocation7 + $0x30] sm:$0xff]
        %v2677 = vld [vmem:[#allocation7 + $0x38] sm:$0xff]
        %v2678 = vld [vmem:[#allocation7 + $0x40] sm:$0xff]
        %v2679 = vld [vmem:[#allocation7 + $0x48] sm:$0xff]
        %v2680 = vld [vmem:[#allocation7 + $0x50] sm:$0xff]
        %v2681 = vld [vmem:[#allocation7 + $0x58] sm:$0xff]
        %v2682 = vld [vmem:[#allocation7 + $0x60] sm:$0xff]
        %v2683 = vld [vmem:[#allocation7 + $0x68] sm:$0xff]
        %v2684 = vld [vmem:[#allocation7 + $0x70] sm:$0xff]
        %v2685 = vld [vmem:[#allocation7 + $0x78] sm:$0xff]
        %2686 = vmatprep.subr.mxu0 0.0
        %2687 = vmatpush1.msra.mxu0 %v2670
        %2688 = vmatprep.subr.mxu0 0.0
        %2689 = vmatpush1.msra.mxu0 %v2671
        %2690 = vmatprep.subr.mxu0 0.0
        %2691 = vmatpush1.msra.mxu0 %v2672
        %2692 = vmatprep.subr.mxu0 0.0
        %2693 = vmatpush1.msra.mxu0 %v2673
        %2694 = vmatprep.subr.mxu0 0.0
        %2695 = vmatpush1.msra.mxu0 %v2674
        %2696 = vmatprep.subr.mxu0 0.0
        %2697 = vmatpush1.msra.mxu0 %v2675
        %2698 = vmatprep.subr.mxu0 0.0
        %2699 = vmatpush1.msra.mxu0 %v2676
        %2700 = vmatprep.subr.mxu0 0.0
        %2701 = vmatpush1.msra.mxu0 %v2677
        %2702 = vmatprep.subr.mxu0 0.0
        %2703 = vmatpush1.msra.mxu0 %v2678
        %2704 = vmatprep.subr.mxu0 0.0
        %2705 = vmatpush1.msra.mxu0 %v2679
        %2706 = vmatprep.subr.mxu0 0.0
        %2707 = vmatpush1.msra.mxu0 %v2680
        %2708 = vmatprep.subr.mxu0 0.0
        %2709 = vmatpush1.msra.mxu0 %v2681
        %2710 = vmatprep.subr.mxu0 0.0
        %2711 = vmatpush1.msra.mxu0 %v2682
        %2712 = vmatprep.subr.mxu0 0.0
        %2713 = vmatpush1.msra.mxu0 %v2683
        %2714 = vmatprep.subr.mxu0 0.0
        %2715 = vmatpush1.msra.mxu0 %v2684
        %2716 = vmatprep.subr.mxu0 0.0
        %2717 = vmatpush1.msra.mxu0 %v2685
        %2718 = vmatprep.subr.mxu0 0.0
        %2719 = vmatpush1.msra.mxu0 0.0
        %2720 = vmatprep.subr.mxu0 0.0
        %2721 = vmatpush1.msra.mxu0 0.0
        %2722 = vmatprep.subr.mxu0 0.0
        %2723 = vmatpush1.msra.mxu0 0.0
        %2724 = vmatprep.subr.mxu0 0.0
        %2725 = vmatpush1.msra.mxu0 0.0
        %2726 = vmatprep.subr.mxu0 0.0
        %2727 = vmatpush1.msra.mxu0 0.0
        %2728 = vmatprep.subr.mxu0 0.0
        %2729 = vmatpush1.msra.mxu0 0.0
        %2730 = vmatprep.subr.mxu0 0.0
        %2731 = vmatpush1.msra.mxu0 0.0
        %2732 = vmatprep.subr.mxu0 0.0
        %2733 = vmatpush1.msra.mxu0 0.0
        %2734 = vmatprep.subr.mxu0 0.0
        %2735 = vmatpush1.msra.mxu0 0.0
        %2736 = vmatprep.subr.mxu0 0.0
        %2737 = vmatpush1.msra.mxu0 0.0
        %2738 = vmatprep.subr.mxu0 0.0
        %2739 = vmatpush1.msra.mxu0 0.0
        %2740 = vmatprep.subr.mxu0 0.0
        %2741 = vmatpush1.msra.mxu0 0.0
        %2742 = vmatprep.subr.mxu0 0.0
        %2743 = vmatpush1.msra.mxu0 0.0
        %2744 = vmatprep.subr.mxu0 0.0
        %2745 = vmatpush1.msra.mxu0 0.0
        %2746 = vmatprep.subr.mxu0 0.0
        %2747 = vmatpush1.msra.mxu0 0.0
        %2748 = vmatprep.subr.mxu0 0.0
        %2749 = vmatpush1.msra.mxu0 0.0
        %2750 = vmatprep.mubr.f32.mxu0 0.0
        %2751 = vmatmul.mubr.f32.gmra.mrb[0].mxu0 %v2492
        %v2752 = vpop.f32.mrb[0].mxu0
        %v2753 = vadd.f32 0.0, %v2752
        %v2754 = vpop.f32.mrb[0].mxu0
        %2755 = vdwg.mxu0
        %v2756 = vmul.f32 %v2753, 0.2
        %v2757 = vsel %vm591, %v2753, %v2756
        %v2758 = vmul.f32 %v2757, %v594
        %v2759 = vld [vmem:[#allocation10] sm:$0xff]
        %v2760 = vld [vmem:[#allocation10 + $0x8] sm:$0xff]
        %v2761 = vld [vmem:[#allocation10 + $0x10] sm:$0xff]
        %v2762 = vld [vmem:[#allocation10 + $0x18] sm:$0xff]
        %v2763 = vld [vmem:[#allocation10 + $0x20] sm:$0xff]
        %v2764 = vld [vmem:[#allocation10 + $0x28] sm:$0xff]
        %v2765 = vld [vmem:[#allocation10 + $0x30] sm:$0xff]
        %v2766 = vld [vmem:[#allocation10 + $0x38] sm:$0xff]
        %v2767 = vld [vmem:[#allocation10 + $0x40] sm:$0xff]
        %v2768 = vld [vmem:[#allocation10 + $0x48] sm:$0xff]
        %v2769 = vld [vmem:[#allocation10 + $0x50] sm:$0xff]
        %v2770 = vld [vmem:[#allocation10 + $0x58] sm:$0xff]
        %v2771 = vld [vmem:[#allocation10 + $0x60] sm:$0xff]
        %v2772 = vld [vmem:[#allocation10 + $0x68] sm:$0xff]
        %v2773 = vld [vmem:[#allocation10 + $0x70] sm:$0xff]
        %v2774 = vld [vmem:[#allocation10 + $0x78] sm:$0xff]
        %2775 = vmatprep.subr.mxu0 0.0
        %2776 = vmatpush1.msra.mxu0 %v2759
        %2777 = vmatprep.subr.mxu0 0.0
        %2778 = vmatpush1.msra.mxu0 %v2760
        %2779 = vmatprep.subr.mxu0 0.0
        %2780 = vmatpush1.msra.mxu0 %v2761
        %2781 = vmatprep.subr.mxu0 0.0
        %2782 = vmatpush1.msra.mxu0 %v2762
        %2783 = vmatprep.subr.mxu0 0.0
        %2784 = vmatpush1.msra.mxu0 %v2763
        %2785 = vmatprep.subr.mxu0 0.0
        %2786 = vmatpush1.msra.mxu0 %v2764
        %2787 = vmatprep.subr.mxu0 0.0
        %2788 = vmatpush1.msra.mxu0 %v2765
        %2789 = vmatprep.subr.mxu0 0.0
        %2790 = vmatpush1.msra.mxu0 %v2766
        %2791 = vmatprep.subr.mxu0 0.0
        %2792 = vmatpush1.msra.mxu0 %v2767
        %2793 = vmatprep.subr.mxu0 0.0
        %2794 = vmatpush1.msra.mxu0 %v2768
        %2795 = vmatprep.subr.mxu0 0.0
        %2796 = vmatpush1.msra.mxu0 %v2769
        %2797 = vmatprep.subr.mxu0 0.0
        %2798 = vmatpush1.msra.mxu0 %v2770
        %2799 = vmatprep.subr.mxu0 0.0
        %2800 = vmatpush1.msra.mxu0 %v2771
        %2801 = vmatprep.subr.mxu0 0.0
        %2802 = vmatpush1.msra.mxu0 %v2772
        %2803 = vmatprep.subr.mxu0 0.0
        %2804 = vmatpush1.msra.mxu0 %v2773
        %2805 = vmatprep.subr.mxu0 0.0
        %2806 = vmatpush1.msra.mxu0 %v2774
        %2807 = vmatprep.subr.mxu0 0.0
        %2808 = vmatpush1.msra.mxu0 0.0
        %2809 = vmatprep.subr.mxu0 0.0
        %2810 = vmatpush1.msra.mxu0 0.0
        %2811 = vmatprep.subr.mxu0 0.0
        %2812 = vmatpush1.msra.mxu0 0.0
        %2813 = vmatprep.subr.mxu0 0.0
        %2814 = vmatpush1.msra.mxu0 0.0
        %2815 = vmatprep.subr.mxu0 0.0
        %2816 = vmatpush1.msra.mxu0 0.0
        %2817 = vmatprep.subr.mxu0 0.0
        %2818 = vmatpush1.msra.mxu0 0.0
        %2819 = vmatprep.subr.mxu0 0.0
        %2820 = vmatpush1.msra.mxu0 0.0
        %2821 = vmatprep.subr.mxu0 0.0
        %2822 = vmatpush1.msra.mxu0 0.0
        %2823 = vmatprep.subr.mxu0 0.0
        %2824 = vmatpush1.msra.mxu0 0.0
        %2825 = vmatprep.subr.mxu0 0.0
        %2826 = vmatpush1.msra.mxu0 0.0
        %2827 = vmatprep.subr.mxu0 0.0
        %2828 = vmatpush1.msra.mxu0 0.0
        %2829 = vmatprep.subr.mxu0 0.0
        %2830 = vmatpush1.msra.mxu0 0.0
        %2831 = vmatprep.subr.mxu0 0.0
        %2832 = vmatpush1.msra.mxu0 0.0
        %2833 = vmatprep.subr.mxu0 0.0
        %2834 = vmatpush1.msra.mxu0 0.0
        %2835 = vmatprep.subr.mxu0 0.0
        %2836 = vmatpush1.msra.mxu0 0.0
        %2837 = vmatprep.subr.mxu0 0.0
        %2838 = vmatpush1.msra.mxu0 0.0
        %2839 = vmatprep.mubr.f32.mxu0 0.0
        %2840 = vmatmul.mubr.f32.gmra.mrb[0].mxu0 %v2758
        %v2841 = vpop.f32.mrb[0].mxu0
        %v2842 = vadd.f32 0.0, %v2841
        %v2843 = vpop.f32.mrb[0].mxu0
        %2844 = vdwg.mxu0
        %v2845 = vadd.f32 %v2669, %v2842
        %v2846 = vld [vmem:[#allocation13] sm:$0xff]
        %v2847 = vld [vmem:[#allocation13 + $0x8] sm:$0xff]
        %v2848 = vld [vmem:[#allocation13 + $0x10] sm:$0xff]
        %v2849 = vld [vmem:[#allocation13 + $0x18] sm:$0xff]
        %v2850 = vld [vmem:[#allocation13 + $0x20] sm:$0xff]
        %v2851 = vld [vmem:[#allocation13 + $0x28] sm:$0xff]
        %v2852 = vld [vmem:[#allocation13 + $0x30] sm:$0xff]
        %v2853 = vld [vmem:[#allocation13 + $0x38] sm:$0xff]
        %v2854 = vld [vmem:[#allocation13 + $0x40] sm:$0xff]
        %v2855 = vld [vmem:[#allocation13 + $0x48] sm:$0xff]
        %v2856 = vld [vmem:[#allocation13 + $0x50] sm:$0xff]
        %v2857 = vld [vmem:[#allocation13 + $0x58] sm:$0xff]
        %v2858 = vld [vmem:[#allocation13 + $0x60] sm:$0xff]
        %v2859 = vld [vmem:[#allocation13 + $0x68] sm:$0xff]
        %v2860 = vld [vmem:[#allocation13 + $0x70] sm:$0xff]
        %v2861 = vld [vmem:[#allocation13 + $0x78] sm:$0xff]
        %2862 = vmatprep.subr.mxu0 0.0
        %2863 = vmatpush1.msra.mxu0 %v2846
        %2864 = vmatprep.subr.mxu0 0.0
        %2865 = vmatpush1.msra.mxu0 %v2847
        %2866 = vmatprep.subr.mxu0 0.0
        %2867 = vmatpush1.msra.mxu0 %v2848
        %2868 = vmatprep.subr.mxu0 0.0
        %2869 = vmatpush1.msra.mxu0 %v2849
        %2870 = vmatprep.subr.mxu0 0.0
        %2871 = vmatpush1.msra.mxu0 %v2850
        %2872 = vmatprep.subr.mxu0 0.0
        %2873 = vmatpush1.msra.mxu0 %v2851
        %2874 = vmatprep.subr.mxu0 0.0
        %2875 = vmatpush1.msra.mxu0 %v2852
        %2876 = vmatprep.subr.mxu0 0.0
        %2877 = vmatpush1.msra.mxu0 %v2853
        %2878 = vmatprep.subr.mxu0 0.0
        %2879 = vmatpush1.msra.mxu0 %v2854
        %2880 = vmatprep.subr.mxu0 0.0
        %2881 = vmatpush1.msra.mxu0 %v2855
        %2882 = vmatprep.subr.mxu0 0.0
        %2883 = vmatpush1.msra.mxu0 %v2856
        %2884 = vmatprep.subr.mxu0 0.0
        %2885 = vmatpush1.msra.mxu0 %v2857
        %2886 = vmatprep.subr.mxu0 0.0
        %2887 = vmatpush1.msra.mxu0 %v2858
        %2888 = vmatprep.subr.mxu0 0.0
        %2889 = vmatpush1.msra.mxu0 %v2859
        %2890 = vmatprep.subr.mxu0 0.0
        %2891 = vmatpush1.msra.mxu0 %v2860
        %2892 = vmatprep.subr.mxu0 0.0
        %2893 = vmatpush1.msra.mxu0 %v2861
        %2894 = vmatprep.subr.mxu0 0.0
        %2895 = vmatpush1.msra.mxu0 0.0
        %2896 = vmatprep.subr.mxu0 0.0
        %2897 = vmatpush1.msra.mxu0 0.0
        %2898 = vmatprep.subr.mxu0 0.0
        %2899 = vmatpush1.msra.mxu0 0.0
        %2900 = vmatprep.subr.mxu0 0.0
        %2901 = vmatpush1.msra.mxu0 0.0
        %2902 = vmatprep.subr.mxu0 0.0
        %2903 = vmatpush1.msra.mxu0 0.0
        %2904 = vmatprep.subr.mxu0 0.0
        %2905 = vmatpush1.msra.mxu0 0.0
        %2906 = vmatprep.subr.mxu0 0.0
        %2907 = vmatpush1.msra.mxu0 0.0
        %2908 = vmatprep.subr.mxu0 0.0
        %2909 = vmatpush1.msra.mxu0 0.0
        %2910 = vmatprep.subr.mxu0 0.0
        %2911 = vmatpush1.msra.mxu0 0.0
        %2912 = vmatprep.subr.mxu0 0.0
        %2913 = vmatpush1.msra.mxu0 0.0
        %2914 = vmatprep.subr.mxu0 0.0
        %2915 = vmatpush1.msra.mxu0 0.0
        %2916 = vmatprep.subr.mxu0 0.0
        %2917 = vmatpush1.msra.mxu0 0.0
        %2918 = vmatprep.subr.mxu0 0.0
        %2919 = vmatpush1.msra.mxu0 0.0
        %2920 = vmatprep.subr.mxu0 0.0
        %2921 = vmatpush1.msra.mxu0 0.0
        %2922 = vmatprep.subr.mxu0 0.0
        %2923 = vmatpush1.msra.mxu0 0.0
        %2924 = vmatprep.subr.mxu0 0.0
        %2925 = vmatpush1.msra.mxu0 0.0
        %2926 = vmatprep.mubr.f32.mxu0 0.0
        %2927 = vmatmul.mubr.f32.gmra.mrb[0].mxu0 %v2757
        %v2928 = vpop.f32.mrb[0].mxu0
        %v2929 = vadd.f32 0.0, %v2928
        %v2930 = vpop.f32.mrb[0].mxu0
        %2931 = vdwg.mxu0
        %v2932 = vadd.f32 %v2845, %v2929
        %v2933 = vmul.f32 %v2932, 0.5
        %v2934 = vmul.f32 %v408, 0.5
        %v2935 = vadd.f32 %v2933, %v2934
        %2936 = vst [vmem:[%s407] sm:$0xff] %v2935
        %s2937 = sand.u32 %s209, 1
        %s2938 = scalar_lea.sflag [#allocation4], %s2937
        %s2939 = sand.u32 %s209, 1
        %s2940 = smul.addr %s2939, 8
        %s2941 = scalar_lea.vmem [#allocation14], %s2940
        // Predicated region
        $region81: #{tpu_custom_call.1} parent=51 // pred_check
          %p2942 = pneg %p219
        $region82: #{tpu_custom_call.1} parent=51 // pred_check_branch
          %2944 = sbr.rel (%p2942) target = $region84
        $region83: #{tpu_custom_call.1} parent=51 // pred_region
          %s2946 = ssub.s32 128, 128
          %2947 = vsyncadd %s2938, %s2946
          %s2948 = smul.addr %s28, 128
          %s2949 = scalar_lea.hbm %s8, %s2948
          %s2951 = sshll.u32 %s2941, 4
          %s2952 = int_to_ptr.vmem [resolvable:$true] %s2951
          %2954 = dma.vmem_to_hbm [thread:$0]  %s2952, 128, %s2949, %s2938
        $region84: #{tpu_custom_call.1} parent=51 // pred_fallthru
          _
      $region52: #{tpu_custom_call.1} parent=5 // pred_fallthru
        _
      %p2955 = scmp.le.s32.totalorder 2, %s23
      // Predicated region
      $region85: #{tpu_custom_call.1} parent=5 // pred_check
        %p2956 = pneg %p2955
      $region86: #{tpu_custom_call.1} parent=5 // pred_check_branch
        %2958 = sbr.rel (%p2956) target = $region88
      $region87: #{tpu_custom_call.1} parent=5 // pred_region
        %s2959 = ssub.s32 %s23, 2
        // Predicated region
        $region89: #{tpu_custom_call.1} parent=87 // pred_check
          %p2960 = pneg %p225
        $region90: #{tpu_custom_call.1} parent=87 // pred_check_branch
          %2962 = sbr.rel (%p2960) target = $region92
        $region91: #{tpu_custom_call.1} parent=87 // pred_region
          %s2963 = sand.u32 %s210, 1
          %s2964 = scalar_lea.sflag [#allocation4], %s2963
          %s2965 = sand.u32 %s210, 1
          %s2966 = smul.addr %s2965, 8
          %s2967 = scalar_lea.vmem [#allocation14], %s2966
          %2968 = dma.done %s2964, 128
        $region92: #{tpu_custom_call.1} parent=87 // pred_fallthru
          _
      $region88: #{tpu_custom_call.1} parent=5 // pred_fallthru
        _
    $region6: #{tpu_custom_call.1} parent=1 // loop_footer
      %s27 = sadd.s32 1, %s23
    $region7: #{tpu_custom_call.1} parent=1 // loop_footer_branch
      %22 = sbr.rel target = $region3
    $region8: #{tpu_custom_call.1} parent=1 // loop_exit
      _
    %2969 = vsyncpa [#allocation3], 1
    %s2970 = scalar_lea.sflag [#allocation3], 1
    %2971 = vsyncpa %s2970, 1
    %2972 = vsyncpa [#allocation6], 1
    %2973 = vsyncpa [#allocation9], 1
    %2974 = vsyncpa [#allocation12], 1
    %2975 = vsyncpa [#allocation4], 1
    %s2976 = scalar_lea.sflag [#allocation4], 1
    %2977 = vsyncpa %s2976, 1

</llo_original>
